<compile_context>
chip_gen: v6e
topology: v6e:2x2x1
jax: 0.10.0
libtpu: 0.0.40
codegen_flags: <defaults>
</compile_context>

<pallas_src>
import functools
import math

import jax
import jax.numpy as jnp
from jax.experimental import pallas as pl
from jax.experimental.pallas import tpu as pltpu

# ----------------------------- model config (small, synthetic) ---------------
VOCAB = 50
TYPE_VOCAB = 2
HIDDEN = 32
NUM_HEADS = 2
HEAD_DIM = HIDDEN // NUM_HEADS
INTERMEDIATE = 64
NUM_LAYERS = 2
MAX_POS = 8
LN_EPS = 1e-12
NEG_INF = -1e9
CLS_PAD = 128                     # lane-dense classifier output slab (real width = 2)

EMB_ROWS = VOCAB + MAX_POS + TYPE_VOCAB     # rows: [word | position | type]
W_LANES = 128                                # lane width of each packed matrix slot
V_LANES = 128                                # lane width of each packed vector row
HEAD_ROWS = HIDDEN + 3                       # cls_w rows + emb_ln_g + emb_ln_b + cls_b


# ----------------------------- fused Pallas kernel ---------------------------
def _layernorm(h, g, b, eps):
    mu = jnp.mean(h, axis=-1, keepdims=True)
    var = jnp.mean((h - mu) ** 2, axis=-1, keepdims=True)
    return (h - mu) * jax.lax.rsqrt(var + eps) * g + b


def _bert_fused_kernel(
    ids_ref, seg_ref, vl_ref,                 # scalar-prefetch (SMEM)
    emb_ref, w_ref, v_ref, head_ref,          # packed VMEM slabs
    out_ref,
    *, batch, seq, num_heads, num_layers, eps, scale,
):
    m = batch * seq
    hidden = HIDDEN
    head_dim = hidden // num_heads

    # ---- embedding gather (word + position + type), fully in-kernel --------
    # emb_ref: (EMB_ROWS, 1, HIDDEN); dynamic index on the leading axis.
    rows = []
    for b in range(batch):
        for s in range(seq):
            wid = ids_ref[b, s]
            tid = seg_ref[b, s]
            rows.append(emb_ref[wid]
                        + emb_ref[VOCAB + s]
                        + emb_ref[VOCAB + MAX_POS + tid])
    emb = jnp.concatenate(rows, axis=0)                         # (M, H)

    head = head_ref[...]                                        # (HEAD_ROWS, 128)
    emb_g = head[hidden:hidden + 1, :hidden]
    emb_b = head[hidden + 1:hidden + 2, :hidden]
    x = _layernorm(emb, emb_g, emb_b, eps)

    # ---- block-diagonal additive attention bias from valid_length ----------
    # 0 where (same batch AND key_pos < valid_length[batch]), -1e9 otherwise.
    row_pos = jax.lax.broadcasted_iota(jnp.int32, (m, m), 0)
    col_pos = jax.lax.broadcasted_iota(jnp.int32, (m, m), 1)
    tok_pos = jax.lax.broadcasted_iota(jnp.int32, (1, m), 1)
    same = jnp.zeros((m, m), jnp.bool_)
    key_valid = jnp.zeros((1, m), jnp.bool_)
    for b in range(batch):                                      # static unroll
        lo, hi = b * seq, (b + 1) * seq
        same = same | (((row_pos >= lo) & (row_pos < hi))
                       & ((col_pos >= lo) & (col_pos < hi)))
        key_valid = key_valid | (((tok_pos >= lo) & (tok_pos < hi))
                                 & ((tok_pos - lo) < vl_ref[b]))
    bias = jnp.where(same & key_valid, 0.0, NEG_INF).astype(jnp.float32)

    # ---- encoder layers (static unroll) -------------------------------------
    for l in range(num_layers):
        wk = w_ref[l]                       # (4, H, 128)
        vk = v_ref[l]                       # (8, 128)
        qkv_w = wk[0, :, :3 * hidden]       # (H, 3H), head-major
        o_w = wk[1, :, :hidden]             # (H, H)
        f1_w = wk[2, :, :INTERMEDIATE]      # (H, I)
        f2_wT = wk[3, :, :INTERMEDIATE]     # (H, I) == ff2_w transposed
        qkv_b = vk[0:1, :3 * hidden]
        o_b = vk[1:2, :hidden]
        ln1_g = vk[2:3, :hidden]
        ln1_b = vk[3:4, :hidden]
        f1_b = vk[4:5, :INTERMEDIATE]
        f2_b = vk[5:6, :hidden]
        ln2_g = vk[6:7, :hidden]
        ln2_b = vk[7:8, :hidden]

        # fused, head-major Q|K|V projection
        qkv = jnp.dot(x, qkv_w, preferred_element_type=jnp.float32) + qkv_b

        ctxs = []
        for h in range(num_heads):          # static unroll
            base = h * 3 * head_dim         # contiguous 48-lane slice per head
            q = qkv[:, base:base + head_dim]
            k = qkv[:, base + head_dim:base + 2 * head_dim]
            v = qkv[:, base + 2 * head_dim:base + 3 * head_dim]

            s = jax.lax.dot_general(
                q, k, (((1,), (1,)), ((), ())),
                preferred_element_type=jnp.float32) * scale     # (M, M)
            s = s + bias
            s = s - jnp.max(s, axis=-1, keepdims=True)
            p = jnp.exp(s)
            p = p * pl.reciprocal(jnp.sum(p, axis=-1, keepdims=True),
                                  approx=True)
            ctxs.append(jnp.dot(p, v, preferred_element_type=jnp.float32))

        ctx = jnp.concatenate(ctxs, axis=1)                     # (M, H)
        attn = jnp.dot(ctx, o_w, preferred_element_type=jnp.float32) + o_b
        x = _layernorm(attn + x, ln1_g, ln1_b, eps)

        ff = jnp.dot(x, f1_w, preferred_element_type=jnp.float32) + f1_b
        # tanh-approximate GELU (EUP tanh instead of VALU erf polynomial)
        c = math.sqrt(2.0 / math.pi)
        ff = 0.5 * ff * (1.0 + jnp.tanh(c * (ff + 0.044715 * ff * ff * ff)))
        ff = jax.lax.dot_general(
            ff, f2_wT, (((1,), (1,)), ((), ())),
            preferred_element_type=jnp.float32) + f2_b
        x = _layernorm(ff + x, ln2_g, ln2_b, eps)

    # classifier + sigmoid (sigmoid via EUP tanh; exactly bounded in [0, 1])
    cls_w = head[:hidden, :]                                    # (H, 128)
    cls_b = head[hidden + 2:hidden + 3, :]                      # (1, 128)
    logits = jnp.dot(x, cls_w, preferred_element_type=jnp.float32) + cls_b
    out_ref[...] = 0.5 * (jnp.tanh(0.5 * logits) + 1.0)


# ----------------------------- parameter init (deterministic) -----------------
def init_params(key):
    def nrm(k, shape, scale=0.02):
        return scale * jax.random.normal(k, shape, dtype=jnp.float32)

    keys = iter(jax.random.split(key, 200))
    p = {
        "word_emb": nrm(next(keys), (VOCAB, HIDDEN)),
        "pos_emb": nrm(next(keys), (MAX_POS, HIDDEN)),
        "type_emb": nrm(next(keys), (TYPE_VOCAB, HIDDEN)),
        "emb_ln_g": jnp.ones((HIDDEN,), jnp.float32),
        "emb_ln_b": jnp.zeros((HIDDEN,), jnp.float32),
        "cls_w": nrm(next(keys), (HIDDEN, 2)),
        "cls_b": jnp.zeros((2,), jnp.float32),
        "layers": [],
    }
    for _ in range(NUM_LAYERS):
        lw = {
            "q_w": nrm(next(keys), (HIDDEN, HIDDEN)),
            "q_b": jnp.zeros((HIDDEN,), jnp.float32),
            "k_w": nrm(next(keys), (HIDDEN, HIDDEN)),
            "k_b": jnp.zeros((HIDDEN,), jnp.float32),
            "v_w": nrm(next(keys), (HIDDEN, HIDDEN)),
            "v_b": jnp.zeros((HIDDEN,), jnp.float32),
            "o_w": nrm(next(keys), (HIDDEN, HIDDEN)),
            "o_b": jnp.zeros((HIDDEN,), jnp.float32),
            "ln1_g": jnp.ones((HIDDEN,), jnp.float32),
            "ln1_b": jnp.zeros((HIDDEN,), jnp.float32),
            "ff1_w": nrm(next(keys), (HIDDEN, INTERMEDIATE)),
            "ff1_b": jnp.zeros((INTERMEDIATE,), jnp.float32),
            "ff2_w": nrm(next(keys), (INTERMEDIATE, HIDDEN)),
            "ff2_b": jnp.zeros((HIDDEN,), jnp.float32),
            "ln2_g": jnp.ones((HIDDEN,), jnp.float32),
            "ln2_b": jnp.zeros((HIDDEN,), jnp.float32),
        }
        p["layers"].append(lw)
    return p


def pack_params(params):
    """One-time packing: 4 VMEM slabs (embeddings, layer matrices, layer
    vectors, head), with head-major QKV and transposed ff2."""
    L = params["layers"]

    # embedding tables -> (EMB_ROWS, 1, HIDDEN): rows [word | pos | type]
    emb_tables = jnp.concatenate(
        [params["word_emb"], params["pos_emb"], params["type_emb"]],
        axis=0).reshape(EMB_ROWS, 1, HIDDEN).astype(jnp.float32)

    def head_major_qkv_w(lw):
        cols = []
        for h in range(NUM_HEADS):
            sl = slice(h * HEAD_DIM, (h + 1) * HEAD_DIM)
            cols += [lw["q_w"][:, sl], lw["k_w"][:, sl], lw["v_w"][:, sl]]
        return jnp.concatenate(cols, axis=1)                    # (H, 3H)

    def head_major_qkv_b(lw):
        cols = []
        for h in range(NUM_HEADS):
            sl = slice(h * HEAD_DIM, (h + 1) * HEAD_DIM)
            cols += [lw["q_b"][sl], lw["k_b"][sl], lw["v_b"][sl]]
        return jnp.concatenate(cols)                            # (3H,)

    def pad_lanes(a):
        return jnp.zeros((a.shape[0], W_LANES), jnp.float32).at[:, :a.shape[1]].set(a)

    def pad_row(a):
        return jnp.zeros((V_LANES,), jnp.float32).at[:a.shape[0]].set(a)

    w_slabs, v_slabs = [], []
    for lw in L:
        w_slabs.append(jnp.stack([
            pad_lanes(head_major_qkv_w(lw)),        # slot 0: qkv_w (head-major)
            pad_lanes(lw["o_w"]),                   # slot 1: o_w
            pad_lanes(lw["ff1_w"]),                 # slot 2: ff1_w
            pad_lanes(lw["ff2_w"].T),               # slot 3: ff2_w^T
        ]))                                         # (4, H, 128)
        v_slabs.append(jnp.stack([
            pad_row(head_major_qkv_b(lw)),          # row 0: qkv_b (head-major)
            pad_row(lw["o_b"]),                     # row 1
            pad_row(lw["ln1_g"]),                   # row 2
            pad_row(lw["ln1_b"]),                   # row 3
            pad_row(lw["ff1_b"]),                   # row 4
            pad_row(lw["ff2_b"]),                   # row 5
            pad_row(lw["ln2_g"]),                   # row 6
            pad_row(lw["ln2_b"]),                   # row 7
        ]))                                         # (8, 128)

    head_slab = jnp.zeros((HEAD_ROWS, CLS_PAD), jnp.float32)
    head_slab = head_slab.at[:HIDDEN, :2].set(params["cls_w"])
    head_slab = head_slab.at[HIDDEN, :HIDDEN].set(params["emb_ln_g"])
    head_slab = head_slab.at[HIDDEN + 1, :HIDDEN].set(params["emb_ln_b"])
    head_slab = head_slab.at[HIDDEN + 2, :2].set(params["cls_b"])

    return {
        "emb_tables": emb_tables,                   # (60, 1, 32)
        "layer_w": jnp.stack(w_slabs),              # (L, 4, 32, 128)
        "layer_v": jnp.stack(v_slabs),              # (L, 8, 128)
        "head": head_slab,                          # (35, 128)
    }


# ----------------------------- forward (single fused pallas_call) -------------
def bert_detector_forward(pk, input_ids, valid_length, segment_ids):
    B, S = input_ids.shape
    M = B * S

    kernel = functools.partial(
        _bert_fused_kernel, batch=B, seq=S, num_heads=NUM_HEADS,
        num_layers=NUM_LAYERS, eps=LN_EPS, scale=1.0 / math.sqrt(HEAD_DIM))

    vmem_inputs = (pk["emb_tables"], pk["layer_w"], pk["layer_v"], pk["head"])

    def full_spec(a):
        zeros = (0,) * a.ndim
        return pl.BlockSpec(a.shape, lambda i, ids, seg, vl, z=zeros: z)

    out_pad = pl.pallas_call(
        kernel,
        out_shape=jax.ShapeDtypeStruct((M, CLS_PAD), jnp.float32),
        grid_spec=pltpu.PrefetchScalarGridSpec(
            num_scalar_prefetch=3,
            grid=(1,),
            in_specs=[full_spec(a) for a in vmem_inputs],
            out_specs=pl.BlockSpec((M, CLS_PAD), lambda i, ids, seg, vl: (0, 0)),
        ),
        compiler_params=pltpu.CompilerParams(
            dimension_semantics=("arbitrary",)),
    )(input_ids.astype(jnp.int32), segment_ids.astype(jnp.int32),
      valid_length.astype(jnp.int32), *vmem_inputs)

    # dropout -> identity (inference); drop the lane padding
    return out_pad[:, :2].reshape(B, S, 2)


# ----------------------------- pure-JAX reference ------------------------------
def reference_forward(params, input_ids, valid_length, segment_ids):
    B, S = input_ids.shape
    mask = (jnp.arange(S)[None, :] < valid_length[:, None]).astype(jnp.float32)
    bias = ((1.0 - mask) * NEG_INF)[:, None, None, :]

    def ln(h, g, b):
        mu = jnp.mean(h, -1, keepdims=True)
        var = jnp.mean((h - mu) ** 2, -1, keepdims=True)
        return (h - mu) * jax.lax.rsqrt(var + LN_EPS) * g + b

    x = (params["word_emb"][input_ids]
         + params["pos_emb"][jnp.arange(S)][None, :, :]
         + params["type_emb"][segment_ids])
    x = ln(x, params["emb_ln_g"], params["emb_ln_b"])

    def heads(t):
        return t.reshape(B, S, NUM_HEADS, HEAD_DIM).transpose(0, 2, 1, 3)

    for lw in params["layers"]:
        q = x @ lw["q_w"] + lw["q_b"]
        k = x @ lw["k_w"] + lw["k_b"]
        v = x @ lw["v_w"] + lw["v_b"]
        s = jnp.einsum("bhqd,bhkd->bhqk", heads(q), heads(k)) / math.sqrt(HEAD_DIM)
        p = jax.nn.softmax(s + bias, axis=-1)
        ctx = jnp.einsum("bhqk,bhkd->bhqd", p, heads(v))
        ctx = ctx.transpose(0, 2, 1, 3).reshape(B, S, HIDDEN)
        x = ln(ctx @ lw["o_w"] + lw["o_b"] + x, lw["ln1_g"], lw["ln1_b"])
        ff = x @ lw["ff1_w"] + lw["ff1_b"]
        ff = 0.5 * ff * (1.0 + jax.lax.erf(ff / jnp.sqrt(2.0)))   # erf GELU (HF)
        ff = ff @ lw["ff2_w"] + lw["ff2_b"]
        x = ln(ff + x, lw["ln2_g"], lw["ln2_b"])
    return jax.nn.sigmoid(x @ params["cls_w"] + params["cls_b"])


# ----------------------------- main -------------------------------------------
if __name__ == "__main__":
    key = jax.random.PRNGKey(0)
    pkey, ikey, skey = jax.random.split(key, 3)

    params = init_params(pkey)
    packed = pack_params(params)

    B, S = 2, 8
    input_ids = jax.random.randint(ikey, (B, S), 0, VOCAB, dtype=jnp.int32)
    segment_ids = jax.random.randint(skey, (B, S), 0, TYPE_VOCAB, dtype=jnp.int32)
    valid_length = jnp.array([8, 5], dtype=jnp.int32)

    fwd = jax.jit(bert_detector_forward)
    out = jax.block_until_ready(fwd(packed, input_ids, valid_length, segment_ids))

    assert out.shape == (B, S, 2)
    assert bool(jnp.all(jnp.isfinite(out)))
    assert bool(jnp.all((out >= 0.0) & (out <= 1.0)))

    ref = reference_forward(params, input_ids, valid_length, segment_ids)
    assert bool(jnp.allclose(out, ref, atol=1e-2, rtol=1e-2))

    print("KERNEL_OK")
</pallas_src>

<mosaic_0001>
module attributes {stable_mosaic.version = 11 : i64} {
  func.func @_bert_fused_kernel(%arg0: i32, %arg1: memref<2x8xi32, #tpu.memory_space<smem>>, %arg2: memref<2x8xi32, #tpu.memory_space<smem>>, %arg3: memref<2xi32, #tpu.memory_space<smem>>, %arg4: memref<60x1x32xf32, #tpu.memory_space<vmem>>, %arg5: memref<2x4x32x128xf32, #tpu.memory_space<vmem>>, %arg6: memref<2x8x128xf32, #tpu.memory_space<vmem>>, %arg7: memref<35x128xf32, #tpu.memory_space<vmem>>, %arg8: memref<16x128xf32, #tpu.memory_space<vmem>>) attributes {dimension_semantics = [#tpu.dimension_semantics<arbitrary>], iteration_bounds = array<i64: 1>, scalar_prefetch = 3 : i64, scratch_operands = 0 : i64, tpu.core_type = #tpu.core_type<tc>, window_params = [{pipeline_mode = #tpu.pipeline_mode<synchronous>, transform_indices = @transform_0, window_bounds = array<i64: 60, 1, 32>}, {pipeline_mode = #tpu.pipeline_mode<synchronous>, transform_indices = @transform_1, window_bounds = array<i64: 2, 4, 32, 128>}, {pipeline_mode = #tpu.pipeline_mode<synchronous>, transform_indices = @transform_2, window_bounds = array<i64: 2, 8, 128>}, {pipeline_mode = #tpu.pipeline_mode<synchronous>, transform_indices = @transform_3, window_bounds = array<i64: 35, 128>}, {pipeline_mode = #tpu.pipeline_mode<synchronous>, transform_indices = @transform_4, window_bounds = array<i64: 16, 128>}]} {
    %c0 = arith.constant 0 : index
    %c0_0 = arith.constant 0 : index
    %0 = memref.load %arg1[%c0, %c0_0] : memref<2x8xi32, #tpu.memory_space<smem>>
    %c0_1 = arith.constant 0 : index
    %c0_2 = arith.constant 0 : index
    %1 = memref.load %arg2[%c0_1, %c0_2] : memref<2x8xi32, #tpu.memory_space<smem>>
    %2 = arith.index_cast %0 : i32 to index
    %c0_3 = arith.constant 0 : index
    %c0_4 = arith.constant 0 : index
    %3 = vector.load %arg4[%2, %c0_3, %c0_4] : memref<60x1x32xf32, #tpu.memory_space<vmem>>, vector<1x1x32xf32>
    %4 = vector.shape_cast %3 : vector<1x1x32xf32> to vector<1x32xf32>
    %c50 = arith.constant 50 : index
    %c0_5 = arith.constant 0 : index
    %c0_6 = arith.constant 0 : index
    %5 = vector.load %arg4[%c50, %c0_5, %c0_6] : memref<60x1x32xf32, #tpu.memory_space<vmem>>, vector<1x1x32xf32>
    %6 = vector.shape_cast %5 : vector<1x1x32xf32> to vector<1x32xf32>
    %7 = arith.addf %4, %6 : vector<1x32xf32>
    %c58_i32 = arith.constant 58 : i32
    %8 = arith.addi %c58_i32, %1 : i32
    %9 = arith.index_cast %8 : i32 to index
    %c0_7 = arith.constant 0 : index
    %c0_8 = arith.constant 0 : index
    %10 = vector.load %arg4[%9, %c0_7, %c0_8] : memref<60x1x32xf32, #tpu.memory_space<vmem>>, vector<1x1x32xf32>
    %11 = vector.shape_cast %10 : vector<1x1x32xf32> to vector<1x32xf32>
    %12 = arith.addf %7, %11 : vector<1x32xf32>
    %c0_9 = arith.constant 0 : index
    %c1 = arith.constant 1 : index
    %13 = memref.load %arg1[%c0_9, %c1] : memref<2x8xi32, #tpu.memory_space<smem>>
    %c0_10 = arith.constant 0 : index
    %c1_11 = arith.constant 1 : index
    %14 = memref.load %arg2[%c0_10, %c1_11] : memref<2x8xi32, #tpu.memory_space<smem>>
    %15 = arith.index_cast %13 : i32 to index
    %c0_12 = arith.constant 0 : index
    %c0_13 = arith.constant 0 : index
    %16 = vector.load %arg4[%15, %c0_12, %c0_13] : memref<60x1x32xf32, #tpu.memory_space<vmem>>, vector<1x1x32xf32>
    %17 = vector.shape_cast %16 : vector<1x1x32xf32> to vector<1x32xf32>
    %c51 = arith.constant 51 : index
    %c0_14 = arith.constant 0 : index
    %c0_15 = arith.constant 0 : index
    %18 = vector.load %arg4[%c51, %c0_14, %c0_15] : memref<60x1x32xf32, #tpu.memory_space<vmem>>, vector<1x1x32xf32>
    %19 = vector.shape_cast %18 : vector<1x1x32xf32> to vector<1x32xf32>
    %20 = arith.addf %17, %19 : vector<1x32xf32>
    %c58_i32_16 = arith.constant 58 : i32
    %21 = arith.addi %c58_i32_16, %14 : i32
    %22 = arith.index_cast %21 : i32 to index
    %c0_17 = arith.constant 0 : index
    %c0_18 = arith.constant 0 : index
    %23 = vector.load %arg4[%22, %c0_17, %c0_18] : memref<60x1x32xf32, #tpu.memory_space<vmem>>, vector<1x1x32xf32>
    %24 = vector.shape_cast %23 : vector<1x1x32xf32> to vector<1x32xf32>
    %25 = arith.addf %20, %24 : vector<1x32xf32>
    %c0_19 = arith.constant 0 : index
    %c2 = arith.constant 2 : index
    %26 = memref.load %arg1[%c0_19, %c2] : memref<2x8xi32, #tpu.memory_space<smem>>
    %c0_20 = arith.constant 0 : index
    %c2_21 = arith.constant 2 : index
    %27 = memref.load %arg2[%c0_20, %c2_21] : memref<2x8xi32, #tpu.memory_space<smem>>
    %28 = arith.index_cast %26 : i32 to index
    %c0_22 = arith.constant 0 : index
    %c0_23 = arith.constant 0 : index
    %29 = vector.load %arg4[%28, %c0_22, %c0_23] : memref<60x1x32xf32, #tpu.memory_space<vmem>>, vector<1x1x32xf32>
    %30 = vector.shape_cast %29 : vector<1x1x32xf32> to vector<1x32xf32>
    %c52 = arith.constant 52 : index
    %c0_24 = arith.constant 0 : index
    %c0_25 = arith.constant 0 : index
    %31 = vector.load %arg4[%c52, %c0_24, %c0_25] : memref<60x1x32xf32, #tpu.memory_space<vmem>>, vector<1x1x32xf32>
    %32 = vector.shape_cast %31 : vector<1x1x32xf32> to vector<1x32xf32>
    %33 = arith.addf %30, %32 : vector<1x32xf32>
    %c58_i32_26 = arith.constant 58 : i32
    %34 = arith.addi %c58_i32_26, %27 : i32
    %35 = arith.index_cast %34 : i32 to index
    %c0_27 = arith.constant 0 : index
    %c0_28 = arith.constant 0 : index
    %36 = vector.load %arg4[%35, %c0_27, %c0_28] : memref<60x1x32xf32, #tpu.memory_space<vmem>>, vector<1x1x32xf32>
    %37 = vector.shape_cast %36 : vector<1x1x32xf32> to vector<1x32xf32>
    %38 = arith.addf %33, %37 : vector<1x32xf32>
    %c0_29 = arith.constant 0 : index
    %c3 = arith.constant 3 : index
    %39 = memref.load %arg1[%c0_29, %c3] : memref<2x8xi32, #tpu.memory_space<smem>>
    %c0_30 = arith.constant 0 : index
    %c3_31 = arith.constant 3 : index
    %40 = memref.load %arg2[%c0_30, %c3_31] : memref<2x8xi32, #tpu.memory_space<smem>>
    %41 = arith.index_cast %39 : i32 to index
    %c0_32 = arith.constant 0 : index
    %c0_33 = arith.constant 0 : index
    %42 = vector.load %arg4[%41, %c0_32, %c0_33] : memref<60x1x32xf32, #tpu.memory_space<vmem>>, vector<1x1x32xf32>
    %43 = vector.shape_cast %42 : vector<1x1x32xf32> to vector<1x32xf32>
    %c53 = arith.constant 53 : index
    %c0_34 = arith.constant 0 : index
    %c0_35 = arith.constant 0 : index
    %44 = vector.load %arg4[%c53, %c0_34, %c0_35] : memref<60x1x32xf32, #tpu.memory_space<vmem>>, vector<1x1x32xf32>
    %45 = vector.shape_cast %44 : vector<1x1x32xf32> to vector<1x32xf32>
    %46 = arith.addf %43, %45 : vector<1x32xf32>
    %c58_i32_36 = arith.constant 58 : i32
    %47 = arith.addi %c58_i32_36, %40 : i32
    %48 = arith.index_cast %47 : i32 to index
    %c0_37 = arith.constant 0 : index
    %c0_38 = arith.constant 0 : index
    %49 = vector.load %arg4[%48, %c0_37, %c0_38] : memref<60x1x32xf32, #tpu.memory_space<vmem>>, vector<1x1x32xf32>
    %50 = vector.shape_cast %49 : vector<1x1x32xf32> to vector<1x32xf32>
    %51 = arith.addf %46, %50 : vector<1x32xf32>
    %c0_39 = arith.constant 0 : index
    %c4 = arith.constant 4 : index
    %52 = memref.load %arg1[%c0_39, %c4] : memref<2x8xi32, #tpu.memory_space<smem>>
    %c0_40 = arith.constant 0 : index
    %c4_41 = arith.constant 4 : index
    %53 = memref.load %arg2[%c0_40, %c4_41] : memref<2x8xi32, #tpu.memory_space<smem>>
    %54 = arith.index_cast %52 : i32 to index
    %c0_42 = arith.constant 0 : index
    %c0_43 = arith.constant 0 : index
    %55 = vector.load %arg4[%54, %c0_42, %c0_43] : memref<60x1x32xf32, #tpu.memory_space<vmem>>, vector<1x1x32xf32>
    %56 = vector.shape_cast %55 : vector<1x1x32xf32> to vector<1x32xf32>
    %c54 = arith.constant 54 : index
    %c0_44 = arith.constant 0 : index
    %c0_45 = arith.constant 0 : index
    %57 = vector.load %arg4[%c54, %c0_44, %c0_45] : memref<60x1x32xf32, #tpu.memory_space<vmem>>, vector<1x1x32xf32>
    %58 = vector.shape_cast %57 : vector<1x1x32xf32> to vector<1x32xf32>
    %59 = arith.addf %56, %58 : vector<1x32xf32>
    %c58_i32_46 = arith.constant 58 : i32
    %60 = arith.addi %c58_i32_46, %53 : i32
    %61 = arith.index_cast %60 : i32 to index
    %c0_47 = arith.constant 0 : index
    %c0_48 = arith.constant 0 : index
    %62 = vector.load %arg4[%61, %c0_47, %c0_48] : memref<60x1x32xf32, #tpu.memory_space<vmem>>, vector<1x1x32xf32>
    %63 = vector.shape_cast %62 : vector<1x1x32xf32> to vector<1x32xf32>
    %64 = arith.addf %59, %63 : vector<1x32xf32>
    %c0_49 = arith.constant 0 : index
    %c5 = arith.constant 5 : index
    %65 = memref.load %arg1[%c0_49, %c5] : memref<2x8xi32, #tpu.memory_space<smem>>
    %c0_50 = arith.constant 0 : index
    %c5_51 = arith.constant 5 : index
    %66 = memref.load %arg2[%c0_50, %c5_51] : memref<2x8xi32, #tpu.memory_space<smem>>
    %67 = arith.index_cast %65 : i32 to index
    %c0_52 = arith.constant 0 : index
    %c0_53 = arith.constant 0 : index
    %68 = vector.load %arg4[%67, %c0_52, %c0_53] : memref<60x1x32xf32, #tpu.memory_space<vmem>>, vector<1x1x32xf32>
    %69 = vector.shape_cast %68 : vector<1x1x32xf32> to vector<1x32xf32>
    %c55 = arith.constant 55 : index
    %c0_54 = arith.constant 0 : index
    %c0_55 = arith.constant 0 : index
    %70 = vector.load %arg4[%c55, %c0_54, %c0_55] : memref<60x1x32xf32, #tpu.memory_space<vmem>>, vector<1x1x32xf32>
    %71 = vector.shape_cast %70 : vector<1x1x32xf32> to vector<1x32xf32>
    %72 = arith.addf %69, %71 : vector<1x32xf32>
    %c58_i32_56 = arith.constant 58 : i32
    %73 = arith.addi %c58_i32_56, %66 : i32
    %74 = arith.index_cast %73 : i32 to index
    %c0_57 = arith.constant 0 : index
    %c0_58 = arith.constant 0 : index
    %75 = vector.load %arg4[%74, %c0_57, %c0_58] : memref<60x1x32xf32, #tpu.memory_space<vmem>>, vector<1x1x32xf32>
    %76 = vector.shape_cast %75 : vector<1x1x32xf32> to vector<1x32xf32>
    %77 = arith.addf %72, %76 : vector<1x32xf32>
    %c0_59 = arith.constant 0 : index
    %c6 = arith.constant 6 : index
    %78 = memref.load %arg1[%c0_59, %c6] : memref<2x8xi32, #tpu.memory_space<smem>>
    %c0_60 = arith.constant 0 : index
    %c6_61 = arith.constant 6 : index
    %79 = memref.load %arg2[%c0_60, %c6_61] : memref<2x8xi32, #tpu.memory_space<smem>>
    %80 = arith.index_cast %78 : i32 to index
    %c0_62 = arith.constant 0 : index
    %c0_63 = arith.constant 0 : index
    %81 = vector.load %arg4[%80, %c0_62, %c0_63] : memref<60x1x32xf32, #tpu.memory_space<vmem>>, vector<1x1x32xf32>
    %82 = vector.shape_cast %81 : vector<1x1x32xf32> to vector<1x32xf32>
    %c56 = arith.constant 56 : index
    %c0_64 = arith.constant 0 : index
    %c0_65 = arith.constant 0 : index
    %83 = vector.load %arg4[%c56, %c0_64, %c0_65] : memref<60x1x32xf32, #tpu.memory_space<vmem>>, vector<1x1x32xf32>
    %84 = vector.shape_cast %83 : vector<1x1x32xf32> to vector<1x32xf32>
    %85 = arith.addf %82, %84 : vector<1x32xf32>
    %c58_i32_66 = arith.constant 58 : i32
    %86 = arith.addi %c58_i32_66, %79 : i32
    %87 = arith.index_cast %86 : i32 to index
    %c0_67 = arith.constant 0 : index
    %c0_68 = arith.constant 0 : index
    %88 = vector.load %arg4[%87, %c0_67, %c0_68] : memref<60x1x32xf32, #tpu.memory_space<vmem>>, vector<1x1x32xf32>
    %89 = vector.shape_cast %88 : vector<1x1x32xf32> to vector<1x32xf32>
    %90 = arith.addf %85, %89 : vector<1x32xf32>
    %c0_69 = arith.constant 0 : index
    %c7 = arith.constant 7 : index
    %91 = memref.load %arg1[%c0_69, %c7] : memref<2x8xi32, #tpu.memory_space<smem>>
    %c0_70 = arith.constant 0 : index
    %c7_71 = arith.constant 7 : index
    %92 = memref.load %arg2[%c0_70, %c7_71] : memref<2x8xi32, #tpu.memory_space<smem>>
    %93 = arith.index_cast %91 : i32 to index
    %c0_72 = arith.constant 0 : index
    %c0_73 = arith.constant 0 : index
    %94 = vector.load %arg4[%93, %c0_72, %c0_73] : memref<60x1x32xf32, #tpu.memory_space<vmem>>, vector<1x1x32xf32>
    %95 = vector.shape_cast %94 : vector<1x1x32xf32> to vector<1x32xf32>
    %c57 = arith.constant 57 : index
    %c0_74 = arith.constant 0 : index
    %c0_75 = arith.constant 0 : index
    %96 = vector.load %arg4[%c57, %c0_74, %c0_75] : memref<60x1x32xf32, #tpu.memory_space<vmem>>, vector<1x1x32xf32>
    %97 = vector.shape_cast %96 : vector<1x1x32xf32> to vector<1x32xf32>
    %98 = arith.addf %95, %97 : vector<1x32xf32>
    %c58_i32_76 = arith.constant 58 : i32
    %99 = arith.addi %c58_i32_76, %92 : i32
    %100 = arith.index_cast %99 : i32 to index
    %c0_77 = arith.constant 0 : index
    %c0_78 = arith.constant 0 : index
    %101 = vector.load %arg4[%100, %c0_77, %c0_78] : memref<60x1x32xf32, #tpu.memory_space<vmem>>, vector<1x1x32xf32>
    %102 = vector.shape_cast %101 : vector<1x1x32xf32> to vector<1x32xf32>
    %103 = arith.addf %98, %102 : vector<1x32xf32>
    %c1_79 = arith.constant 1 : index
    %c0_80 = arith.constant 0 : index
    %104 = memref.load %arg1[%c1_79, %c0_80] : memref<2x8xi32, #tpu.memory_space<smem>>
    %c1_81 = arith.constant 1 : index
    %c0_82 = arith.constant 0 : index
    %105 = memref.load %arg2[%c1_81, %c0_82] : memref<2x8xi32, #tpu.memory_space<smem>>
    %106 = arith.index_cast %104 : i32 to index
    %c0_83 = arith.constant 0 : index
    %c0_84 = arith.constant 0 : index
    %107 = vector.load %arg4[%106, %c0_83, %c0_84] : memref<60x1x32xf32, #tpu.memory_space<vmem>>, vector<1x1x32xf32>
    %108 = vector.shape_cast %107 : vector<1x1x32xf32> to vector<1x32xf32>
    %c50_85 = arith.constant 50 : index
    %c0_86 = arith.constant 0 : index
    %c0_87 = arith.constant 0 : index
    %109 = vector.load %arg4[%c50_85, %c0_86, %c0_87] : memref<60x1x32xf32, #tpu.memory_space<vmem>>, vector<1x1x32xf32>
    %110 = vector.shape_cast %109 : vector<1x1x32xf32> to vector<1x32xf32>
    %111 = arith.addf %108, %110 : vector<1x32xf32>
    %c58_i32_88 = arith.constant 58 : i32
    %112 = arith.addi %c58_i32_88, %105 : i32
    %113 = arith.index_cast %112 : i32 to index
    %c0_89 = arith.constant 0 : index
    %c0_90 = arith.constant 0 : index
    %114 = vector.load %arg4[%113, %c0_89, %c0_90] : memref<60x1x32xf32, #tpu.memory_space<vmem>>, vector<1x1x32xf32>
    %115 = vector.shape_cast %114 : vector<1x1x32xf32> to vector<1x32xf32>
    %116 = arith.addf %111, %115 : vector<1x32xf32>
    %c1_91 = arith.constant 1 : index
    %c1_92 = arith.constant 1 : index
    %117 = memref.load %arg1[%c1_91, %c1_92] : memref<2x8xi32, #tpu.memory_space<smem>>
    %c1_93 = arith.constant 1 : index
    %c1_94 = arith.constant 1 : index
    %118 = memref.load %arg2[%c1_93, %c1_94] : memref<2x8xi32, #tpu.memory_space<smem>>
    %119 = arith.index_cast %117 : i32 to index
    %c0_95 = arith.constant 0 : index
    %c0_96 = arith.constant 0 : index
    %120 = vector.load %arg4[%119, %c0_95, %c0_96] : memref<60x1x32xf32, #tpu.memory_space<vmem>>, vector<1x1x32xf32>
    %121 = vector.shape_cast %120 : vector<1x1x32xf32> to vector<1x32xf32>
    %c51_97 = arith.constant 51 : index
    %c0_98 = arith.constant 0 : index
    %c0_99 = arith.constant 0 : index
    %122 = vector.load %arg4[%c51_97, %c0_98, %c0_99] : memref<60x1x32xf32, #tpu.memory_space<vmem>>, vector<1x1x32xf32>
    %123 = vector.shape_cast %122 : vector<1x1x32xf32> to vector<1x32xf32>
    %124 = arith.addf %121, %123 : vector<1x32xf32>
    %c58_i32_100 = arith.constant 58 : i32
    %125 = arith.addi %c58_i32_100, %118 : i32
    %126 = arith.index_cast %125 : i32 to index
    %c0_101 = arith.constant 0 : index
    %c0_102 = arith.constant 0 : index
    %127 = vector.load %arg4[%126, %c0_101, %c0_102] : memref<60x1x32xf32, #tpu.memory_space<vmem>>, vector<1x1x32xf32>
    %128 = vector.shape_cast %127 : vector<1x1x32xf32> to vector<1x32xf32>
    %129 = arith.addf %124, %128 : vector<1x32xf32>
    %c1_103 = arith.constant 1 : index
    %c2_104 = arith.constant 2 : index
    %130 = memref.load %arg1[%c1_103, %c2_104] : memref<2x8xi32, #tpu.memory_space<smem>>
    %c1_105 = arith.constant 1 : index
    %c2_106 = arith.constant 2 : index
    %131 = memref.load %arg2[%c1_105, %c2_106] : memref<2x8xi32, #tpu.memory_space<smem>>
    %132 = arith.index_cast %130 : i32 to index
    %c0_107 = arith.constant 0 : index
    %c0_108 = arith.constant 0 : index
    %133 = vector.load %arg4[%132, %c0_107, %c0_108] : memref<60x1x32xf32, #tpu.memory_space<vmem>>, vector<1x1x32xf32>
    %134 = vector.shape_cast %133 : vector<1x1x32xf32> to vector<1x32xf32>
    %c52_109 = arith.constant 52 : index
    %c0_110 = arith.constant 0 : index
    %c0_111 = arith.constant 0 : index
    %135 = vector.load %arg4[%c52_109, %c0_110, %c0_111] : memref<60x1x32xf32, #tpu.memory_space<vmem>>, vector<1x1x32xf32>
    %136 = vector.shape_cast %135 : vector<1x1x32xf32> to vector<1x32xf32>
    %137 = arith.addf %134, %136 : vector<1x32xf32>
    %c58_i32_112 = arith.constant 58 : i32
    %138 = arith.addi %c58_i32_112, %131 : i32
    %139 = arith.index_cast %138 : i32 to index
    %c0_113 = arith.constant 0 : index
    %c0_114 = arith.constant 0 : index
    %140 = vector.load %arg4[%139, %c0_113, %c0_114] : memref<60x1x32xf32, #tpu.memory_space<vmem>>, vector<1x1x32xf32>
    %141 = vector.shape_cast %140 : vector<1x1x32xf32> to vector<1x32xf32>
    %142 = arith.addf %137, %141 : vector<1x32xf32>
    %c1_115 = arith.constant 1 : index
    %c3_116 = arith.constant 3 : index
    %143 = memref.load %arg1[%c1_115, %c3_116] : memref<2x8xi32, #tpu.memory_space<smem>>
    %c1_117 = arith.constant 1 : index
    %c3_118 = arith.constant 3 : index
    %144 = memref.load %arg2[%c1_117, %c3_118] : memref<2x8xi32, #tpu.memory_space<smem>>
    %145 = arith.index_cast %143 : i32 to index
    %c0_119 = arith.constant 0 : index
    %c0_120 = arith.constant 0 : index
    %146 = vector.load %arg4[%145, %c0_119, %c0_120] : memref<60x1x32xf32, #tpu.memory_space<vmem>>, vector<1x1x32xf32>
    %147 = vector.shape_cast %146 : vector<1x1x32xf32> to vector<1x32xf32>
    %c53_121 = arith.constant 53 : index
    %c0_122 = arith.constant 0 : index
    %c0_123 = arith.constant 0 : index
    %148 = vector.load %arg4[%c53_121, %c0_122, %c0_123] : memref<60x1x32xf32, #tpu.memory_space<vmem>>, vector<1x1x32xf32>
    %149 = vector.shape_cast %148 : vector<1x1x32xf32> to vector<1x32xf32>
    %150 = arith.addf %147, %149 : vector<1x32xf32>
    %c58_i32_124 = arith.constant 58 : i32
    %151 = arith.addi %c58_i32_124, %144 : i32
    %152 = arith.index_cast %151 : i32 to index
    %c0_125 = arith.constant 0 : index
    %c0_126 = arith.constant 0 : index
    %153 = vector.load %arg4[%152, %c0_125, %c0_126] : memref<60x1x32xf32, #tpu.memory_space<vmem>>, vector<1x1x32xf32>
    %154 = vector.shape_cast %153 : vector<1x1x32xf32> to vector<1x32xf32>
    %155 = arith.addf %150, %154 : vector<1x32xf32>
    %c1_127 = arith.constant 1 : index
    %c4_128 = arith.constant 4 : index
    %156 = memref.load %arg1[%c1_127, %c4_128] : memref<2x8xi32, #tpu.memory_space<smem>>
    %c1_129 = arith.constant 1 : index
    %c4_130 = arith.constant 4 : index
    %157 = memref.load %arg2[%c1_129, %c4_130] : memref<2x8xi32, #tpu.memory_space<smem>>
    %158 = arith.index_cast %156 : i32 to index
    %c0_131 = arith.constant 0 : index
    %c0_132 = arith.constant 0 : index
    %159 = vector.load %arg4[%158, %c0_131, %c0_132] : memref<60x1x32xf32, #tpu.memory_space<vmem>>, vector<1x1x32xf32>
    %160 = vector.shape_cast %159 : vector<1x1x32xf32> to vector<1x32xf32>
    %c54_133 = arith.constant 54 : index
    %c0_134 = arith.constant 0 : index
    %c0_135 = arith.constant 0 : index
    %161 = vector.load %arg4[%c54_133, %c0_134, %c0_135] : memref<60x1x32xf32, #tpu.memory_space<vmem>>, vector<1x1x32xf32>
    %162 = vector.shape_cast %161 : vector<1x1x32xf32> to vector<1x32xf32>
    %163 = arith.addf %160, %162 : vector<1x32xf32>
    %c58_i32_136 = arith.constant 58 : i32
    %164 = arith.addi %c58_i32_136, %157 : i32
    %165 = arith.index_cast %164 : i32 to index
    %c0_137 = arith.constant 0 : index
    %c0_138 = arith.constant 0 : index
    %166 = vector.load %arg4[%165, %c0_137, %c0_138] : memref<60x1x32xf32, #tpu.memory_space<vmem>>, vector<1x1x32xf32>
    %167 = vector.shape_cast %166 : vector<1x1x32xf32> to vector<1x32xf32>
    %168 = arith.addf %163, %167 : vector<1x32xf32>
    %c1_139 = arith.constant 1 : index
    %c5_140 = arith.constant 5 : index
    %169 = memref.load %arg1[%c1_139, %c5_140] : memref<2x8xi32, #tpu.memory_space<smem>>
    %c1_141 = arith.constant 1 : index
    %c5_142 = arith.constant 5 : index
    %170 = memref.load %arg2[%c1_141, %c5_142] : memref<2x8xi32, #tpu.memory_space<smem>>
    %171 = arith.index_cast %169 : i32 to index
    %c0_143 = arith.constant 0 : index
    %c0_144 = arith.constant 0 : index
    %172 = vector.load %arg4[%171, %c0_143, %c0_144] : memref<60x1x32xf32, #tpu.memory_space<vmem>>, vector<1x1x32xf32>
    %173 = vector.shape_cast %172 : vector<1x1x32xf32> to vector<1x32xf32>
    %c55_145 = arith.constant 55 : index
    %c0_146 = arith.constant 0 : index
    %c0_147 = arith.constant 0 : index
    %174 = vector.load %arg4[%c55_145, %c0_146, %c0_147] : memref<60x1x32xf32, #tpu.memory_space<vmem>>, vector<1x1x32xf32>
    %175 = vector.shape_cast %174 : vector<1x1x32xf32> to vector<1x32xf32>
    %176 = arith.addf %173, %175 : vector<1x32xf32>
    %c58_i32_148 = arith.constant 58 : i32
    %177 = arith.addi %c58_i32_148, %170 : i32
    %178 = arith.index_cast %177 : i32 to index
    %c0_149 = arith.constant 0 : index
    %c0_150 = arith.constant 0 : index
    %179 = vector.load %arg4[%178, %c0_149, %c0_150] : memref<60x1x32xf32, #tpu.memory_space<vmem>>, vector<1x1x32xf32>
    %180 = vector.shape_cast %179 : vector<1x1x32xf32> to vector<1x32xf32>
    %181 = arith.addf %176, %180 : vector<1x32xf32>
    %c1_151 = arith.constant 1 : index
    %c6_152 = arith.constant 6 : index
    %182 = memref.load %arg1[%c1_151, %c6_152] : memref<2x8xi32, #tpu.memory_space<smem>>
    %c1_153 = arith.constant 1 : index
    %c6_154 = arith.constant 6 : index
    %183 = memref.load %arg2[%c1_153, %c6_154] : memref<2x8xi32, #tpu.memory_space<smem>>
    %184 = arith.index_cast %182 : i32 to index
    %c0_155 = arith.constant 0 : index
    %c0_156 = arith.constant 0 : index
    %185 = vector.load %arg4[%184, %c0_155, %c0_156] : memref<60x1x32xf32, #tpu.memory_space<vmem>>, vector<1x1x32xf32>
    %186 = vector.shape_cast %185 : vector<1x1x32xf32> to vector<1x32xf32>
    %c56_157 = arith.constant 56 : index
    %c0_158 = arith.constant 0 : index
    %c0_159 = arith.constant 0 : index
    %187 = vector.load %arg4[%c56_157, %c0_158, %c0_159] : memref<60x1x32xf32, #tpu.memory_space<vmem>>, vector<1x1x32xf32>
    %188 = vector.shape_cast %187 : vector<1x1x32xf32> to vector<1x32xf32>
    %189 = arith.addf %186, %188 : vector<1x32xf32>
    %c58_i32_160 = arith.constant 58 : i32
    %190 = arith.addi %c58_i32_160, %183 : i32
    %191 = arith.index_cast %190 : i32 to index
    %c0_161 = arith.constant 0 : index
    %c0_162 = arith.constant 0 : index
    %192 = vector.load %arg4[%191, %c0_161, %c0_162] : memref<60x1x32xf32, #tpu.memory_space<vmem>>, vector<1x1x32xf32>
    %193 = vector.shape_cast %192 : vector<1x1x32xf32> to vector<1x32xf32>
    %194 = arith.addf %189, %193 : vector<1x32xf32>
    %c1_163 = arith.constant 1 : index
    %c7_164 = arith.constant 7 : index
    %195 = memref.load %arg1[%c1_163, %c7_164] : memref<2x8xi32, #tpu.memory_space<smem>>
    %c1_165 = arith.constant 1 : index
    %c7_166 = arith.constant 7 : index
    %196 = memref.load %arg2[%c1_165, %c7_166] : memref<2x8xi32, #tpu.memory_space<smem>>
    %197 = arith.index_cast %195 : i32 to index
    %c0_167 = arith.constant 0 : index
    %c0_168 = arith.constant 0 : index
    %198 = vector.load %arg4[%197, %c0_167, %c0_168] : memref<60x1x32xf32, #tpu.memory_space<vmem>>, vector<1x1x32xf32>
    %199 = vector.shape_cast %198 : vector<1x1x32xf32> to vector<1x32xf32>
    %c57_169 = arith.constant 57 : index
    %c0_170 = arith.constant 0 : index
    %c0_171 = arith.constant 0 : index
    %200 = vector.load %arg4[%c57_169, %c0_170, %c0_171] : memref<60x1x32xf32, #tpu.memory_space<vmem>>, vector<1x1x32xf32>
    %201 = vector.shape_cast %200 : vector<1x1x32xf32> to vector<1x32xf32>
    %202 = arith.addf %199, %201 : vector<1x32xf32>
    %c58_i32_172 = arith.constant 58 : i32
    %203 = arith.addi %c58_i32_172, %196 : i32
    %204 = arith.index_cast %203 : i32 to index
    %c0_173 = arith.constant 0 : index
    %c0_174 = arith.constant 0 : index
    %205 = vector.load %arg4[%204, %c0_173, %c0_174] : memref<60x1x32xf32, #tpu.memory_space<vmem>>, vector<1x1x32xf32>
    %206 = vector.shape_cast %205 : vector<1x1x32xf32> to vector<1x32xf32>
    %207 = arith.addf %202, %206 : vector<1x32xf32>
    %208 = tpu.concatenate %12, %25, %38, %51, %64, %77, %90, %103, %116, %129, %142, %155, %168, %181, %194, %207 in 0 : vector<1x32xf32>, vector<1x32xf32>, vector<1x32xf32>, vector<1x32xf32>, vector<1x32xf32>, vector<1x32xf32>, vector<1x32xf32>, vector<1x32xf32>, vector<1x32xf32>, vector<1x32xf32>, vector<1x32xf32>, vector<1x32xf32>, vector<1x32xf32>, vector<1x32xf32>, vector<1x32xf32>, vector<1x32xf32> -> vector<16x32xf32>
    %c0_175 = arith.constant 0 : index
    %c0_176 = arith.constant 0 : index
    %209 = vector.load %arg7[%c0_175, %c0_176] : memref<35x128xf32, #tpu.memory_space<vmem>>, vector<35x128xf32>
    %210 = vector.extract_strided_slice %209 {offsets = [32, 0], sizes = [1, 32], strides = [1, 1]} : vector<35x128xf32> to vector<1x32xf32>
    %211 = vector.extract_strided_slice %209 {offsets = [33, 0], sizes = [1, 32], strides = [1, 1]} : vector<35x128xf32> to vector<1x32xf32>
    %cst = arith.constant dense<0.000000e+00> : vector<16xf32>
    %212 = vector.multi_reduction <add>, %208, %cst [1] : vector<16x32xf32> to vector<16xf32>
    %213 = vector.shape_cast %212 : vector<16xf32> to vector<16x1xf32>
    %cst_177 = arith.constant 3.200000e+01 : f32
    %214 = vector.broadcast %cst_177 : f32 to vector<16x1xf32>
    %215 = arith.divf %213, %214 : vector<16x1xf32>
    %216 = vector.broadcast %215 : vector<16x1xf32> to vector<16x32xf32>
    %217 = arith.subf %208, %216 : vector<16x32xf32>
    %218 = arith.mulf %217, %217 : vector<16x32xf32>
    %cst_178 = arith.constant dense<0.000000e+00> : vector<16xf32>
    %219 = vector.multi_reduction <add>, %218, %cst_178 [1] : vector<16x32xf32> to vector<16xf32>
    %220 = vector.shape_cast %219 : vector<16xf32> to vector<16x1xf32>
    %cst_179 = arith.constant 3.200000e+01 : f32
    %221 = vector.broadcast %cst_179 : f32 to vector<16x1xf32>
    %222 = arith.divf %220, %221 : vector<16x1xf32>
    %223 = vector.broadcast %215 : vector<16x1xf32> to vector<16x32xf32>
    %224 = arith.subf %208, %223 : vector<16x32xf32>
    %cst_180 = arith.constant 9.99999996E-13 : f32
    %225 = vector.broadcast %cst_180 : f32 to vector<16x1xf32>
    %226 = arith.addf %222, %225 : vector<16x1xf32>
    %227 = math.rsqrt %226 : vector<16x1xf32>
    %228 = vector.broadcast %227 : vector<16x1xf32> to vector<16x32xf32>
    %229 = arith.mulf %224, %228 : vector<16x32xf32>
    %230 = vector.broadcast %210 : vector<1x32xf32> to vector<16x32xf32>
    %231 = arith.mulf %229, %230 : vector<16x32xf32>
    %232 = vector.broadcast %211 : vector<1x32xf32> to vector<16x32xf32>
    %233 = arith.addf %231, %232 : vector<16x32xf32>
    %234 = tpu.iota {dimensions = array<i32: 0>} : vector<16x16xi32>
    %235 = tpu.iota {dimensions = array<i32: 1>} : vector<16x16xi32>
    %236 = tpu.iota {dimensions = array<i32: 1>} : vector<1x16xi32>
    %false = arith.constant false
    %237 = vector.broadcast %false : i1 to vector<16x16xi1>
    %false_181 = arith.constant false
    %238 = vector.broadcast %false_181 : i1 to vector<1x16xi1>
    %c0_i32 = arith.constant 0 : i32
    %239 = vector.broadcast %c0_i32 : i32 to vector<16x16xi32>
    %240 = arith.cmpi sge, %234, %239 : vector<16x16xi32>
    %c8_i32 = arith.constant 8 : i32
    %241 = vector.broadcast %c8_i32 : i32 to vector<16x16xi32>
    %242 = arith.cmpi slt, %234, %241 : vector<16x16xi32>
    %243 = arith.andi %240, %242 : vector<16x16xi1>
    %c0_i32_182 = arith.constant 0 : i32
    %244 = vector.broadcast %c0_i32_182 : i32 to vector<16x16xi32>
    %245 = arith.cmpi sge, %235, %244 : vector<16x16xi32>
    %c8_i32_183 = arith.constant 8 : i32
    %246 = vector.broadcast %c8_i32_183 : i32 to vector<16x16xi32>
    %247 = arith.cmpi slt, %235, %246 : vector<16x16xi32>
    %248 = arith.andi %245, %247 : vector<16x16xi1>
    %249 = arith.andi %243, %248 : vector<16x16xi1>
    %250 = arith.ori %237, %249 : vector<16x16xi1>
    %c0_i32_184 = arith.constant 0 : i32
    %251 = vector.broadcast %c0_i32_184 : i32 to vector<1x16xi32>
    %252 = arith.cmpi sge, %236, %251 : vector<1x16xi32>
    %c8_i32_185 = arith.constant 8 : i32
    %253 = vector.broadcast %c8_i32_185 : i32 to vector<1x16xi32>
    %254 = arith.cmpi slt, %236, %253 : vector<1x16xi32>
    %255 = arith.andi %252, %254 : vector<1x16xi1>
    %c0_i32_186 = arith.constant 0 : i32
    %256 = vector.broadcast %c0_i32_186 : i32 to vector<1x16xi32>
    %257 = arith.subi %236, %256 : vector<1x16xi32>
    %c0_187 = arith.constant 0 : index
    %258 = memref.load %arg3[%c0_187] : memref<2xi32, #tpu.memory_space<smem>>
    %259 = vector.broadcast %258 : i32 to vector<1x16xi32>
    %260 = arith.cmpi slt, %257, %259 : vector<1x16xi32>
    %261 = arith.andi %255, %260 : vector<1x16xi1>
    %262 = arith.ori %238, %261 : vector<1x16xi1>
    %c8_i32_188 = arith.constant 8 : i32
    %263 = vector.broadcast %c8_i32_188 : i32 to vector<16x16xi32>
    %264 = arith.cmpi sge, %234, %263 : vector<16x16xi32>
    %c16_i32 = arith.constant 16 : i32
    %265 = vector.broadcast %c16_i32 : i32 to vector<16x16xi32>
    %266 = arith.cmpi slt, %234, %265 : vector<16x16xi32>
    %267 = arith.andi %264, %266 : vector<16x16xi1>
    %c8_i32_189 = arith.constant 8 : i32
    %268 = vector.broadcast %c8_i32_189 : i32 to vector<16x16xi32>
    %269 = arith.cmpi sge, %235, %268 : vector<16x16xi32>
    %c16_i32_190 = arith.constant 16 : i32
    %270 = vector.broadcast %c16_i32_190 : i32 to vector<16x16xi32>
    %271 = arith.cmpi slt, %235, %270 : vector<16x16xi32>
    %272 = arith.andi %269, %271 : vector<16x16xi1>
    %273 = arith.andi %267, %272 : vector<16x16xi1>
    %274 = arith.ori %250, %273 : vector<16x16xi1>
    %c8_i32_191 = arith.constant 8 : i32
    %275 = vector.broadcast %c8_i32_191 : i32 to vector<1x16xi32>
    %276 = arith.cmpi sge, %236, %275 : vector<1x16xi32>
    %c16_i32_192 = arith.constant 16 : i32
    %277 = vector.broadcast %c16_i32_192 : i32 to vector<1x16xi32>
    %278 = arith.cmpi slt, %236, %277 : vector<1x16xi32>
    %279 = arith.andi %276, %278 : vector<1x16xi1>
    %c8_i32_193 = arith.constant 8 : i32
    %280 = vector.broadcast %c8_i32_193 : i32 to vector<1x16xi32>
    %281 = arith.subi %236, %280 : vector<1x16xi32>
    %c1_194 = arith.constant 1 : index
    %282 = memref.load %arg3[%c1_194] : memref<2xi32, #tpu.memory_space<smem>>
    %283 = vector.broadcast %282 : i32 to vector<1x16xi32>
    %284 = arith.cmpi slt, %281, %283 : vector<1x16xi32>
    %285 = arith.andi %279, %284 : vector<1x16xi1>
    %286 = arith.ori %262, %285 : vector<1x16xi1>
    %287 = vector.broadcast %286 : vector<1x16xi1> to vector<16x16xi1>
    %288 = arith.andi %274, %287 : vector<16x16xi1>
    %cst_195 = arith.constant 0.000000e+00 : f32
    %cst_196 = arith.constant -1.000000e+09 : f32
    %289 = vector.broadcast %cst_195 : f32 to vector<16x16xf32>
    %290 = vector.broadcast %cst_196 : f32 to vector<16x16xf32>
    %291 = arith.select %288, %289, %290 : vector<16x16xi1>, vector<16x16xf32>
    %c0_197 = arith.constant 0 : index
    %c0_198 = arith.constant 0 : index
    %c0_199 = arith.constant 0 : index
    %c0_200 = arith.constant 0 : index
    %292 = vector.load %arg5[%c0_197, %c0_198, %c0_199, %c0_200] : memref<2x4x32x128xf32, #tpu.memory_space<vmem>>, vector<1x4x32x128xf32>
    %293 = vector.shape_cast %292 : vector<1x4x32x128xf32> to vector<4x32x128xf32>
    %c0_201 = arith.constant 0 : index
    %c0_202 = arith.constant 0 : index
    %c0_203 = arith.constant 0 : index
    %294 = vector.load %arg6[%c0_201, %c0_202, %c0_203] : memref<2x8x128xf32, #tpu.memory_space<vmem>>, vector<1x8x128xf32>
    %295 = vector.shape_cast %294 : vector<1x8x128xf32> to vector<8x128xf32>
    %296 = vector.extract_strided_slice %293 {offsets = [0, 0, 0], sizes = [1, 32, 96], strides = [1, 1, 1]} : vector<4x32x128xf32> to vector<1x32x96xf32>
    %297 = vector.shape_cast %296 : vector<1x32x96xf32> to vector<32x96xf32>
    %298 = vector.extract_strided_slice %293 {offsets = [1, 0, 0], sizes = [1, 32, 32], strides = [1, 1, 1]} : vector<4x32x128xf32> to vector<1x32x32xf32>
    %299 = vector.shape_cast %298 : vector<1x32x32xf32> to vector<32x32xf32>
    %300 = vector.extract_strided_slice %293 {offsets = [2, 0, 0], sizes = [1, 32, 64], strides = [1, 1, 1]} : vector<4x32x128xf32> to vector<1x32x64xf32>
    %301 = vector.shape_cast %300 : vector<1x32x64xf32> to vector<32x64xf32>
    %302 = vector.extract_strided_slice %293 {offsets = [3, 0, 0], sizes = [1, 32, 64], strides = [1, 1, 1]} : vector<4x32x128xf32> to vector<1x32x64xf32>
    %303 = vector.shape_cast %302 : vector<1x32x64xf32> to vector<32x64xf32>
    %304 = vector.extract_strided_slice %295 {offsets = [0, 0], sizes = [1, 96], strides = [1, 1]} : vector<8x128xf32> to vector<1x96xf32>
    %305 = vector.extract_strided_slice %295 {offsets = [1, 0], sizes = [1, 32], strides = [1, 1]} : vector<8x128xf32> to vector<1x32xf32>
    %306 = vector.extract_strided_slice %295 {offsets = [2, 0], sizes = [1, 32], strides = [1, 1]} : vector<8x128xf32> to vector<1x32xf32>
    %307 = vector.extract_strided_slice %295 {offsets = [3, 0], sizes = [1, 32], strides = [1, 1]} : vector<8x128xf32> to vector<1x32xf32>
    %308 = vector.extract_strided_slice %295 {offsets = [4, 0], sizes = [1, 64], strides = [1, 1]} : vector<8x128xf32> to vector<1x64xf32>
    %309 = vector.extract_strided_slice %295 {offsets = [5, 0], sizes = [1, 32], strides = [1, 1]} : vector<8x128xf32> to vector<1x32xf32>
    %310 = vector.extract_strided_slice %295 {offsets = [6, 0], sizes = [1, 32], strides = [1, 1]} : vector<8x128xf32> to vector<1x32xf32>
    %311 = vector.extract_strided_slice %295 {offsets = [7, 0], sizes = [1, 32], strides = [1, 1]} : vector<8x128xf32> to vector<1x32xf32>
    %cst_204 = arith.constant dense<0.000000e+00> : vector<16x96xf32>
    %312 = tpu.matmul %233, %297, %cst_204 {dimension_numbers = #tpu.dot_dimension_numbers<[1], [0], [0], [1], [0, 0, 1, 1], [], []>} : vector<16x32xf32>, vector<32x96xf32>, vector<16x96xf32> -> vector<16x96xf32>
    %313 = vector.broadcast %304 : vector<1x96xf32> to vector<16x96xf32>
    %314 = arith.addf %312, %313 : vector<16x96xf32>
    %315 = vector.extract_strided_slice %314 {offsets = [0, 0], sizes = [16, 16], strides = [1, 1]} : vector<16x96xf32> to vector<16x16xf32>
    %316 = vector.extract_strided_slice %314 {offsets = [0, 16], sizes = [16, 16], strides = [1, 1]} : vector<16x96xf32> to vector<16x16xf32>
    %317 = vector.extract_strided_slice %314 {offsets = [0, 32], sizes = [16, 16], strides = [1, 1]} : vector<16x96xf32> to vector<16x16xf32>
    %cst_205 = arith.constant dense<0.000000e+00> : vector<16x16xf32>
    %318 = tpu.matmul %315, %316, %cst_205 {dimension_numbers = #tpu.dot_dimension_numbers<[1], [1], [0], [0], [0, 0, 1, 0], [], []>} : vector<16x16xf32>, vector<16x16xf32>, vector<16x16xf32> -> vector<16x16xf32>
    %cst_206 = arith.constant 2.500000e-01 : f32
    %319 = vector.broadcast %cst_206 : f32 to vector<16x16xf32>
    %320 = arith.mulf %318, %319 : vector<16x16xf32>
    %321 = arith.addf %320, %291 : vector<16x16xf32>
    %cst_207 = arith.constant dense<0xFF800000> : vector<16xf32>
    %322 = vector.multi_reduction <maximumf>, %321, %cst_207 [1] : vector<16x16xf32> to vector<16xf32>
    %323 = vector.shape_cast %322 : vector<16xf32> to vector<16x1xf32>
    %324 = vector.broadcast %323 : vector<16x1xf32> to vector<16x16xf32>
    %325 = arith.subf %321, %324 : vector<16x16xf32>
    %326 = math.exp %325 : vector<16x16xf32>
    %cst_208 = arith.constant dense<0.000000e+00> : vector<16xf32>
    %327 = vector.multi_reduction <add>, %326, %cst_208 [1] : vector<16x16xf32> to vector<16xf32>
    %328 = vector.shape_cast %327 : vector<16xf32> to vector<16x1xf32>
    %329 = tpu.reciprocal %328 {approx = true} : vector<16x1xf32> -> vector<16x1xf32>
    %330 = vector.broadcast %329 : vector<16x1xf32> to vector<16x16xf32>
    %331 = arith.mulf %326, %330 : vector<16x16xf32>
    %cst_209 = arith.constant dense<0.000000e+00> : vector<16x16xf32>
    %332 = tpu.matmul %331, %317, %cst_209 {dimension_numbers = #tpu.dot_dimension_numbers<[1], [0], [0], [1], [0, 0, 1, 1], [], []>} : vector<16x16xf32>, vector<16x16xf32>, vector<16x16xf32> -> vector<16x16xf32>
    %333 = vector.extract_strided_slice %314 {offsets = [0, 48], sizes = [16, 16], strides = [1, 1]} : vector<16x96xf32> to vector<16x16xf32>
    %334 = vector.extract_strided_slice %314 {offsets = [0, 64], sizes = [16, 16], strides = [1, 1]} : vector<16x96xf32> to vector<16x16xf32>
    %335 = vector.extract_strided_slice %314 {offsets = [0, 80], sizes = [16, 16], strides = [1, 1]} : vector<16x96xf32> to vector<16x16xf32>
    %cst_210 = arith.constant dense<0.000000e+00> : vector<16x16xf32>
    %336 = tpu.matmul %333, %334, %cst_210 {dimension_numbers = #tpu.dot_dimension_numbers<[1], [1], [0], [0], [0, 0, 1, 0], [], []>} : vector<16x16xf32>, vector<16x16xf32>, vector<16x16xf32> -> vector<16x16xf32>
    %cst_211 = arith.constant 2.500000e-01 : f32
    %337 = vector.broadcast %cst_211 : f32 to vector<16x16xf32>
    %338 = arith.mulf %336, %337 : vector<16x16xf32>
    %339 = arith.addf %338, %291 : vector<16x16xf32>
    %cst_212 = arith.constant dense<0xFF800000> : vector<16xf32>
    %340 = vector.multi_reduction <maximumf>, %339, %cst_212 [1] : vector<16x16xf32> to vector<16xf32>
    %341 = vector.shape_cast %340 : vector<16xf32> to vector<16x1xf32>
    %342 = vector.broadcast %341 : vector<16x1xf32> to vector<16x16xf32>
    %343 = arith.subf %339, %342 : vector<16x16xf32>
    %344 = math.exp %343 : vector<16x16xf32>
    %cst_213 = arith.constant dense<0.000000e+00> : vector<16xf32>
    %345 = vector.multi_reduction <add>, %344, %cst_213 [1] : vector<16x16xf32> to vector<16xf32>
    %346 = vector.shape_cast %345 : vector<16xf32> to vector<16x1xf32>
    %347 = tpu.reciprocal %346 {approx = true} : vector<16x1xf32> -> vector<16x1xf32>
    %348 = vector.broadcast %347 : vector<16x1xf32> to vector<16x16xf32>
    %349 = arith.mulf %344, %348 : vector<16x16xf32>
    %cst_214 = arith.constant dense<0.000000e+00> : vector<16x16xf32>
    %350 = tpu.matmul %349, %335, %cst_214 {dimension_numbers = #tpu.dot_dimension_numbers<[1], [0], [0], [1], [0, 0, 1, 1], [], []>} : vector<16x16xf32>, vector<16x16xf32>, vector<16x16xf32> -> vector<16x16xf32>
    %351 = tpu.concatenate %332, %350 in 1 : vector<16x16xf32>, vector<16x16xf32> -> vector<16x32xf32>
    %cst_215 = arith.constant dense<0.000000e+00> : vector<16x32xf32>
    %352 = tpu.matmul %351, %299, %cst_215 {dimension_numbers = #tpu.dot_dimension_numbers<[1], [0], [0], [1], [0, 0, 1, 1], [], []>} : vector<16x32xf32>, vector<32x32xf32>, vector<16x32xf32> -> vector<16x32xf32>
    %353 = vector.broadcast %305 : vector<1x32xf32> to vector<16x32xf32>
    %354 = arith.addf %352, %353 : vector<16x32xf32>
    %355 = arith.addf %354, %233 : vector<16x32xf32>
    %cst_216 = arith.constant dense<0.000000e+00> : vector<16xf32>
    %356 = vector.multi_reduction <add>, %355, %cst_216 [1] : vector<16x32xf32> to vector<16xf32>
    %357 = vector.shape_cast %356 : vector<16xf32> to vector<16x1xf32>
    %cst_217 = arith.constant 3.200000e+01 : f32
    %358 = vector.broadcast %cst_217 : f32 to vector<16x1xf32>
    %359 = arith.divf %357, %358 : vector<16x1xf32>
    %360 = vector.broadcast %359 : vector<16x1xf32> to vector<16x32xf32>
    %361 = arith.subf %355, %360 : vector<16x32xf32>
    %362 = arith.mulf %361, %361 : vector<16x32xf32>
    %cst_218 = arith.constant dense<0.000000e+00> : vector<16xf32>
    %363 = vector.multi_reduction <add>, %362, %cst_218 [1] : vector<16x32xf32> to vector<16xf32>
    %364 = vector.shape_cast %363 : vector<16xf32> to vector<16x1xf32>
    %cst_219 = arith.constant 3.200000e+01 : f32
    %365 = vector.broadcast %cst_219 : f32 to vector<16x1xf32>
    %366 = arith.divf %364, %365 : vector<16x1xf32>
    %367 = vector.broadcast %359 : vector<16x1xf32> to vector<16x32xf32>
    %368 = arith.subf %355, %367 : vector<16x32xf32>
    %cst_220 = arith.constant 9.99999996E-13 : f32
    %369 = vector.broadcast %cst_220 : f32 to vector<16x1xf32>
    %370 = arith.addf %366, %369 : vector<16x1xf32>
    %371 = math.rsqrt %370 : vector<16x1xf32>
    %372 = vector.broadcast %371 : vector<16x1xf32> to vector<16x32xf32>
    %373 = arith.mulf %368, %372 : vector<16x32xf32>
    %374 = vector.broadcast %306 : vector<1x32xf32> to vector<16x32xf32>
    %375 = arith.mulf %373, %374 : vector<16x32xf32>
    %376 = vector.broadcast %307 : vector<1x32xf32> to vector<16x32xf32>
    %377 = arith.addf %375, %376 : vector<16x32xf32>
    %cst_221 = arith.constant dense<0.000000e+00> : vector<16x64xf32>
    %378 = tpu.matmul %377, %301, %cst_221 {dimension_numbers = #tpu.dot_dimension_numbers<[1], [0], [0], [1], [0, 0, 1, 1], [], []>} : vector<16x32xf32>, vector<32x64xf32>, vector<16x64xf32> -> vector<16x64xf32>
    %379 = vector.broadcast %308 : vector<1x64xf32> to vector<16x64xf32>
    %380 = arith.addf %378, %379 : vector<16x64xf32>
    %cst_222 = arith.constant 5.000000e-01 : f32
    %381 = vector.broadcast %cst_222 : f32 to vector<16x64xf32>
    %382 = arith.mulf %381, %380 : vector<16x64xf32>
    %cst_223 = arith.constant 4.471500e-02 : f32
    %383 = vector.broadcast %cst_223 : f32 to vector<16x64xf32>
    %384 = arith.mulf %383, %380 : vector<16x64xf32>
    %385 = arith.mulf %384, %380 : vector<16x64xf32>
    %386 = arith.mulf %385, %380 : vector<16x64xf32>
    %387 = arith.addf %380, %386 : vector<16x64xf32>
    %cst_224 = arith.constant 0.797884583 : f32
    %388 = vector.broadcast %cst_224 : f32 to vector<16x64xf32>
    %389 = arith.mulf %388, %387 : vector<16x64xf32>
    %390 = math.tanh %389 : vector<16x64xf32>
    %cst_225 = arith.constant 1.000000e+00 : f32
    %391 = vector.broadcast %cst_225 : f32 to vector<16x64xf32>
    %392 = arith.addf %391, %390 : vector<16x64xf32>
    %393 = arith.mulf %382, %392 : vector<16x64xf32>
    %cst_226 = arith.constant dense<0.000000e+00> : vector<16x32xf32>
    %394 = tpu.matmul %393, %303, %cst_226 {dimension_numbers = #tpu.dot_dimension_numbers<[1], [1], [0], [0], [0, 0, 1, 0], [], []>} : vector<16x64xf32>, vector<32x64xf32>, vector<16x32xf32> -> vector<16x32xf32>
    %395 = vector.broadcast %309 : vector<1x32xf32> to vector<16x32xf32>
    %396 = arith.addf %394, %395 : vector<16x32xf32>
    %397 = arith.addf %396, %377 : vector<16x32xf32>
    %cst_227 = arith.constant dense<0.000000e+00> : vector<16xf32>
    %398 = vector.multi_reduction <add>, %397, %cst_227 [1] : vector<16x32xf32> to vector<16xf32>
    %399 = vector.shape_cast %398 : vector<16xf32> to vector<16x1xf32>
    %cst_228 = arith.constant 3.200000e+01 : f32
    %400 = vector.broadcast %cst_228 : f32 to vector<16x1xf32>
    %401 = arith.divf %399, %400 : vector<16x1xf32>
    %402 = vector.broadcast %401 : vector<16x1xf32> to vector<16x32xf32>
    %403 = arith.subf %397, %402 : vector<16x32xf32>
    %404 = arith.mulf %403, %403 : vector<16x32xf32>
    %cst_229 = arith.constant dense<0.000000e+00> : vector<16xf32>
    %405 = vector.multi_reduction <add>, %404, %cst_229 [1] : vector<16x32xf32> to vector<16xf32>
    %406 = vector.shape_cast %405 : vector<16xf32> to vector<16x1xf32>
    %cst_230 = arith.constant 3.200000e+01 : f32
    %407 = vector.broadcast %cst_230 : f32 to vector<16x1xf32>
    %408 = arith.divf %406, %407 : vector<16x1xf32>
    %409 = vector.broadcast %401 : vector<16x1xf32> to vector<16x32xf32>
    %410 = arith.subf %397, %409 : vector<16x32xf32>
    %cst_231 = arith.constant 9.99999996E-13 : f32
    %411 = vector.broadcast %cst_231 : f32 to vector<16x1xf32>
    %412 = arith.addf %408, %411 : vector<16x1xf32>
    %413 = math.rsqrt %412 : vector<16x1xf32>
    %414 = vector.broadcast %413 : vector<16x1xf32> to vector<16x32xf32>
    %415 = arith.mulf %410, %414 : vector<16x32xf32>
    %416 = vector.broadcast %310 : vector<1x32xf32> to vector<16x32xf32>
    %417 = arith.mulf %415, %416 : vector<16x32xf32>
    %418 = vector.broadcast %311 : vector<1x32xf32> to vector<16x32xf32>
    %419 = arith.addf %417, %418 : vector<16x32xf32>
    %c1_232 = arith.constant 1 : index
    %c0_233 = arith.constant 0 : index
    %c0_234 = arith.constant 0 : index
    %c0_235 = arith.constant 0 : index
    %420 = vector.load %arg5[%c1_232, %c0_233, %c0_234, %c0_235] : memref<2x4x32x128xf32, #tpu.memory_space<vmem>>, vector<1x4x32x128xf32>
    %421 = vector.shape_cast %420 : vector<1x4x32x128xf32> to vector<4x32x128xf32>
    %c1_236 = arith.constant 1 : index
    %c0_237 = arith.constant 0 : index
    %c0_238 = arith.constant 0 : index
    %422 = vector.load %arg6[%c1_236, %c0_237, %c0_238] : memref<2x8x128xf32, #tpu.memory_space<vmem>>, vector<1x8x128xf32>
    %423 = vector.shape_cast %422 : vector<1x8x128xf32> to vector<8x128xf32>
    %424 = vector.extract_strided_slice %421 {offsets = [0, 0, 0], sizes = [1, 32, 96], strides = [1, 1, 1]} : vector<4x32x128xf32> to vector<1x32x96xf32>
    %425 = vector.shape_cast %424 : vector<1x32x96xf32> to vector<32x96xf32>
    %426 = vector.extract_strided_slice %421 {offsets = [1, 0, 0], sizes = [1, 32, 32], strides = [1, 1, 1]} : vector<4x32x128xf32> to vector<1x32x32xf32>
    %427 = vector.shape_cast %426 : vector<1x32x32xf32> to vector<32x32xf32>
    %428 = vector.extract_strided_slice %421 {offsets = [2, 0, 0], sizes = [1, 32, 64], strides = [1, 1, 1]} : vector<4x32x128xf32> to vector<1x32x64xf32>
    %429 = vector.shape_cast %428 : vector<1x32x64xf32> to vector<32x64xf32>
    %430 = vector.extract_strided_slice %421 {offsets = [3, 0, 0], sizes = [1, 32, 64], strides = [1, 1, 1]} : vector<4x32x128xf32> to vector<1x32x64xf32>
    %431 = vector.shape_cast %430 : vector<1x32x64xf32> to vector<32x64xf32>
    %432 = vector.extract_strided_slice %423 {offsets = [0, 0], sizes = [1, 96], strides = [1, 1]} : vector<8x128xf32> to vector<1x96xf32>
    %433 = vector.extract_strided_slice %423 {offsets = [1, 0], sizes = [1, 32], strides = [1, 1]} : vector<8x128xf32> to vector<1x32xf32>
    %434 = vector.extract_strided_slice %423 {offsets = [2, 0], sizes = [1, 32], strides = [1, 1]} : vector<8x128xf32> to vector<1x32xf32>
    %435 = vector.extract_strided_slice %423 {offsets = [3, 0], sizes = [1, 32], strides = [1, 1]} : vector<8x128xf32> to vector<1x32xf32>
    %436 = vector.extract_strided_slice %423 {offsets = [4, 0], sizes = [1, 64], strides = [1, 1]} : vector<8x128xf32> to vector<1x64xf32>
    %437 = vector.extract_strided_slice %423 {offsets = [5, 0], sizes = [1, 32], strides = [1, 1]} : vector<8x128xf32> to vector<1x32xf32>
    %438 = vector.extract_strided_slice %423 {offsets = [6, 0], sizes = [1, 32], strides = [1, 1]} : vector<8x128xf32> to vector<1x32xf32>
    %439 = vector.extract_strided_slice %423 {offsets = [7, 0], sizes = [1, 32], strides = [1, 1]} : vector<8x128xf32> to vector<1x32xf32>
    %cst_239 = arith.constant dense<0.000000e+00> : vector<16x96xf32>
    %440 = tpu.matmul %419, %425, %cst_239 {dimension_numbers = #tpu.dot_dimension_numbers<[1], [0], [0], [1], [0, 0, 1, 1], [], []>} : vector<16x32xf32>, vector<32x96xf32>, vector<16x96xf32> -> vector<16x96xf32>
    %441 = vector.broadcast %432 : vector<1x96xf32> to vector<16x96xf32>
    %442 = arith.addf %440, %441 : vector<16x96xf32>
    %443 = vector.extract_strided_slice %442 {offsets = [0, 0], sizes = [16, 16], strides = [1, 1]} : vector<16x96xf32> to vector<16x16xf32>
    %444 = vector.extract_strided_slice %442 {offsets = [0, 16], sizes = [16, 16], strides = [1, 1]} : vector<16x96xf32> to vector<16x16xf32>
    %445 = vector.extract_strided_slice %442 {offsets = [0, 32], sizes = [16, 16], strides = [1, 1]} : vector<16x96xf32> to vector<16x16xf32>
    %cst_240 = arith.constant dense<0.000000e+00> : vector<16x16xf32>
    %446 = tpu.matmul %443, %444, %cst_240 {dimension_numbers = #tpu.dot_dimension_numbers<[1], [1], [0], [0], [0, 0, 1, 0], [], []>} : vector<16x16xf32>, vector<16x16xf32>, vector<16x16xf32> -> vector<16x16xf32>
    %cst_241 = arith.constant 2.500000e-01 : f32
    %447 = vector.broadcast %cst_241 : f32 to vector<16x16xf32>
    %448 = arith.mulf %446, %447 : vector<16x16xf32>
    %449 = arith.addf %448, %291 : vector<16x16xf32>
    %cst_242 = arith.constant dense<0xFF800000> : vector<16xf32>
    %450 = vector.multi_reduction <maximumf>, %449, %cst_242 [1] : vector<16x16xf32> to vector<16xf32>
    %451 = vector.shape_cast %450 : vector<16xf32> to vector<16x1xf32>
    %452 = vector.broadcast %451 : vector<16x1xf32> to vector<16x16xf32>
    %453 = arith.subf %449, %452 : vector<16x16xf32>
    %454 = math.exp %453 : vector<16x16xf32>
    %cst_243 = arith.constant dense<0.000000e+00> : vector<16xf32>
    %455 = vector.multi_reduction <add>, %454, %cst_243 [1] : vector<16x16xf32> to vector<16xf32>
    %456 = vector.shape_cast %455 : vector<16xf32> to vector<16x1xf32>
    %457 = tpu.reciprocal %456 {approx = true} : vector<16x1xf32> -> vector<16x1xf32>
    %458 = vector.broadcast %457 : vector<16x1xf32> to vector<16x16xf32>
    %459 = arith.mulf %454, %458 : vector<16x16xf32>
    %cst_244 = arith.constant dense<0.000000e+00> : vector<16x16xf32>
    %460 = tpu.matmul %459, %445, %cst_244 {dimension_numbers = #tpu.dot_dimension_numbers<[1], [0], [0], [1], [0, 0, 1, 1], [], []>} : vector<16x16xf32>, vector<16x16xf32>, vector<16x16xf32> -> vector<16x16xf32>
    %461 = vector.extract_strided_slice %442 {offsets = [0, 48], sizes = [16, 16], strides = [1, 1]} : vector<16x96xf32> to vector<16x16xf32>
    %462 = vector.extract_strided_slice %442 {offsets = [0, 64], sizes = [16, 16], strides = [1, 1]} : vector<16x96xf32> to vector<16x16xf32>
    %463 = vector.extract_strided_slice %442 {offsets = [0, 80], sizes = [16, 16], strides = [1, 1]} : vector<16x96xf32> to vector<16x16xf32>
    %cst_245 = arith.constant dense<0.000000e+00> : vector<16x16xf32>
    %464 = tpu.matmul %461, %462, %cst_245 {dimension_numbers = #tpu.dot_dimension_numbers<[1], [1], [0], [0], [0, 0, 1, 0], [], []>} : vector<16x16xf32>, vector<16x16xf32>, vector<16x16xf32> -> vector<16x16xf32>
    %cst_246 = arith.constant 2.500000e-01 : f32
    %465 = vector.broadcast %cst_246 : f32 to vector<16x16xf32>
    %466 = arith.mulf %464, %465 : vector<16x16xf32>
    %467 = arith.addf %466, %291 : vector<16x16xf32>
    %cst_247 = arith.constant dense<0xFF800000> : vector<16xf32>
    %468 = vector.multi_reduction <maximumf>, %467, %cst_247 [1] : vector<16x16xf32> to vector<16xf32>
    %469 = vector.shape_cast %468 : vector<16xf32> to vector<16x1xf32>
    %470 = vector.broadcast %469 : vector<16x1xf32> to vector<16x16xf32>
    %471 = arith.subf %467, %470 : vector<16x16xf32>
    %472 = math.exp %471 : vector<16x16xf32>
    %cst_248 = arith.constant dense<0.000000e+00> : vector<16xf32>
    %473 = vector.multi_reduction <add>, %472, %cst_248 [1] : vector<16x16xf32> to vector<16xf32>
    %474 = vector.shape_cast %473 : vector<16xf32> to vector<16x1xf32>
    %475 = tpu.reciprocal %474 {approx = true} : vector<16x1xf32> -> vector<16x1xf32>
    %476 = vector.broadcast %475 : vector<16x1xf32> to vector<16x16xf32>
    %477 = arith.mulf %472, %476 : vector<16x16xf32>
    %cst_249 = arith.constant dense<0.000000e+00> : vector<16x16xf32>
    %478 = tpu.matmul %477, %463, %cst_249 {dimension_numbers = #tpu.dot_dimension_numbers<[1], [0], [0], [1], [0, 0, 1, 1], [], []>} : vector<16x16xf32>, vector<16x16xf32>, vector<16x16xf32> -> vector<16x16xf32>
    %479 = tpu.concatenate %460, %478 in 1 : vector<16x16xf32>, vector<16x16xf32> -> vector<16x32xf32>
    %cst_250 = arith.constant dense<0.000000e+00> : vector<16x32xf32>
    %480 = tpu.matmul %479, %427, %cst_250 {dimension_numbers = #tpu.dot_dimension_numbers<[1], [0], [0], [1], [0, 0, 1, 1], [], []>} : vector<16x32xf32>, vector<32x32xf32>, vector<16x32xf32> -> vector<16x32xf32>
    %481 = vector.broadcast %433 : vector<1x32xf32> to vector<16x32xf32>
    %482 = arith.addf %480, %481 : vector<16x32xf32>
    %483 = arith.addf %482, %419 : vector<16x32xf32>
    %cst_251 = arith.constant dense<0.000000e+00> : vector<16xf32>
    %484 = vector.multi_reduction <add>, %483, %cst_251 [1] : vector<16x32xf32> to vector<16xf32>
    %485 = vector.shape_cast %484 : vector<16xf32> to vector<16x1xf32>
    %cst_252 = arith.constant 3.200000e+01 : f32
    %486 = vector.broadcast %cst_252 : f32 to vector<16x1xf32>
    %487 = arith.divf %485, %486 : vector<16x1xf32>
    %488 = vector.broadcast %487 : vector<16x1xf32> to vector<16x32xf32>
    %489 = arith.subf %483, %488 : vector<16x32xf32>
    %490 = arith.mulf %489, %489 : vector<16x32xf32>
    %cst_253 = arith.constant dense<0.000000e+00> : vector<16xf32>
    %491 = vector.multi_reduction <add>, %490, %cst_253 [1] : vector<16x32xf32> to vector<16xf32>
    %492 = vector.shape_cast %491 : vector<16xf32> to vector<16x1xf32>
    %cst_254 = arith.constant 3.200000e+01 : f32
    %493 = vector.broadcast %cst_254 : f32 to vector<16x1xf32>
    %494 = arith.divf %492, %493 : vector<16x1xf32>
    %495 = vector.broadcast %487 : vector<16x1xf32> to vector<16x32xf32>
    %496 = arith.subf %483, %495 : vector<16x32xf32>
    %cst_255 = arith.constant 9.99999996E-13 : f32
    %497 = vector.broadcast %cst_255 : f32 to vector<16x1xf32>
    %498 = arith.addf %494, %497 : vector<16x1xf32>
    %499 = math.rsqrt %498 : vector<16x1xf32>
    %500 = vector.broadcast %499 : vector<16x1xf32> to vector<16x32xf32>
    %501 = arith.mulf %496, %500 : vector<16x32xf32>
    %502 = vector.broadcast %434 : vector<1x32xf32> to vector<16x32xf32>
    %503 = arith.mulf %501, %502 : vector<16x32xf32>
    %504 = vector.broadcast %435 : vector<1x32xf32> to vector<16x32xf32>
    %505 = arith.addf %503, %504 : vector<16x32xf32>
    %cst_256 = arith.constant dense<0.000000e+00> : vector<16x64xf32>
    %506 = tpu.matmul %505, %429, %cst_256 {dimension_numbers = #tpu.dot_dimension_numbers<[1], [0], [0], [1], [0, 0, 1, 1], [], []>} : vector<16x32xf32>, vector<32x64xf32>, vector<16x64xf32> -> vector<16x64xf32>
    %507 = vector.broadcast %436 : vector<1x64xf32> to vector<16x64xf32>
    %508 = arith.addf %506, %507 : vector<16x64xf32>
    %cst_257 = arith.constant 5.000000e-01 : f32
    %509 = vector.broadcast %cst_257 : f32 to vector<16x64xf32>
    %510 = arith.mulf %509, %508 : vector<16x64xf32>
    %cst_258 = arith.constant 4.471500e-02 : f32
    %511 = vector.broadcast %cst_258 : f32 to vector<16x64xf32>
    %512 = arith.mulf %511, %508 : vector<16x64xf32>
    %513 = arith.mulf %512, %508 : vector<16x64xf32>
    %514 = arith.mulf %513, %508 : vector<16x64xf32>
    %515 = arith.addf %508, %514 : vector<16x64xf32>
    %cst_259 = arith.constant 0.797884583 : f32
    %516 = vector.broadcast %cst_259 : f32 to vector<16x64xf32>
    %517 = arith.mulf %516, %515 : vector<16x64xf32>
    %518 = math.tanh %517 : vector<16x64xf32>
    %cst_260 = arith.constant 1.000000e+00 : f32
    %519 = vector.broadcast %cst_260 : f32 to vector<16x64xf32>
    %520 = arith.addf %519, %518 : vector<16x64xf32>
    %521 = arith.mulf %510, %520 : vector<16x64xf32>
    %cst_261 = arith.constant dense<0.000000e+00> : vector<16x32xf32>
    %522 = tpu.matmul %521, %431, %cst_261 {dimension_numbers = #tpu.dot_dimension_numbers<[1], [1], [0], [0], [0, 0, 1, 0], [], []>} : vector<16x64xf32>, vector<32x64xf32>, vector<16x32xf32> -> vector<16x32xf32>
    %523 = vector.broadcast %437 : vector<1x32xf32> to vector<16x32xf32>
    %524 = arith.addf %522, %523 : vector<16x32xf32>
    %525 = arith.addf %524, %505 : vector<16x32xf32>
    %cst_262 = arith.constant dense<0.000000e+00> : vector<16xf32>
    %526 = vector.multi_reduction <add>, %525, %cst_262 [1] : vector<16x32xf32> to vector<16xf32>
    %527 = vector.shape_cast %526 : vector<16xf32> to vector<16x1xf32>
    %cst_263 = arith.constant 3.200000e+01 : f32
    %528 = vector.broadcast %cst_263 : f32 to vector<16x1xf32>
    %529 = arith.divf %527, %528 : vector<16x1xf32>
    %530 = vector.broadcast %529 : vector<16x1xf32> to vector<16x32xf32>
    %531 = arith.subf %525, %530 : vector<16x32xf32>
    %532 = arith.mulf %531, %531 : vector<16x32xf32>
    %cst_264 = arith.constant dense<0.000000e+00> : vector<16xf32>
    %533 = vector.multi_reduction <add>, %532, %cst_264 [1] : vector<16x32xf32> to vector<16xf32>
    %534 = vector.shape_cast %533 : vector<16xf32> to vector<16x1xf32>
    %cst_265 = arith.constant 3.200000e+01 : f32
    %535 = vector.broadcast %cst_265 : f32 to vector<16x1xf32>
    %536 = arith.divf %534, %535 : vector<16x1xf32>
    %537 = vector.broadcast %529 : vector<16x1xf32> to vector<16x32xf32>
    %538 = arith.subf %525, %537 : vector<16x32xf32>
    %cst_266 = arith.constant 9.99999996E-13 : f32
    %539 = vector.broadcast %cst_266 : f32 to vector<16x1xf32>
    %540 = arith.addf %536, %539 : vector<16x1xf32>
    %541 = math.rsqrt %540 : vector<16x1xf32>
    %542 = vector.broadcast %541 : vector<16x1xf32> to vector<16x32xf32>
    %543 = arith.mulf %538, %542 : vector<16x32xf32>
    %544 = vector.broadcast %438 : vector<1x32xf32> to vector<16x32xf32>
    %545 = arith.mulf %543, %544 : vector<16x32xf32>
    %546 = vector.broadcast %439 : vector<1x32xf32> to vector<16x32xf32>
    %547 = arith.addf %545, %546 : vector<16x32xf32>
    %548 = vector.extract_strided_slice %209 {offsets = [0, 0], sizes = [32, 128], strides = [1, 1]} : vector<35x128xf32> to vector<32x128xf32>
    %549 = vector.extract_strided_slice %209 {offsets = [34, 0], sizes = [1, 128], strides = [1, 1]} : vector<35x128xf32> to vector<1x128xf32>
    %cst_267 = arith.constant dense<0.000000e+00> : vector<16x128xf32>
    %550 = tpu.matmul %547, %548, %cst_267 {dimension_numbers = #tpu.dot_dimension_numbers<[1], [0], [0], [1], [0, 0, 1, 1], [], []>} : vector<16x32xf32>, vector<32x128xf32>, vector<16x128xf32> -> vector<16x128xf32>
    %551 = vector.broadcast %549 : vector<1x128xf32> to vector<16x128xf32>
    %552 = arith.addf %550, %551 : vector<16x128xf32>
    %cst_268 = arith.constant 5.000000e-01 : f32
    %553 = vector.broadcast %cst_268 : f32 to vector<16x128xf32>
    %554 = arith.mulf %553, %552 : vector<16x128xf32>
    %555 = math.tanh %554 : vector<16x128xf32>
    %cst_269 = arith.constant 1.000000e+00 : f32
    %556 = vector.broadcast %cst_269 : f32 to vector<16x128xf32>
    %557 = arith.addf %555, %556 : vector<16x128xf32>
    %cst_270 = arith.constant 5.000000e-01 : f32
    %558 = vector.broadcast %cst_270 : f32 to vector<16x128xf32>
    %559 = arith.mulf %558, %557 : vector<16x128xf32>
    %c0_271 = arith.constant 0 : index
    %c0_272 = arith.constant 0 : index
    %560 = vector.load %arg8[%c0_271, %c0_272] : memref<16x128xf32, #tpu.memory_space<vmem>>, vector<16x128xf32>
    tpu.vector_store %arg8[%c0_271, %c0_272], %559 {strides = array<i32>} : memref<16x128xf32, #tpu.memory_space<vmem>>, vector<16x128xf32>,
    return
  }
  func.func @transform_0(%arg0: i32, %arg1: memref<2x8xi32, #tpu.memory_space<smem>>, %arg2: memref<2x8xi32, #tpu.memory_space<smem>>, %arg3: memref<2xi32, #tpu.memory_space<smem>>) -> (i32, i32, i32) {
    %c0_i32 = arith.constant 0 : i32
    %c0_i32_0 = arith.constant 0 : i32
    %c0_i32_1 = arith.constant 0 : i32
    %c0_i32_2 = arith.constant 0 : i32
    return %c0_i32, %c0_i32_0, %c0_i32_1 : i32, i32, i32
  }
  func.func @transform_1(%arg0: i32, %arg1: memref<2x8xi32, #tpu.memory_space<smem>>, %arg2: memref<2x8xi32, #tpu.memory_space<smem>>, %arg3: memref<2xi32, #tpu.memory_space<smem>>) -> (i32, i32, i32, i32) {
    %c0_i32 = arith.constant 0 : i32
    %c0_i32_0 = arith.constant 0 : i32
    %c0_i32_1 = arith.constant 0 : i32
    %c0_i32_2 = arith.constant 0 : i32
    %c0_i32_3 = arith.constant 0 : i32
    return %c0_i32, %c0_i32_0, %c0_i32_1, %c0_i32_2 : i32, i32, i32, i32
  }
  func.func @transform_2(%arg0: i32, %arg1: memref<2x8xi32, #tpu.memory_space<smem>>, %arg2: memref<2x8xi32, #tpu.memory_space<smem>>, %arg3: memref<2xi32, #tpu.memory_space<smem>>) -> (i32, i32, i32) {
    %c0_i32 = arith.constant 0 : i32
    %c0_i32_0 = arith.constant 0 : i32
    %c0_i32_1 = arith.constant 0 : i32
    %c0_i32_2 = arith.constant 0 : i32
    return %c0_i32, %c0_i32_0, %c0_i32_1 : i32, i32, i32
  }
  func.func @transform_3(%arg0: i32, %arg1: memref<2x8xi32, #tpu.memory_space<smem>>, %arg2: memref<2x8xi32, #tpu.memory_space<smem>>, %arg3: memref<2xi32, #tpu.memory_space<smem>>) -> (i32, i32) {
    %c0_i32 = arith.constant 0 : i32
    %c0_i32_0 = arith.constant 0 : i32
    %c0_i32_1 = arith.constant 0 : i32
    return %c0_i32, %c0_i32_0 : i32, i32
  }
  func.func @transform_4(%arg0: i32, %arg1: memref<2x8xi32, #tpu.memory_space<smem>>, %arg2: memref<2x8xi32, #tpu.memory_space<smem>>, %arg3: memref<2xi32, #tpu.memory_space<smem>>) -> (i32, i32) {
    %c0_i32 = arith.constant 0 : i32
    %c0_i32_0 = arith.constant 0 : i32
    %c0_i32_1 = arith.constant 0 : i32
    return %c0_i32, %c0_i32_0 : i32, i32
  }
}

</mosaic_0001>

<llo_original>
// kernel: bert_detector_forward.1
$region0: #{bert_detector_forward.1}
  #allocation0 [shape = 'u32[]', space=smem, size = 0x4, offset = 0x4, fixed_abs, tag = 'smem constant byte address 0x4 - core index']
  #allocation1 [shape = 'u32[144,128]{1,0:T(1,128)}', space=vmem, size = 0x12000, scoped, tag = 'internal scratch']
  #allocation2 [shape = 's32[1]{0}', space=sflag, size = 0x4, scoped, tag = 'scoped memory for bert_detector_forward.1']
  #allocation3 [shape = 'u8[1024]{0}', space=smem, size = 0x400, scoped, tag = 'prefetched SMEM operand 0']
  #allocation4 [shape = 'u8[1024]{0}', space=smem, size = 0x400, scoped, tag = 'prefetched SMEM operand 1']
  #allocation5 [shape = 'u8[512]{0}', space=smem, size = 0x200, scoped, tag = 'prefetched SMEM operand 2']
  %s0 = inlined_call_operand.vmem [shape: s32[2,8], index: 0, kind: input, shape index: {}]
  %s1 = inlined_call_operand.vmem [shape: s32[2,8], index: 1, kind: input, shape index: {}]
  %s2 = inlined_call_operand.vmem [shape: s32[2], index: 2, kind: input, shape index: {}]
  %s3 = inlined_call_operand.vmem [shape: f32[60,1,32], index: 3, kind: input, shape index: {}]
  %s4 = inlined_call_operand.hbm [shape: f32[2,4,32,128], index: 4, kind: input, shape index: {}]
  %s5 = inlined_call_operand.vmem [shape: f32[2,8,128], index: 5, kind: input, shape index: {}]
  %s6 = inlined_call_operand.vmem [shape: f32[35,128], index: 6, kind: input, shape index: {}]
  %s7 = inlined_call_operand.vmem [shape: f32[16,128], index: 7, kind: output, shape index: {}]
  %s8 = sld [smem:[#allocation0]]
  $region30: #{bert_detector_forward.1} parent=0
    _
  %s10 = ssub.s32 1, %s8
  %s11 = scalar_select 0, %s10, %s8
  %s12 = sshll.u32 %s0, 4
  %s13 = int_to_ptr.vmem [resolvable:$true] %s12
  %15 = dma.vmem_to_smem %s13, 32, [#allocation3], [#allocation2]
  %s16 = sshll.u32 %s1, 4
  %s17 = int_to_ptr.vmem [resolvable:$true] %s16
  %19 = dma.vmem_to_smem %s17, 32, [#allocation4], [#allocation2]
  %s20 = sshll.u32 %s2, 4
  %s21 = int_to_ptr.vmem [resolvable:$true] %s20
  %23 = dma.vmem_to_smem %s21, 16, [#allocation5], [#allocation2]
  %24 = dma.done [#allocation2], 80
  %25 = sfence
  $region1: #{bert_detector_forward.1} parent=0
    #allocation6 [shape = 'u8[131072]{0}', space=vmem, size = 0x20000, scoped, tag = 'input window, operand 4, single buffered']
    #allocation7 [shape = 's32[1]{0}', space=sflag, size = 0x4, scoped, tag = 'scoped memory for bert_detector_forward.1']
    %26 = vsyncpa [#allocation7], 0
    // Predicated region
    $region2: #{bert_detector_forward.1} parent=1 // pred_check
      _
    $region3: #{bert_detector_forward.1} parent=1 // pred_check_branch
      %28 = sbr.rel (0) target = $region5
    $region4: #{bert_detector_forward.1} parent=1 // pred_region
      _
    $region5: #{bert_detector_forward.1} parent=1 // pred_fallthru
      _
    // Predicated region
    $region6: #{bert_detector_forward.1} parent=1 // pred_check
      _
    $region7: #{bert_detector_forward.1} parent=1 // pred_check_branch
      %30 = sbr.rel (0) target = $region9
    $region8: #{bert_detector_forward.1} parent=1 // pred_region
      %s32 = ssub.s32 4096, 4096
      %33 = vsyncadd [#allocation7], %s32
      %s34 = sshll.u32 [#allocation6], 4
      %s35 = int_to_ptr.vmem [resolvable:$true] %s34
      %40 = dma.hbm_to_vmem [thread:$0]  %s4, 4096, %s35, [#allocation7], 128, 128, 8
    $region9: #{bert_detector_forward.1} parent=1 // pred_fallthru
      _
    // Predicated region
    $region10: #{bert_detector_forward.1} parent=1 // pred_check
      _
    $region11: #{bert_detector_forward.1} parent=1 // pred_check_branch
      %42 = sbr.rel (0) target = $region13
    $region12: #{bert_detector_forward.1} parent=1 // pred_region
      _
    $region13: #{bert_detector_forward.1} parent=1 // pred_fallthru
      _
    // Predicated region
    $region14: #{bert_detector_forward.1} parent=1 // pred_check
      _
    $region15: #{bert_detector_forward.1} parent=1 // pred_check_branch
      %44 = sbr.rel (0) target = $region17
    $region16: #{bert_detector_forward.1} parent=1 // pred_region
      _
    $region17: #{bert_detector_forward.1} parent=1 // pred_fallthru
      _
    // Predicated region
    $region18: #{bert_detector_forward.1} parent=1 // pred_check
      _
    $region19: #{bert_detector_forward.1} parent=1 // pred_check_branch
      %46 = sbr.rel (0) target = $region21
    $region20: #{bert_detector_forward.1} parent=1 // pred_region
      %47 = dma.done [#allocation7], 4096
    $region21: #{bert_detector_forward.1} parent=1 // pred_fallthru
      _
    %s48 = sld [smem:[#allocation3]]
    %s49 = sld [smem:[#allocation4]]
    %s50 = scalar_lea.vmem %s3, %s48
    %v51 = vld [vmem:[%s50] sm:$0x1]
    %s52 = scalar_lea.vmem %s3, 50
    %v53 = vld [vmem:[%s52] sm:$0x1]
    %v54 = vadd.f32 %v51, %v53
    %s55 = sadd.s32 %s49, 58
    %s56 = scalar_lea.vmem %s3, %s55
    %v57 = vld [vmem:[%s56] sm:$0x1]
    %v58 = vadd.f32 %v54, %v57
    %s59 = sld [smem:[#allocation3 + $0x1]]
    %s60 = sld [smem:[#allocation4 + $0x1]]
    %s61 = scalar_lea.vmem %s3, %s59
    %v62 = vld [vmem:[%s61] sm:$0x1]
    %s63 = scalar_lea.vmem %s3, 51
    %v64 = vld [vmem:[%s63] sm:$0x1]
    %v65 = vadd.f32 %v62, %v64
    %s66 = sadd.s32 %s60, 58
    %s67 = scalar_lea.vmem %s3, %s66
    %v68 = vld [vmem:[%s67] sm:$0x1]
    %v69 = vadd.f32 %v65, %v68
    %s70 = sld [smem:[#allocation3 + $0x2]]
    %s71 = sld [smem:[#allocation4 + $0x2]]
    %s72 = scalar_lea.vmem %s3, %s70
    %v73 = vld [vmem:[%s72] sm:$0x1]
    %s74 = scalar_lea.vmem %s3, 52
    %v75 = vld [vmem:[%s74] sm:$0x1]
    %v76 = vadd.f32 %v73, %v75
    %s77 = sadd.s32 %s71, 58
    %s78 = scalar_lea.vmem %s3, %s77
    %v79 = vld [vmem:[%s78] sm:$0x1]
    %v80 = vadd.f32 %v76, %v79
    %s81 = sld [smem:[#allocation3 + $0x3]]
    %s82 = sld [smem:[#allocation4 + $0x3]]
    %s83 = scalar_lea.vmem %s3, %s81
    %v84 = vld [vmem:[%s83] sm:$0x1]
    %s85 = scalar_lea.vmem %s3, 53
    %v86 = vld [vmem:[%s85] sm:$0x1]
    %v87 = vadd.f32 %v84, %v86
    %s88 = sadd.s32 %s82, 58
    %s89 = scalar_lea.vmem %s3, %s88
    %v90 = vld [vmem:[%s89] sm:$0x1]
    %v91 = vadd.f32 %v87, %v90
    %s92 = sld [smem:[#allocation3 + $0x4]]
    %s93 = sld [smem:[#allocation4 + $0x4]]
    %s94 = scalar_lea.vmem %s3, %s92
    %v95 = vld [vmem:[%s94] sm:$0x1]
    %s96 = scalar_lea.vmem %s3, 54
    %v97 = vld [vmem:[%s96] sm:$0x1]
    %v98 = vadd.f32 %v95, %v97
    %s99 = sadd.s32 %s93, 58
    %s100 = scalar_lea.vmem %s3, %s99
    %v101 = vld [vmem:[%s100] sm:$0x1]
    %v102 = vadd.f32 %v98, %v101
    %s103 = sld [smem:[#allocation3 + $0x5]]
    %s104 = sld [smem:[#allocation4 + $0x5]]
    %s105 = scalar_lea.vmem %s3, %s103
    %v106 = vld [vmem:[%s105] sm:$0x1]
    %s107 = scalar_lea.vmem %s3, 55
    %v108 = vld [vmem:[%s107] sm:$0x1]
    %v109 = vadd.f32 %v106, %v108
    %s110 = sadd.s32 %s104, 58
    %s111 = scalar_lea.vmem %s3, %s110
    %v112 = vld [vmem:[%s111] sm:$0x1]
    %v113 = vadd.f32 %v109, %v112
    %s114 = sld [smem:[#allocation3 + $0x6]]
    %s115 = sld [smem:[#allocation4 + $0x6]]
    %s116 = scalar_lea.vmem %s3, %s114
    %v117 = vld [vmem:[%s116] sm:$0x1]
    %s118 = scalar_lea.vmem %s3, 56
    %v119 = vld [vmem:[%s118] sm:$0x1]
    %v120 = vadd.f32 %v117, %v119
    %s121 = sadd.s32 %s115, 58
    %s122 = scalar_lea.vmem %s3, %s121
    %v123 = vld [vmem:[%s122] sm:$0x1]
    %v124 = vadd.f32 %v120, %v123
    %s125 = sld [smem:[#allocation3 + $0x7]]
    %s126 = sld [smem:[#allocation4 + $0x7]]
    %s127 = scalar_lea.vmem %s3, %s125
    %v128 = vld [vmem:[%s127] sm:$0x1]
    %s129 = scalar_lea.vmem %s3, 57
    %v130 = vld [vmem:[%s129] sm:$0x1]
    %v131 = vadd.f32 %v128, %v130
    %s132 = sadd.s32 %s126, 58
    %s133 = scalar_lea.vmem %s3, %s132
    %v134 = vld [vmem:[%s133] sm:$0x1]
    %v135 = vadd.f32 %v131, %v134
    %s136 = sld [smem:[#allocation3 + $0x80]]
    %s137 = sld [smem:[#allocation4 + $0x80]]
    %s138 = scalar_lea.vmem %s3, %s136
    %v139 = vld [vmem:[%s138] sm:$0x1]
    %v140 = vadd.f32 %v139, %v53
    %s141 = sadd.s32 %s137, 58
    %s142 = scalar_lea.vmem %s3, %s141
    %v143 = vld [vmem:[%s142] sm:$0x1]
    %v144 = vadd.f32 %v140, %v143
    %s145 = sld [smem:[#allocation3 + $0x81]]
    %s146 = sld [smem:[#allocation4 + $0x81]]
    %s147 = scalar_lea.vmem %s3, %s145
    %v148 = vld [vmem:[%s147] sm:$0x1]
    %v149 = vadd.f32 %v148, %v64
    %s150 = sadd.s32 %s146, 58
    %s151 = scalar_lea.vmem %s3, %s150
    %v152 = vld [vmem:[%s151] sm:$0x1]
    %v153 = vadd.f32 %v149, %v152
    %s154 = sld [smem:[#allocation3 + $0x82]]
    %s155 = sld [smem:[#allocation4 + $0x82]]
    %s156 = scalar_lea.vmem %s3, %s154
    %v157 = vld [vmem:[%s156] sm:$0x1]
    %v158 = vadd.f32 %v157, %v75
    %s159 = sadd.s32 %s155, 58
    %s160 = scalar_lea.vmem %s3, %s159
    %v161 = vld [vmem:[%s160] sm:$0x1]
    %v162 = vadd.f32 %v158, %v161
    %s163 = sld [smem:[#allocation3 + $0x83]]
    %s164 = sld [smem:[#allocation4 + $0x83]]
    %s165 = scalar_lea.vmem %s3, %s163
    %v166 = vld [vmem:[%s165] sm:$0x1]
    %v167 = vadd.f32 %v166, %v86
    %s168 = sadd.s32 %s164, 58
    %s169 = scalar_lea.vmem %s3, %s168
    %v170 = vld [vmem:[%s169] sm:$0x1]
    %v171 = vadd.f32 %v167, %v170
    %s172 = sld [smem:[#allocation3 + $0x84]]
    %s173 = sld [smem:[#allocation4 + $0x84]]
    %s174 = scalar_lea.vmem %s3, %s172
    %v175 = vld [vmem:[%s174] sm:$0x1]
    %v176 = vadd.f32 %v175, %v97
    %s177 = sadd.s32 %s173, 58
    %s178 = scalar_lea.vmem %s3, %s177
    %v179 = vld [vmem:[%s178] sm:$0x1]
    %v180 = vadd.f32 %v176, %v179
    %s181 = sld [smem:[#allocation3 + $0x85]]
    %s182 = sld [smem:[#allocation4 + $0x85]]
    %s183 = scalar_lea.vmem %s3, %s181
    %v184 = vld [vmem:[%s183] sm:$0x1]
    %v185 = vadd.f32 %v184, %v108
    %s186 = sadd.s32 %s182, 58
    %s187 = scalar_lea.vmem %s3, %s186
    %v188 = vld [vmem:[%s187] sm:$0x1]
    %v189 = vadd.f32 %v185, %v188
    %s190 = sld [smem:[#allocation3 + $0x86]]
    %s191 = sld [smem:[#allocation4 + $0x86]]
    %s192 = scalar_lea.vmem %s3, %s190
    %v193 = vld [vmem:[%s192] sm:$0x1]
    %v194 = vadd.f32 %v193, %v119
    %s195 = sadd.s32 %s191, 58
    %s196 = scalar_lea.vmem %s3, %s195
    %v197 = vld [vmem:[%s196] sm:$0x1]
    %v198 = vadd.f32 %v194, %v197
    %s199 = sld [smem:[#allocation3 + $0x87]]
    %s200 = sld [smem:[#allocation4 + $0x87]]
    %s201 = scalar_lea.vmem %s3, %s199
    %v202 = vld [vmem:[%s201] sm:$0x1]
    %v203 = vadd.f32 %v202, %v130
    %s204 = sadd.s32 %s200, 58
    %s205 = scalar_lea.vmem %s3, %s204
    %v206 = vld [vmem:[%s205] sm:$0x1]
    %v207 = vadd.f32 %v203, %v206
    %v209 = vlaneseq
    %v210 = vshrl.u32 %v209, 7
    %v211 = vsub.s32 0, %v210
    %v212 = vrot.slane %v69, %v211
    %v215 = vlaneseq
    %v216 = vshrl.u32 %v215, 7
    %v217 = vsub.s32 0, %v216
    %v218 = vrot.slane %v80, %v217
    %v221 = vlaneseq
    %v222 = vshrl.u32 %v221, 7
    %v223 = vsub.s32 0, %v222
    %v224 = vrot.slane %v91, %v223
    %v227 = vlaneseq
    %v228 = vshrl.u32 %v227, 7
    %v229 = vsub.s32 0, %v228
    %v230 = vrot.slane %v102, %v229
    %v233 = vlaneseq
    %v234 = vshrl.u32 %v233, 7
    %v235 = vsub.s32 0, %v234
    %v236 = vrot.slane %v113, %v235
    %v239 = vlaneseq
    %v240 = vshrl.u32 %v239, 7
    %v241 = vsub.s32 0, %v240
    %v242 = vrot.slane %v124, %v241
    %v245 = vlaneseq
    %v246 = vshrl.u32 %v245, 7
    %v247 = vsub.s32 0, %v246
    %v248 = vrot.slane %v135, %v247
    %v251 = vlaneseq
    %v252 = vshrl.u32 %v251, 7
    %v253 = vsub.s32 0, %v252
    %v254 = vrot.slane %v153, %v253
    %v257 = vlaneseq
    %v258 = vshrl.u32 %v257, 7
    %v259 = vsub.s32 0, %v258
    %v260 = vrot.slane %v162, %v259
    %v263 = vlaneseq
    %v264 = vshrl.u32 %v263, 7
    %v265 = vsub.s32 0, %v264
    %v266 = vrot.slane %v171, %v265
    %v269 = vlaneseq
    %v270 = vshrl.u32 %v269, 7
    %v271 = vsub.s32 0, %v270
    %v272 = vrot.slane %v180, %v271
    %v275 = vlaneseq
    %v276 = vshrl.u32 %v275, 7
    %v277 = vsub.s32 0, %v276
    %v278 = vrot.slane %v189, %v277
    %v281 = vlaneseq
    %v282 = vshrl.u32 %v281, 7
    %v283 = vsub.s32 0, %v282
    %v284 = vrot.slane %v198, %v283
    %v287 = vlaneseq
    %v288 = vshrl.u32 %v287, 7
    %v289 = vsub.s32 0, %v288
    %v290 = vrot.slane %v207, %v289
    %vm292 = vcmask 1040384
    %v293 = vsel %vm292, %v58, %v212
    %vm294 = vcmask 1041408
    %v295 = vsel %vm294, %v293, %v218
    %vm296 = vcmask 1042432
    %v297 = vsel %vm296, %v295, %v224
    %vm298 = vcmask 1043456
    %v299 = vsel %vm298, %v297, %v230
    %vm300 = vcmask 1044480
    %v301 = vsel %vm300, %v299, %v236
    %vm302 = vcmask 1045504
    %v303 = vsel %vm302, %v301, %v242
    %vm304 = vcmask 1046528
    %v305 = vsel %vm304, %v303, %v248
    %v306 = vsel %vm292, %v144, %v254
    %v307 = vsel %vm294, %v306, %v260
    %v308 = vsel %vm296, %v307, %v266
    %v309 = vsel %vm298, %v308, %v272
    %v310 = vsel %vm300, %v309, %v278
    %v311 = vsel %vm302, %v310, %v284
    %v312 = vsel %vm304, %v311, %v290
    %v313 = vld [vmem:[%s6] sm:$0xff]
    %v314 = vld [vmem:[%s6 + $0x8] sm:$0xff]
    %v315 = vld [vmem:[%s6 + $0x10] sm:$0xff]
    %v316 = vld [vmem:[%s6 + $0x18] sm:$0xff]
    %v317 = vld [vmem:[%s6 + $0x20] sm:$0x7]
    %vm318 = vcmask 261120
    %v319 = vsel %vm318, %v305, 0.0
    %320 = vadd.xlane.f32.xlu0 %v319
    %v321 = vpop.xlane.xlu0 %320
    %v322 = vsel %vm318, %v312, 0.0
    %323 = vadd.xlane.f32.xlu0 %v322
    %v324 = vpop.xlane.xlu0 %323
    %v325 = vrcp.pop 32.0
    %v326 = vmul.f32 %v321, %v325
    %v327 = vmul.f32 %v324, %v325
    %v328 = vsub.f32 %v305, %v326
    %v329 = vsub.f32 %v312, %v327
    %v330 = vmul.f32 %v328, %v328
    %v331 = vmul.f32 %v329, %v329
    %v332 = vsel %vm318, %v330, 0.0
    %333 = vadd.xlane.f32.xlu0 %v332
    %v334 = vpop.xlane.xlu0 %333
    %v335 = vsel %vm318, %v331, 0.0
    %336 = vadd.xlane.f32.xlu0 %v335
    %v337 = vpop.xlane.xlu0 %336
    %v338 = vmul.f32 %v334, %v325
    %v339 = vmul.f32 %v337, %v325
    %v340 = vadd.f32 %v338, 1e-12
    %v341 = vadd.f32 %v339, 1e-12
    %v342 = vrsqrt.pop %v340
    %v343 = vrsqrt.pop %v341
    %v344 = vmul.f32 %v328, %v342
    %v345 = vmul.f32 %v329, %v343
    %v346 = vlaneseq
    %v347 = vshrl.u32 %v346, 7
    %v348 = vsub.s32 0, %v347
    %v349 = vrot.slane %v317, %v348
    %v350 = vmul.f32 %v344, %v349
    %v351 = vmul.f32 %v345, %v349
    %v352 = vlaneseq
    %v353 = vshrl.u32 %v352, 7
    %v354 = vsub.s32 1, %v353
    %v355 = vrot.slane %v317, %v354
    %v356 = vadd.f32 %v350, %v355
    %v357 = vadd.f32 %v351, %v355
    %v358 = vlaneseq
    %v359 = vshrl.u32 %v358, 7
    %v360 = vadd.s32 %v359, 8
    %v361 = vlaneseq
    %v362 = vand.u32 %v361, 127
    %vm363 = vcmp.ge.s32.totalorder %v359, 0
    %vm364 = vcmp.ge.s32.totalorder %v360, 0
    %vm365 = vcmp.lt.s32.totalorder %v359, 8
    %vm366 = vcmp.lt.s32.totalorder %v360, 8
    %vm367 = vmand %vm363, %vm365
    %vm368 = vmand %vm364, %vm366
    %vm369 = vcmp.ge.s32.totalorder %v362, 0
    %vm370 = vcmp.lt.s32.totalorder %v362, 8
    %vm371 = vmand %vm369, %vm370
    %vm372 = vmand %vm367, %vm371
    %vm373 = vmand %vm368, %vm371
    %s374 = sld [smem:[#allocation5]]
    %v375 = vstv %s374
    %vm376 = vcmp.lt.s32.totalorder %v362, %v375
    %vm377 = vmand %vm371, %vm376
    %vm378 = vcmp.ge.s32.totalorder %v359, 8
    %vm379 = vcmp.ge.s32.totalorder %v360, 8
    %vm380 = vcmp.lt.s32.totalorder %v359, 16
    %vm381 = vcmp.lt.s32.totalorder %v360, 16
    %vm382 = vmand %vm378, %vm380
    %vm383 = vmand %vm379, %vm381
    %vm384 = vcmp.ge.s32.totalorder %v362, 8
    %vm385 = vcmp.lt.s32.totalorder %v362, 16
    %vm386 = vmand %vm384, %vm385
    %vm387 = vmand %vm382, %vm386
    %vm388 = vmand %vm383, %vm386
    %vm389 = vmor %vm372, %vm387
    %vm390 = vmor %vm373, %vm388
    %v391 = vsub.s32 %v362, 8
    %s392 = sld [smem:[#allocation5 + $0x1]]
    %v393 = vstv %s392
    %vm394 = vcmp.lt.s32.totalorder %v391, %v393
    %vm395 = vmand %vm386, %vm394
    %vm396 = vmor %vm377, %vm395
    %v397 = vsel %vm396, 1, 0
    %vm398 = vcmp.eq.s32.totalorder %v397, 1
    %vm399 = vmand %vm389, %vm398
    %vm400 = vmand %vm390, %vm398
    %v401 = vsel %vm399, 0.0, -1e+09
    %v402 = vsel %vm400, 0.0, -1e+09
    %v403 = vld [vmem:[#allocation6] sm:$0xff]
    %v404 = vld [vmem:[#allocation6 + $0x8] sm:$0xff]
    %v405 = vld [vmem:[#allocation6 + $0x10] sm:$0xff]
    %v406 = vld [vmem:[#allocation6 + $0x18] sm:$0xff]
    %v407 = vld [vmem:[#allocation6 + $0x20] sm:$0xff]
    %v408 = vld [vmem:[#allocation6 + $0x28] sm:$0xff]
    %v409 = vld [vmem:[#allocation6 + $0x30] sm:$0xff]
    %v410 = vld [vmem:[#allocation6 + $0x38] sm:$0xff]
    %v411 = vld [vmem:[#allocation6 + $0x40] sm:$0xff]
    %v412 = vld [vmem:[#allocation6 + $0x48] sm:$0xff]
    %v413 = vld [vmem:[#allocation6 + $0x50] sm:$0xff]
    %v414 = vld [vmem:[#allocation6 + $0x58] sm:$0xff]
    %v415 = vld [vmem:[#allocation6 + $0x60] sm:$0xff]
    %v416 = vld [vmem:[#allocation6 + $0x68] sm:$0xff]
    %v417 = vld [vmem:[#allocation6 + $0x70] sm:$0xff]
    %v418 = vld [vmem:[#allocation6 + $0x78] sm:$0xff]
    %v419 = vld [vmem:[%s5] sm:$0xff]
    %v420 = vlaneseq
    %v421 = vshrl.u32 %v420, 7
    %v422 = vsub.s32 0, %v421
    %v423 = vrot.slane %v419, %v422
    %v425 = vsel %vm318, %v356, 0
    %v428 = vsel %vm318, %v357, 0
    %430 = vmatprep.subr.mxu0 0.0
    %431 = vmatpush1.msra.mxu0 0.0
    %432 = vmatprep.subr.mxu0 0.0
    %433 = vmatpush1.msra.mxu0 0.0
    %434 = vmatprep.subr.mxu0 0.0
    %435 = vmatpush1.msra.mxu0 0.0
    %436 = vmatprep.subr.mxu0 0.0
    %437 = vmatpush1.msra.mxu0 0.0
    %438 = vmatprep.subr.mxu0 0.0
    %439 = vmatpush1.msra.mxu0 0.0
    %440 = vmatprep.subr.mxu0 0.0
    %441 = vmatpush1.msra.mxu0 0.0
    %442 = vmatprep.subr.mxu0 0.0
    %443 = vmatpush1.msra.mxu0 0.0
    %444 = vmatprep.subr.mxu0 0.0
    %445 = vmatpush1.msra.mxu0 0.0
    %446 = vmatprep.subr.mxu0 0.0
    %447 = vmatpush1.msra.mxu0 0.0
    %448 = vmatprep.subr.mxu0 0.0
    %449 = vmatpush1.msra.mxu0 0.0
    %450 = vmatprep.subr.mxu0 0.0
    %451 = vmatpush1.msra.mxu0 0.0
    %452 = vmatprep.subr.mxu0 0.0
    %453 = vmatpush1.msra.mxu0 0.0
    %454 = vmatprep.subr.mxu0 0.0
    %455 = vmatpush1.msra.mxu0 %v406
    %456 = vmatprep.subr.mxu0 0.0
    %457 = vmatpush1.msra.mxu0 %v405
    %458 = vmatprep.subr.mxu0 0.0
    %459 = vmatpush1.msra.mxu0 %v404
    %460 = vmatprep.subr.mxu0 0.0
    %461 = vmatpush1.msra.mxu0 %v403
    %462 = vmatprep.subr.mxu0 0.0
    %463 = vmatpush2.msra.mxu0 0.0
    %464 = vmatprep.subr.mxu0 0.0
    %465 = vmatpush2.msra.mxu0 0.0
    %466 = vmatprep.subr.mxu0 0.0
    %467 = vmatpush2.msra.mxu0 0.0
    %468 = vmatprep.subr.mxu0 0.0
    %469 = vmatpush2.msra.mxu0 0.0
    %470 = vmatprep.subr.mxu0 0.0
    %471 = vmatpush2.msra.mxu0 0.0
    %472 = vmatprep.subr.mxu0 0.0
    %473 = vmatpush2.msra.mxu0 0.0
    %474 = vmatprep.subr.mxu0 0.0
    %475 = vmatpush2.msra.mxu0 0.0
    %476 = vmatprep.subr.mxu0 0.0
    %477 = vmatpush2.msra.mxu0 0.0
    %478 = vmatprep.subr.mxu0 0.0
    %479 = vmatpush2.msra.mxu0 0.0
    %480 = vmatprep.subr.mxu0 0.0
    %481 = vmatpush2.msra.mxu0 0.0
    %482 = vmatprep.subr.mxu0 0.0
    %483 = vmatpush2.msra.mxu0 0.0
    %484 = vmatprep.subr.mxu0 0.0
    %485 = vmatpush2.msra.mxu0 0.0
    %486 = vmatprep.subr.mxu0 0.0
    %487 = vmatpush2.msra.mxu0 0.0
    %488 = vmatprep.subr.mxu0 0.0
    %489 = vmatpush2.msra.mxu0 0.0
    %490 = vmatprep.subr.mxu0 0.0
    %491 = vmatpush2.msra.mxu0 0.0
    %492 = vmatprep.subr.mxu0 0.0
    %493 = vmatpush2.msra.mxu0 0.0
    %494 = vmatprep.mubr.f32.mxu0 0.0
    %495 = vmatmul.mubr.f32.gmra.mxu0 %v425
    %v496 = vpop.f32.mrf.mxu0
    %v497 = vadd.f32 %v423, %v496
    %v498 = vpop.f32.mrf.mxu0
    %499 = vmatprep.mubr.f32.mxu0 0.0
    %500 = vmatmul.mubr.f32.gmra.mxu0 %v428
    %v501 = vpop.f32.mrf.mxu0
    %v502 = vadd.f32 %v423, %v501
    %v503 = vpop.f32.mrf.mxu0
    %504 = vdwg.mxu0
    %507 = vrot.lane.b32.xlu0 %v497, 112
    %v508 = vpop.permute.xlu0 %507
    %509 = vrot.lane.b32.xlu0 %v502, 112
    %v510 = vpop.permute.xlu0 %509
    %vm511 = vcmask 130048
    %v512 = vsel %vm511, %v497, 0
    %v514 = vsel %vm511, %v502, 0
    %v516 = vsel %vm511, %v508, 0
    %v518 = vsel %vm511, %v510, 0
    %520 = vmatprep.subr.mxu0 0.0
    %521 = vmatpush1.xpose.msra.mxu0 0.0
    %522 = vmatprep.subr.mxu0 0.0
    %523 = vmatpush1.xpose.msra.mxu0 0.0
    %524 = vmatprep.subr.mxu0 0.0
    %525 = vmatpush1.xpose.msra.mxu0 0.0
    %526 = vmatprep.subr.mxu0 0.0
    %527 = vmatpush1.xpose.msra.mxu0 0.0
    %528 = vmatprep.subr.mxu0 0.0
    %529 = vmatpush1.xpose.msra.mxu0 0.0
    %530 = vmatprep.subr.mxu0 0.0
    %531 = vmatpush1.xpose.msra.mxu0 0.0
    %532 = vmatprep.subr.mxu0 0.0
    %533 = vmatpush1.xpose.msra.mxu0 0.0
    %534 = vmatprep.subr.mxu0 0.0
    %535 = vmatpush1.xpose.msra.mxu0 0.0
    %536 = vmatprep.subr.mxu0 0.0
    %537 = vmatpush1.xpose.msra.mxu0 0.0
    %538 = vmatprep.subr.mxu0 0.0
    %539 = vmatpush1.xpose.msra.mxu0 0.0
    %540 = vmatprep.subr.mxu0 0.0
    %541 = vmatpush1.xpose.msra.mxu0 0.0
    %542 = vmatprep.subr.mxu0 0.0
    %543 = vmatpush1.xpose.msra.mxu0 0.0
    %544 = vmatprep.subr.mxu0 0.0
    %545 = vmatpush1.xpose.msra.mxu0 0.0
    %546 = vmatprep.subr.mxu0 0.0
    %547 = vmatpush1.xpose.msra.mxu0 0.0
    %548 = vmatprep.subr.mxu0 0.0
    %549 = vmatpush1.xpose.msra.mxu0 %v518
    %550 = vmatprep.subr.mxu0 0.0
    %551 = vmatpush1.xpose.msra.mxu0 %v516
    %552 = vmatprep.subr.mxu0 0.0
    %553 = vmatpush2.xpose.msra.mxu0 0.0
    %554 = vmatprep.subr.mxu0 0.0
    %555 = vmatpush2.xpose.msra.mxu0 0.0
    %556 = vmatprep.subr.mxu0 0.0
    %557 = vmatpush2.xpose.msra.mxu0 0.0
    %558 = vmatprep.subr.mxu0 0.0
    %559 = vmatpush2.xpose.msra.mxu0 0.0
    %560 = vmatprep.subr.mxu0 0.0
    %561 = vmatpush2.xpose.msra.mxu0 0.0
    %562 = vmatprep.subr.mxu0 0.0
    %563 = vmatpush2.xpose.msra.mxu0 0.0
    %564 = vmatprep.subr.mxu0 0.0
    %565 = vmatpush2.xpose.msra.mxu0 0.0
    %566 = vmatprep.subr.mxu0 0.0
    %567 = vmatpush2.xpose.msra.mxu0 0.0
    %568 = vmatprep.subr.mxu0 0.0
    %569 = vmatpush2.xpose.msra.mxu0 0.0
    %570 = vmatprep.subr.mxu0 0.0
    %571 = vmatpush2.xpose.msra.mxu0 0.0
    %572 = vmatprep.subr.mxu0 0.0
    %573 = vmatpush2.xpose.msra.mxu0 0.0
    %574 = vmatprep.subr.mxu0 0.0
    %575 = vmatpush2.xpose.msra.mxu0 0.0
    %576 = vmatprep.subr.mxu0 0.0
    %577 = vmatpush2.xpose.msra.mxu0 0.0
    %578 = vmatprep.subr.mxu0 0.0
    %579 = vmatpush2.xpose.msra.mxu0 0.0
    %580 = vmatprep.subr.mxu0 0.0
    %581 = vmatpush2.xpose.msra.mxu0 0.0
    %582 = vmatprep.subr.mxu0 0.0
    %583 = vmatpush2.xpose.msra.mxu0 0.0
    %584 = vmatprep.mubr.f32.mxu0 0.0
    %585 = vmatmul.mubr.f32.gmra.mxu0 %v512
    %v586 = vpop.f32.mrf.mxu0
    %v587 = vadd.f32 0.0, %v586
    %v588 = vpop.f32.mrf.mxu0
    %589 = vmatprep.mubr.f32.mxu0 0.0
    %590 = vmatmul.mubr.f32.gmra.mxu0 %v514
    %v591 = vpop.f32.mrf.mxu0
    %v592 = vadd.f32 0.0, %v591
    %v593 = vpop.f32.mrf.mxu0
    %594 = vdwg.mxu0
    %v595 = vmul.f32 %v587, 0.25
    %v596 = vmul.f32 %v592, 0.25
    %v597 = vadd.f32 %v595, %v401
    %v598 = vadd.f32 %v596, %v402
    %v599 = vsel %vm511, %v597, -inf
    %600 = vmax.xlane.f32.xlu0 %v599
    %v601 = vpop.xlane.xlu0 %600
    %v602 = vsel %vm511, %v598, -inf
    %603 = vmax.xlane.f32.xlu0 %v602
    %v604 = vpop.xlane.xlu0 %603
    %v605 = vsub.f32 %v597, %v601
    %v606 = vsub.f32 %v598, %v604
    %v607 = vmul.f32 %v605, 1.442695
    %v608 = vpow.pop %v607
    %v609 = vmul.f32 %v606, 1.442695
    %v610 = vpow.pop %v609
    %v611 = vsel %vm511, %v608, 0.0
    %612 = vadd.xlane.f32.xlu0 %v611
    %v613 = vpop.xlane.xlu0 %612
    %v614 = vsel %vm511, %v610, 0.0
    %615 = vadd.xlane.f32.xlu0 %v614
    %v616 = vpop.xlane.xlu0 %615
    %v617 = vrcp.pop %v613
    %v618 = vrcp.pop %v616
    %v619 = vmul.f32 %v608, %v617
    %v620 = vmul.f32 %v610, %v618
    %621 = vrot.lane.b32.xlu0 %v497, 96
    %v622 = vpop.permute.xlu0 %621
    %623 = vrot.lane.b32.xlu0 %v502, 96
    %v624 = vpop.permute.xlu0 %623
    %v628 = vsel %vm511, %v619, 0
    %v631 = vsel %vm511, %v620, 0
    %633 = vmatprep.subr.mxu0 0.0
    %634 = vmatpush1.msra.mxu0 0.0
    %635 = vmatprep.subr.mxu0 0.0
    %636 = vmatpush1.msra.mxu0 0.0
    %637 = vmatprep.subr.mxu0 0.0
    %638 = vmatpush1.msra.mxu0 0.0
    %639 = vmatprep.subr.mxu0 0.0
    %640 = vmatpush1.msra.mxu0 0.0
    %641 = vmatprep.subr.mxu0 0.0
    %642 = vmatpush1.msra.mxu0 0.0
    %643 = vmatprep.subr.mxu0 0.0
    %644 = vmatpush1.msra.mxu0 0.0
    %645 = vmatprep.subr.mxu0 0.0
    %646 = vmatpush1.msra.mxu0 0.0
    %647 = vmatprep.subr.mxu0 0.0
    %648 = vmatpush1.msra.mxu0 0.0
    %649 = vmatprep.subr.mxu0 0.0
    %650 = vmatpush1.msra.mxu0 0.0
    %651 = vmatprep.subr.mxu0 0.0
    %652 = vmatpush1.msra.mxu0 0.0
    %653 = vmatprep.subr.mxu0 0.0
    %654 = vmatpush1.msra.mxu0 0.0
    %655 = vmatprep.subr.mxu0 0.0
    %656 = vmatpush1.msra.mxu0 0.0
    %657 = vmatprep.subr.mxu0 0.0
    %658 = vmatpush1.msra.mxu0 0.0
    %659 = vmatprep.subr.mxu0 0.0
    %660 = vmatpush1.msra.mxu0 0.0
    %661 = vmatprep.subr.mxu0 0.0
    %662 = vmatpush1.msra.mxu0 %v624
    %663 = vmatprep.subr.mxu0 0.0
    %664 = vmatpush1.msra.mxu0 %v622
    %665 = vmatprep.subr.mxu0 0.0
    %666 = vmatpush2.msra.mxu0 0.0
    %667 = vmatprep.subr.mxu0 0.0
    %668 = vmatpush2.msra.mxu0 0.0
    %669 = vmatprep.subr.mxu0 0.0
    %670 = vmatpush2.msra.mxu0 0.0
    %671 = vmatprep.subr.mxu0 0.0
    %672 = vmatpush2.msra.mxu0 0.0
    %673 = vmatprep.subr.mxu0 0.0
    %674 = vmatpush2.msra.mxu0 0.0
    %675 = vmatprep.subr.mxu0 0.0
    %676 = vmatpush2.msra.mxu0 0.0
    %677 = vmatprep.subr.mxu0 0.0
    %678 = vmatpush2.msra.mxu0 0.0
    %679 = vmatprep.subr.mxu0 0.0
    %680 = vmatpush2.msra.mxu0 0.0
    %681 = vmatprep.subr.mxu0 0.0
    %682 = vmatpush2.msra.mxu0 0.0
    %683 = vmatprep.subr.mxu0 0.0
    %684 = vmatpush2.msra.mxu0 0.0
    %685 = vmatprep.subr.mxu0 0.0
    %686 = vmatpush2.msra.mxu0 0.0
    %687 = vmatprep.subr.mxu0 0.0
    %688 = vmatpush2.msra.mxu0 0.0
    %689 = vmatprep.subr.mxu0 0.0
    %690 = vmatpush2.msra.mxu0 0.0
    %691 = vmatprep.subr.mxu0 0.0
    %692 = vmatpush2.msra.mxu0 0.0
    %693 = vmatprep.subr.mxu0 0.0
    %694 = vmatpush2.msra.mxu0 0.0
    %695 = vmatprep.subr.mxu0 0.0
    %696 = vmatpush2.msra.mxu0 0.0
    %697 = vmatprep.mubr.f32.mxu0 0.0
    %698 = vmatmul.mubr.f32.gmra.mxu0 %v628
    %v699 = vpop.f32.mrf.mxu0
    %v700 = vadd.f32 0.0, %v699
    %v701 = vpop.f32.mrf.mxu0
    %702 = vmatprep.mubr.f32.mxu0 0.0
    %703 = vmatmul.mubr.f32.gmra.mxu0 %v631
    %v704 = vpop.f32.mrf.mxu0
    %v705 = vadd.f32 0.0, %v704
    %v706 = vpop.f32.mrf.mxu0
    %707 = vdwg.mxu0
    %708 = vrot.lane.b32.xlu0 %v497, 80
    %v709 = vpop.permute.xlu0 %708
    %710 = vrot.lane.b32.xlu0 %v502, 80
    %v711 = vpop.permute.xlu0 %710
    %712 = vrot.lane.b32.xlu0 %v497, 64
    %v713 = vpop.permute.xlu0 %712
    %714 = vrot.lane.b32.xlu0 %v502, 64
    %v715 = vpop.permute.xlu0 %714
    %v716 = vsel %vm511, %v709, 0
    %v718 = vsel %vm511, %v711, 0
    %v720 = vsel %vm511, %v713, 0
    %v722 = vsel %vm511, %v715, 0
    %724 = vmatprep.subr.mxu0 0.0
    %725 = vmatpush1.xpose.msra.mxu0 0.0
    %726 = vmatprep.subr.mxu0 0.0
    %727 = vmatpush1.xpose.msra.mxu0 0.0
    %728 = vmatprep.subr.mxu0 0.0
    %729 = vmatpush1.xpose.msra.mxu0 0.0
    %730 = vmatprep.subr.mxu0 0.0
    %731 = vmatpush1.xpose.msra.mxu0 0.0
    %732 = vmatprep.subr.mxu0 0.0
    %733 = vmatpush1.xpose.msra.mxu0 0.0
    %734 = vmatprep.subr.mxu0 0.0
    %735 = vmatpush1.xpose.msra.mxu0 0.0
    %736 = vmatprep.subr.mxu0 0.0
    %737 = vmatpush1.xpose.msra.mxu0 0.0
    %738 = vmatprep.subr.mxu0 0.0
    %739 = vmatpush1.xpose.msra.mxu0 0.0
    %740 = vmatprep.subr.mxu0 0.0
    %741 = vmatpush1.xpose.msra.mxu0 0.0
    %742 = vmatprep.subr.mxu0 0.0
    %743 = vmatpush1.xpose.msra.mxu0 0.0
    %744 = vmatprep.subr.mxu0 0.0
    %745 = vmatpush1.xpose.msra.mxu0 0.0
    %746 = vmatprep.subr.mxu0 0.0
    %747 = vmatpush1.xpose.msra.mxu0 0.0
    %748 = vmatprep.subr.mxu0 0.0
    %749 = vmatpush1.xpose.msra.mxu0 0.0
    %750 = vmatprep.subr.mxu0 0.0
    %751 = vmatpush1.xpose.msra.mxu0 0.0
    %752 = vmatprep.subr.mxu0 0.0
    %753 = vmatpush1.xpose.msra.mxu0 %v722
    %754 = vmatprep.subr.mxu0 0.0
    %755 = vmatpush1.xpose.msra.mxu0 %v720
    %756 = vmatprep.subr.mxu0 0.0
    %757 = vmatpush2.xpose.msra.mxu0 0.0
    %758 = vmatprep.subr.mxu0 0.0
    %759 = vmatpush2.xpose.msra.mxu0 0.0
    %760 = vmatprep.subr.mxu0 0.0
    %761 = vmatpush2.xpose.msra.mxu0 0.0
    %762 = vmatprep.subr.mxu0 0.0
    %763 = vmatpush2.xpose.msra.mxu0 0.0
    %764 = vmatprep.subr.mxu0 0.0
    %765 = vmatpush2.xpose.msra.mxu0 0.0
    %766 = vmatprep.subr.mxu0 0.0
    %767 = vmatpush2.xpose.msra.mxu0 0.0
    %768 = vmatprep.subr.mxu0 0.0
    %769 = vmatpush2.xpose.msra.mxu0 0.0
    %770 = vmatprep.subr.mxu0 0.0
    %771 = vmatpush2.xpose.msra.mxu0 0.0
    %772 = vmatprep.subr.mxu0 0.0
    %773 = vmatpush2.xpose.msra.mxu0 0.0
    %774 = vmatprep.subr.mxu0 0.0
    %775 = vmatpush2.xpose.msra.mxu0 0.0
    %776 = vmatprep.subr.mxu0 0.0
    %777 = vmatpush2.xpose.msra.mxu0 0.0
    %778 = vmatprep.subr.mxu0 0.0
    %779 = vmatpush2.xpose.msra.mxu0 0.0
    %780 = vmatprep.subr.mxu0 0.0
    %781 = vmatpush2.xpose.msra.mxu0 0.0
    %782 = vmatprep.subr.mxu0 0.0
    %783 = vmatpush2.xpose.msra.mxu0 0.0
    %784 = vmatprep.subr.mxu0 0.0
    %785 = vmatpush2.xpose.msra.mxu0 0.0
    %786 = vmatprep.subr.mxu0 0.0
    %787 = vmatpush2.xpose.msra.mxu0 0.0
    %788 = vmatprep.mubr.f32.mxu0 0.0
    %789 = vmatmul.mubr.f32.gmra.mxu0 %v716
    %v790 = vpop.f32.mrf.mxu0
    %v791 = vadd.f32 0.0, %v790
    %v792 = vpop.f32.mrf.mxu0
    %793 = vmatprep.mubr.f32.mxu0 0.0
    %794 = vmatmul.mubr.f32.gmra.mxu0 %v718
    %v795 = vpop.f32.mrf.mxu0
    %v796 = vadd.f32 0.0, %v795
    %v797 = vpop.f32.mrf.mxu0
    %798 = vdwg.mxu0
    %v799 = vmul.f32 %v791, 0.25
    %v800 = vmul.f32 %v796, 0.25
    %v801 = vadd.f32 %v799, %v401
    %v802 = vadd.f32 %v800, %v402
    %v803 = vsel %vm511, %v801, -inf
    %804 = vmax.xlane.f32.xlu0 %v803
    %v805 = vpop.xlane.xlu0 %804
    %v806 = vsel %vm511, %v802, -inf
    %807 = vmax.xlane.f32.xlu0 %v806
    %v808 = vpop.xlane.xlu0 %807
    %v809 = vsub.f32 %v801, %v805
    %v810 = vsub.f32 %v802, %v808
    %v811 = vmul.f32 %v809, 1.442695
    %v812 = vpow.pop %v811
    %v813 = vmul.f32 %v810, 1.442695
    %v814 = vpow.pop %v813
    %v815 = vsel %vm511, %v812, 0.0
    %816 = vadd.xlane.f32.xlu0 %v815
    %v817 = vpop.xlane.xlu0 %816
    %v818 = vsel %vm511, %v814, 0.0
    %819 = vadd.xlane.f32.xlu0 %v818
    %v820 = vpop.xlane.xlu0 %819
    %v821 = vrcp.pop %v817
    %v822 = vrcp.pop %v820
    %v823 = vmul.f32 %v812, %v821
    %v824 = vmul.f32 %v814, %v822
    %825 = vrot.lane.b32.xlu0 %v497, 48
    %v826 = vpop.permute.xlu0 %825
    %827 = vrot.lane.b32.xlu0 %v502, 48
    %v828 = vpop.permute.xlu0 %827
    %v832 = vsel %vm511, %v823, 0
    %v835 = vsel %vm511, %v824, 0
    %837 = vmatprep.subr.mxu0 0.0
    %838 = vmatpush1.msra.mxu0 0.0
    %839 = vmatprep.subr.mxu0 0.0
    %840 = vmatpush1.msra.mxu0 0.0
    %841 = vmatprep.subr.mxu0 0.0
    %842 = vmatpush1.msra.mxu0 0.0
    %843 = vmatprep.subr.mxu0 0.0
    %844 = vmatpush1.msra.mxu0 0.0
    %845 = vmatprep.subr.mxu0 0.0
    %846 = vmatpush1.msra.mxu0 0.0
    %847 = vmatprep.subr.mxu0 0.0
    %848 = vmatpush1.msra.mxu0 0.0
    %849 = vmatprep.subr.mxu0 0.0
    %850 = vmatpush1.msra.mxu0 0.0
    %851 = vmatprep.subr.mxu0 0.0
    %852 = vmatpush1.msra.mxu0 0.0
    %853 = vmatprep.subr.mxu0 0.0
    %854 = vmatpush1.msra.mxu0 0.0
    %855 = vmatprep.subr.mxu0 0.0
    %856 = vmatpush1.msra.mxu0 0.0
    %857 = vmatprep.subr.mxu0 0.0
    %858 = vmatpush1.msra.mxu0 0.0
    %859 = vmatprep.subr.mxu0 0.0
    %860 = vmatpush1.msra.mxu0 0.0
    %861 = vmatprep.subr.mxu0 0.0
    %862 = vmatpush1.msra.mxu0 0.0
    %863 = vmatprep.subr.mxu0 0.0
    %864 = vmatpush1.msra.mxu0 0.0
    %865 = vmatprep.subr.mxu0 0.0
    %866 = vmatpush1.msra.mxu0 %v828
    %867 = vmatprep.subr.mxu0 0.0
    %868 = vmatpush1.msra.mxu0 %v826
    %869 = vmatprep.subr.mxu0 0.0
    %870 = vmatpush2.msra.mxu0 0.0
    %871 = vmatprep.subr.mxu0 0.0
    %872 = vmatpush2.msra.mxu0 0.0
    %873 = vmatprep.subr.mxu0 0.0
    %874 = vmatpush2.msra.mxu0 0.0
    %875 = vmatprep.subr.mxu0 0.0
    %876 = vmatpush2.msra.mxu0 0.0
    %877 = vmatprep.subr.mxu0 0.0
    %878 = vmatpush2.msra.mxu0 0.0
    %879 = vmatprep.subr.mxu0 0.0
    %880 = vmatpush2.msra.mxu0 0.0
    %881 = vmatprep.subr.mxu0 0.0
    %882 = vmatpush2.msra.mxu0 0.0
    %883 = vmatprep.subr.mxu0 0.0
    %884 = vmatpush2.msra.mxu0 0.0
    %885 = vmatprep.subr.mxu0 0.0
    %886 = vmatpush2.msra.mxu0 0.0
    %887 = vmatprep.subr.mxu0 0.0
    %888 = vmatpush2.msra.mxu0 0.0
    %889 = vmatprep.subr.mxu0 0.0
    %890 = vmatpush2.msra.mxu0 0.0
    %891 = vmatprep.subr.mxu0 0.0
    %892 = vmatpush2.msra.mxu0 0.0
    %893 = vmatprep.subr.mxu0 0.0
    %894 = vmatpush2.msra.mxu0 0.0
    %895 = vmatprep.subr.mxu0 0.0
    %896 = vmatpush2.msra.mxu0 0.0
    %897 = vmatprep.subr.mxu0 0.0
    %898 = vmatpush2.msra.mxu0 0.0
    %899 = vmatprep.subr.mxu0 0.0
    %900 = vmatpush2.msra.mxu0 0.0
    %901 = vmatprep.mubr.f32.mxu0 0.0
    %902 = vmatmul.mubr.f32.gmra.mxu0 %v832
    %v903 = vpop.f32.mrf.mxu0
    %v904 = vadd.f32 0.0, %v903
    %v905 = vpop.f32.mrf.mxu0
    %906 = vmatprep.mubr.f32.mxu0 0.0
    %907 = vmatmul.mubr.f32.gmra.mxu0 %v835
    %v908 = vpop.f32.mrf.mxu0
    %v909 = vadd.f32 0.0, %v908
    %v910 = vpop.f32.mrf.mxu0
    %911 = vdwg.mxu0
    %914 = vrot.lane.b32.xlu0 %v904, 16
    %v915 = vpop.permute.xlu0 %914
    %916 = vrot.lane.b32.xlu0 %v909, 16
    %v917 = vpop.permute.xlu0 %916
    %v920 = vsel %vm511, %v700, %v915
    %v921 = vsel %vm511, %v705, %v917
    %v922 = vlaneseq
    %v923 = vshrl.u32 %v922, 7
    %v924 = vsub.s32 1, %v923
    %v925 = vrot.slane %v419, %v924
    %v927 = vsel %vm318, %v920, 0
    %v930 = vsel %vm318, %v921, 0
    %932 = vmatprep.subr.mxu0 0.0
    %933 = vmatpush1.msra.mxu0 0.0
    %934 = vmatprep.subr.mxu0 0.0
    %935 = vmatpush1.msra.mxu0 0.0
    %936 = vmatprep.subr.mxu0 0.0
    %937 = vmatpush1.msra.mxu0 0.0
    %938 = vmatprep.subr.mxu0 0.0
    %939 = vmatpush1.msra.mxu0 0.0
    %940 = vmatprep.subr.mxu0 0.0
    %941 = vmatpush1.msra.mxu0 0.0
    %942 = vmatprep.subr.mxu0 0.0
    %943 = vmatpush1.msra.mxu0 0.0
    %944 = vmatprep.subr.mxu0 0.0
    %945 = vmatpush1.msra.mxu0 0.0
    %946 = vmatprep.subr.mxu0 0.0
    %947 = vmatpush1.msra.mxu0 0.0
    %948 = vmatprep.subr.mxu0 0.0
    %949 = vmatpush1.msra.mxu0 0.0
    %950 = vmatprep.subr.mxu0 0.0
    %951 = vmatpush1.msra.mxu0 0.0
    %952 = vmatprep.subr.mxu0 0.0
    %953 = vmatpush1.msra.mxu0 0.0
    %954 = vmatprep.subr.mxu0 0.0
    %955 = vmatpush1.msra.mxu0 0.0
    %956 = vmatprep.subr.mxu0 0.0
    %957 = vmatpush1.msra.mxu0 %v410
    %958 = vmatprep.subr.mxu0 0.0
    %959 = vmatpush1.msra.mxu0 %v409
    %960 = vmatprep.subr.mxu0 0.0
    %961 = vmatpush1.msra.mxu0 %v408
    %962 = vmatprep.subr.mxu0 0.0
    %963 = vmatpush1.msra.mxu0 %v407
    %964 = vmatprep.subr.mxu0 0.0
    %965 = vmatpush2.msra.mxu0 0.0
    %966 = vmatprep.subr.mxu0 0.0
    %967 = vmatpush2.msra.mxu0 0.0
    %968 = vmatprep.subr.mxu0 0.0
    %969 = vmatpush2.msra.mxu0 0.0
    %970 = vmatprep.subr.mxu0 0.0
    %971 = vmatpush2.msra.mxu0 0.0
    %972 = vmatprep.subr.mxu0 0.0
    %973 = vmatpush2.msra.mxu0 0.0
    %974 = vmatprep.subr.mxu0 0.0
    %975 = vmatpush2.msra.mxu0 0.0
    %976 = vmatprep.subr.mxu0 0.0
    %977 = vmatpush2.msra.mxu0 0.0
    %978 = vmatprep.subr.mxu0 0.0
    %979 = vmatpush2.msra.mxu0 0.0
    %980 = vmatprep.subr.mxu0 0.0
    %981 = vmatpush2.msra.mxu0 0.0
    %982 = vmatprep.subr.mxu0 0.0
    %983 = vmatpush2.msra.mxu0 0.0
    %984 = vmatprep.subr.mxu0 0.0
    %985 = vmatpush2.msra.mxu0 0.0
    %986 = vmatprep.subr.mxu0 0.0
    %987 = vmatpush2.msra.mxu0 0.0
    %988 = vmatprep.subr.mxu0 0.0
    %989 = vmatpush2.msra.mxu0 0.0
    %990 = vmatprep.subr.mxu0 0.0
    %991 = vmatpush2.msra.mxu0 0.0
    %992 = vmatprep.subr.mxu0 0.0
    %993 = vmatpush2.msra.mxu0 0.0
    %994 = vmatprep.subr.mxu0 0.0
    %995 = vmatpush2.msra.mxu0 0.0
    %996 = vmatprep.mubr.f32.mxu0 0.0
    %997 = vmatmul.mubr.f32.gmra.mxu0 %v927
    %v998 = vpop.f32.mrf.mxu0
    %v999 = vadd.f32 %v925, %v998
    %v1000 = vpop.f32.mrf.mxu0
    %1001 = vmatprep.mubr.f32.mxu0 0.0
    %1002 = vmatmul.mubr.f32.gmra.mxu0 %v930
    %v1003 = vpop.f32.mrf.mxu0
    %v1004 = vadd.f32 %v925, %v1003
    %v1005 = vpop.f32.mrf.mxu0
    %1006 = vdwg.mxu0
    %v1007 = vadd.f32 %v999, %v356
    %v1008 = vadd.f32 %v1004, %v357
    %v1009 = vsel %vm318, %v1007, 0.0
    %1010 = vadd.xlane.f32.xlu0 %v1009
    %v1011 = vpop.xlane.xlu0 %1010
    %v1012 = vsel %vm318, %v1008, 0.0
    %1013 = vadd.xlane.f32.xlu0 %v1012
    %v1014 = vpop.xlane.xlu0 %1013
    %v1015 = vmul.f32 %v1011, %v325
    %v1016 = vmul.f32 %v1014, %v325
    %v1017 = vsub.f32 %v1007, %v1015
    %v1018 = vsub.f32 %v1008, %v1016
    %v1019 = vmul.f32 %v1017, %v1017
    %v1020 = vmul.f32 %v1018, %v1018
    %v1021 = vsel %vm318, %v1019, 0.0
    %1022 = vadd.xlane.f32.xlu0 %v1021
    %v1023 = vpop.xlane.xlu0 %1022
    %v1024 = vsel %vm318, %v1020, 0.0
    %1025 = vadd.xlane.f32.xlu0 %v1024
    %v1026 = vpop.xlane.xlu0 %1025
    %v1027 = vmul.f32 %v1023, %v325
    %v1028 = vmul.f32 %v1026, %v325
    %v1029 = vadd.f32 %v1027, 1e-12
    %v1030 = vadd.f32 %v1028, 1e-12
    %v1031 = vrsqrt.pop %v1029
    %v1032 = vrsqrt.pop %v1030
    %v1033 = vmul.f32 %v1017, %v1031
    %v1034 = vmul.f32 %v1018, %v1032
    %v1035 = vlaneseq
    %v1036 = vshrl.u32 %v1035, 7
    %v1037 = vsub.s32 2, %v1036
    %v1038 = vrot.slane %v419, %v1037
    %v1039 = vmul.f32 %v1033, %v1038
    %v1040 = vmul.f32 %v1034, %v1038
    %v1041 = vlaneseq
    %v1042 = vshrl.u32 %v1041, 7
    %v1043 = vsub.s32 3, %v1042
    %v1044 = vrot.slane %v419, %v1043
    %v1045 = vadd.f32 %v1039, %v1044
    %v1046 = vadd.f32 %v1040, %v1044
    %v1047 = vlaneseq
    %v1048 = vshrl.u32 %v1047, 7
    %v1049 = vsub.s32 4, %v1048
    %v1050 = vrot.slane %v419, %v1049
    %v1052 = vsel %vm318, %v1045, 0
    %v1055 = vsel %vm318, %v1046, 0
    %1057 = vmatprep.subr.mxu0 0.0
    %1058 = vmatpush1.msra.mxu0 0.0
    %1059 = vmatprep.subr.mxu0 0.0
    %1060 = vmatpush1.msra.mxu0 0.0
    %1061 = vmatprep.subr.mxu0 0.0
    %1062 = vmatpush1.msra.mxu0 0.0
    %1063 = vmatprep.subr.mxu0 0.0
    %1064 = vmatpush1.msra.mxu0 0.0
    %1065 = vmatprep.subr.mxu0 0.0
    %1066 = vmatpush1.msra.mxu0 0.0
    %1067 = vmatprep.subr.mxu0 0.0
    %1068 = vmatpush1.msra.mxu0 0.0
    %1069 = vmatprep.subr.mxu0 0.0
    %1070 = vmatpush1.msra.mxu0 0.0
    %1071 = vmatprep.subr.mxu0 0.0
    %1072 = vmatpush1.msra.mxu0 0.0
    %1073 = vmatprep.subr.mxu0 0.0
    %1074 = vmatpush1.msra.mxu0 0.0
    %1075 = vmatprep.subr.mxu0 0.0
    %1076 = vmatpush1.msra.mxu0 0.0
    %1077 = vmatprep.subr.mxu0 0.0
    %1078 = vmatpush1.msra.mxu0 0.0
    %1079 = vmatprep.subr.mxu0 0.0
    %1080 = vmatpush1.msra.mxu0 0.0
    %1081 = vmatprep.subr.mxu0 0.0
    %1082 = vmatpush1.msra.mxu0 %v414
    %1083 = vmatprep.subr.mxu0 0.0
    %1084 = vmatpush1.msra.mxu0 %v413
    %1085 = vmatprep.subr.mxu0 0.0
    %1086 = vmatpush1.msra.mxu0 %v412
    %1087 = vmatprep.subr.mxu0 0.0
    %1088 = vmatpush1.msra.mxu0 %v411
    %1089 = vmatprep.subr.mxu0 0.0
    %1090 = vmatpush2.msra.mxu0 0.0
    %1091 = vmatprep.subr.mxu0 0.0
    %1092 = vmatpush2.msra.mxu0 0.0
    %1093 = vmatprep.subr.mxu0 0.0
    %1094 = vmatpush2.msra.mxu0 0.0
    %1095 = vmatprep.subr.mxu0 0.0
    %1096 = vmatpush2.msra.mxu0 0.0
    %1097 = vmatprep.subr.mxu0 0.0
    %1098 = vmatpush2.msra.mxu0 0.0
    %1099 = vmatprep.subr.mxu0 0.0
    %1100 = vmatpush2.msra.mxu0 0.0
    %1101 = vmatprep.subr.mxu0 0.0
    %1102 = vmatpush2.msra.mxu0 0.0
    %1103 = vmatprep.subr.mxu0 0.0
    %1104 = vmatpush2.msra.mxu0 0.0
    %1105 = vmatprep.subr.mxu0 0.0
    %1106 = vmatpush2.msra.mxu0 0.0
    %1107 = vmatprep.subr.mxu0 0.0
    %1108 = vmatpush2.msra.mxu0 0.0
    %1109 = vmatprep.subr.mxu0 0.0
    %1110 = vmatpush2.msra.mxu0 0.0
    %1111 = vmatprep.subr.mxu0 0.0
    %1112 = vmatpush2.msra.mxu0 0.0
    %1113 = vmatprep.subr.mxu0 0.0
    %1114 = vmatpush2.msra.mxu0 0.0
    %1115 = vmatprep.subr.mxu0 0.0
    %1116 = vmatpush2.msra.mxu0 0.0
    %1117 = vmatprep.subr.mxu0 0.0
    %1118 = vmatpush2.msra.mxu0 0.0
    %1119 = vmatprep.subr.mxu0 0.0
    %1120 = vmatpush2.msra.mxu0 0.0
    %1121 = vmatprep.mubr.f32.mxu0 0.0
    %1122 = vmatmul.mubr.f32.gmra.mxu0 %v1052
    %v1123 = vpop.f32.mrf.mxu0
    %v1124 = vadd.f32 %v1050, %v1123
    %v1125 = vpop.f32.mrf.mxu0
    %1126 = vmatprep.mubr.f32.mxu0 0.0
    %1127 = vmatmul.mubr.f32.gmra.mxu0 %v1055
    %v1128 = vpop.f32.mrf.mxu0
    %v1129 = vadd.f32 %v1050, %v1128
    %v1130 = vpop.f32.mrf.mxu0
    %1131 = vdwg.mxu0
    %v1132 = vmul.f32 %v1124, 0.5
    %v1133 = vmul.f32 %v1129, 0.5
    %v1134 = vmul.f32 %v1124, 0.044715
    %v1135 = vmul.f32 %v1129, 0.044715
    %v1136 = vmul.f32 %v1134, %v1124
    %v1137 = vmul.f32 %v1135, %v1129
    %v1138 = vmul.f32 %v1136, %v1124
    %v1139 = vmul.f32 %v1137, %v1129
    %v1140 = vadd.f32 %v1124, %v1138
    %v1141 = vadd.f32 %v1129, %v1139
    %v1142 = vmul.f32 %v1140, 0.7978846
    %v1143 = vmul.f32 %v1141, 0.7978846
    %v1144 = vtanh.pop %v1142
    %v1145 = vtanh.pop %v1143
    %v1146 = vadd.f32 %v1144, 1.0
    %v1147 = vadd.f32 %v1145, 1.0
    %v1148 = vmul.f32 %v1132, %v1146
    %v1149 = vmul.f32 %v1133, %v1147
    %v1150 = vlaneseq
    %v1151 = vshrl.u32 %v1150, 7
    %v1152 = vsub.s32 5, %v1151
    %v1153 = vrot.slane %v419, %v1152
    %vm1154 = vcmask 523264
    %v1156 = vsel %vm1154, %v1148, 0
    %v1159 = vsel %vm1154, %v1149, 0
    %v1162 = vsel %vm1154, %v415, 0
    %v1165 = vsel %vm1154, %v416, 0
    %v1168 = vsel %vm1154, %v417, 0
    %v1171 = vsel %vm1154, %v418, 0
    %1173 = vmatprep.subr.mxu0 0.0
    %1174 = vmatpush1.xpose.msra.mxu0 0.0
    %1175 = vmatprep.subr.mxu0 0.0
    %1176 = vmatpush1.xpose.msra.mxu0 0.0
    %1177 = vmatprep.subr.mxu0 0.0
    %1178 = vmatpush1.xpose.msra.mxu0 0.0
    %1179 = vmatprep.subr.mxu0 0.0
    %1180 = vmatpush1.xpose.msra.mxu0 0.0
    %1181 = vmatprep.subr.mxu0 0.0
    %1182 = vmatpush1.xpose.msra.mxu0 0.0
    %1183 = vmatprep.subr.mxu0 0.0
    %1184 = vmatpush1.xpose.msra.mxu0 0.0
    %1185 = vmatprep.subr.mxu0 0.0
    %1186 = vmatpush1.xpose.msra.mxu0 0.0
    %1187 = vmatprep.subr.mxu0 0.0
    %1188 = vmatpush1.xpose.msra.mxu0 0.0
    %1189 = vmatprep.subr.mxu0 0.0
    %1190 = vmatpush1.xpose.msra.mxu0 0.0
    %1191 = vmatprep.subr.mxu0 0.0
    %1192 = vmatpush1.xpose.msra.mxu0 0.0
    %1193 = vmatprep.subr.mxu0 0.0
    %1194 = vmatpush1.xpose.msra.mxu0 0.0
    %1195 = vmatprep.subr.mxu0 0.0
    %1196 = vmatpush1.xpose.msra.mxu0 0.0
    %1197 = vmatprep.subr.mxu0 0.0
    %1198 = vmatpush1.xpose.msra.mxu0 %v1171
    %1199 = vmatprep.subr.mxu0 0.0
    %1200 = vmatpush1.xpose.msra.mxu0 %v1168
    %1201 = vmatprep.subr.mxu0 0.0
    %1202 = vmatpush1.xpose.msra.mxu0 %v1165
    %1203 = vmatprep.subr.mxu0 0.0
    %1204 = vmatpush1.xpose.msra.mxu0 %v1162
    %1205 = vmatprep.subr.mxu0 0.0
    %1206 = vmatpush2.xpose.msra.mxu0 0.0
    %1207 = vmatprep.subr.mxu0 0.0
    %1208 = vmatpush2.xpose.msra.mxu0 0.0
    %1209 = vmatprep.subr.mxu0 0.0
    %1210 = vmatpush2.xpose.msra.mxu0 0.0
    %1211 = vmatprep.subr.mxu0 0.0
    %1212 = vmatpush2.xpose.msra.mxu0 0.0
    %1213 = vmatprep.subr.mxu0 0.0
    %1214 = vmatpush2.xpose.msra.mxu0 0.0
    %1215 = vmatprep.subr.mxu0 0.0
    %1216 = vmatpush2.xpose.msra.mxu0 0.0
    %1217 = vmatprep.subr.mxu0 0.0
    %1218 = vmatpush2.xpose.msra.mxu0 0.0
    %1219 = vmatprep.subr.mxu0 0.0
    %1220 = vmatpush2.xpose.msra.mxu0 0.0
    %1221 = vmatprep.subr.mxu0 0.0
    %1222 = vmatpush2.xpose.msra.mxu0 0.0
    %1223 = vmatprep.subr.mxu0 0.0
    %1224 = vmatpush2.xpose.msra.mxu0 0.0
    %1225 = vmatprep.subr.mxu0 0.0
    %1226 = vmatpush2.xpose.msra.mxu0 0.0
    %1227 = vmatprep.subr.mxu0 0.0
    %1228 = vmatpush2.xpose.msra.mxu0 0.0
    %1229 = vmatprep.subr.mxu0 0.0
    %1230 = vmatpush2.xpose.msra.mxu0 0.0
    %1231 = vmatprep.subr.mxu0 0.0
    %1232 = vmatpush2.xpose.msra.mxu0 0.0
    %1233 = vmatprep.subr.mxu0 0.0
    %1234 = vmatpush2.xpose.msra.mxu0 0.0
    %1235 = vmatprep.subr.mxu0 0.0
    %1236 = vmatpush2.xpose.msra.mxu0 0.0
    %1237 = vmatprep.mubr.f32.mxu0 0.0
    %1238 = vmatmul.mubr.f32.gmra.mxu0 %v1156
    %v1239 = vpop.f32.mrf.mxu0
    %v1240 = vadd.f32 %v1153, %v1239
    %v1241 = vpop.f32.mrf.mxu0
    %1242 = vmatprep.mubr.f32.mxu0 0.0
    %1243 = vmatmul.mubr.f32.gmra.mxu0 %v1159
    %v1244 = vpop.f32.mrf.mxu0
    %v1245 = vadd.f32 %v1153, %v1244
    %v1246 = vpop.f32.mrf.mxu0
    %1247 = vdwg.mxu0
    %v1248 = vadd.f32 %v1240, %v1045
    %v1249 = vadd.f32 %v1245, %v1046
    %v1250 = vsel %vm318, %v1248, 0.0
    %1251 = vadd.xlane.f32.xlu0 %v1250
    %v1252 = vpop.xlane.xlu0 %1251
    %v1253 = vsel %vm318, %v1249, 0.0
    %1254 = vadd.xlane.f32.xlu0 %v1253
    %v1255 = vpop.xlane.xlu0 %1254
    %v1256 = vmul.f32 %v1252, %v325
    %v1257 = vmul.f32 %v1255, %v325
    %v1258 = vsub.f32 %v1248, %v1256
    %v1259 = vsub.f32 %v1249, %v1257
    %v1260 = vmul.f32 %v1258, %v1258
    %v1261 = vmul.f32 %v1259, %v1259
    %v1262 = vsel %vm318, %v1260, 0.0
    %1263 = vadd.xlane.f32.xlu0 %v1262
    %v1264 = vpop.xlane.xlu0 %1263
    %v1265 = vsel %vm318, %v1261, 0.0
    %1266 = vadd.xlane.f32.xlu0 %v1265
    %v1267 = vpop.xlane.xlu0 %1266
    %v1268 = vmul.f32 %v1264, %v325
    %v1269 = vmul.f32 %v1267, %v325
    %v1270 = vadd.f32 %v1268, 1e-12
    %v1271 = vadd.f32 %v1269, 1e-12
    %v1272 = vrsqrt.pop %v1270
    %v1273 = vrsqrt.pop %v1271
    %v1274 = vmul.f32 %v1258, %v1272
    %v1275 = vmul.f32 %v1259, %v1273
    %v1276 = vlaneseq
    %v1277 = vshrl.u32 %v1276, 7
    %v1278 = vsub.s32 6, %v1277
    %v1279 = vrot.slane %v419, %v1278
    %v1280 = vmul.f32 %v1274, %v1279
    %v1281 = vmul.f32 %v1275, %v1279
    %v1282 = vlaneseq
    %v1283 = vshrl.u32 %v1282, 7
    %v1284 = vsub.s32 7, %v1283
    %v1285 = vrot.slane %v419, %v1284
    %v1286 = vadd.f32 %v1280, %v1285
    %v1287 = vadd.f32 %v1281, %v1285
    %s1288 = scalar_lea.vmem [#allocation6], 128
    %v1289 = vld [vmem:[%s1288] sm:$0xff]
    %v1290 = vld [vmem:[%s1288 + $0x8] sm:$0xff]
    %v1291 = vld [vmem:[%s1288 + $0x10] sm:$0xff]
    %v1292 = vld [vmem:[%s1288 + $0x18] sm:$0xff]
    %v1293 = vld [vmem:[%s1288 + $0x20] sm:$0xff]
    %v1294 = vld [vmem:[%s1288 + $0x28] sm:$0xff]
    %v1295 = vld [vmem:[%s1288 + $0x30] sm:$0xff]
    %v1296 = vld [vmem:[%s1288 + $0x38] sm:$0xff]
    %v1297 = vld [vmem:[%s1288 + $0x40] sm:$0xff]
    %v1298 = vld [vmem:[%s1288 + $0x48] sm:$0xff]
    %v1299 = vld [vmem:[%s1288 + $0x50] sm:$0xff]
    %v1300 = vld [vmem:[%s1288 + $0x58] sm:$0xff]
    %v1301 = vld [vmem:[%s1288 + $0x60] sm:$0xff]
    %v1302 = vld [vmem:[%s1288 + $0x68] sm:$0xff]
    %v1303 = vld [vmem:[%s1288 + $0x70] sm:$0xff]
    %v1304 = vld [vmem:[%s1288 + $0x78] sm:$0xff]
    %s1305 = scalar_lea.vmem %s5, 8
    %v1306 = vld [vmem:[%s1305] sm:$0xff]
    %v1307 = vlaneseq
    %v1308 = vshrl.u32 %v1307, 7
    %v1309 = vsub.s32 0, %v1308
    %v1310 = vrot.slane %v1306, %v1309
    %v1312 = vsel %vm318, %v1286, 0
    %v1315 = vsel %vm318, %v1287, 0
    %1317 = vmatprep.subr.mxu0 0.0
    %1318 = vmatpush1.msra.mxu0 0.0
    %1319 = vmatprep.subr.mxu0 0.0
    %1320 = vmatpush1.msra.mxu0 0.0
    %1321 = vmatprep.subr.mxu0 0.0
    %1322 = vmatpush1.msra.mxu0 0.0
    %1323 = vmatprep.subr.mxu0 0.0
    %1324 = vmatpush1.msra.mxu0 0.0
    %1325 = vmatprep.subr.mxu0 0.0
    %1326 = vmatpush1.msra.mxu0 0.0
    %1327 = vmatprep.subr.mxu0 0.0
    %1328 = vmatpush1.msra.mxu0 0.0
    %1329 = vmatprep.subr.mxu0 0.0
    %1330 = vmatpush1.msra.mxu0 0.0
    %1331 = vmatprep.subr.mxu0 0.0
    %1332 = vmatpush1.msra.mxu0 0.0
    %1333 = vmatprep.subr.mxu0 0.0
    %1334 = vmatpush1.msra.mxu0 0.0
    %1335 = vmatprep.subr.mxu0 0.0
    %1336 = vmatpush1.msra.mxu0 0.0
    %1337 = vmatprep.subr.mxu0 0.0
    %1338 = vmatpush1.msra.mxu0 0.0
    %1339 = vmatprep.subr.mxu0 0.0
    %1340 = vmatpush1.msra.mxu0 0.0
    %1341 = vmatprep.subr.mxu0 0.0
    %1342 = vmatpush1.msra.mxu0 %v1292
    %1343 = vmatprep.subr.mxu0 0.0
    %1344 = vmatpush1.msra.mxu0 %v1291
    %1345 = vmatprep.subr.mxu0 0.0
    %1346 = vmatpush1.msra.mxu0 %v1290
    %1347 = vmatprep.subr.mxu0 0.0
    %1348 = vmatpush1.msra.mxu0 %v1289
    %1349 = vmatprep.subr.mxu0 0.0
    %1350 = vmatpush2.msra.mxu0 0.0
    %1351 = vmatprep.subr.mxu0 0.0
    %1352 = vmatpush2.msra.mxu0 0.0
    %1353 = vmatprep.subr.mxu0 0.0
    %1354 = vmatpush2.msra.mxu0 0.0
    %1355 = vmatprep.subr.mxu0 0.0
    %1356 = vmatpush2.msra.mxu0 0.0
    %1357 = vmatprep.subr.mxu0 0.0
    %1358 = vmatpush2.msra.mxu0 0.0
    %1359 = vmatprep.subr.mxu0 0.0
    %1360 = vmatpush2.msra.mxu0 0.0
    %1361 = vmatprep.subr.mxu0 0.0
    %1362 = vmatpush2.msra.mxu0 0.0
    %1363 = vmatprep.subr.mxu0 0.0
    %1364 = vmatpush2.msra.mxu0 0.0
    %1365 = vmatprep.subr.mxu0 0.0
    %1366 = vmatpush2.msra.mxu0 0.0
    %1367 = vmatprep.subr.mxu0 0.0
    %1368 = vmatpush2.msra.mxu0 0.0
    %1369 = vmatprep.subr.mxu0 0.0
    %1370 = vmatpush2.msra.mxu0 0.0
    %1371 = vmatprep.subr.mxu0 0.0
    %1372 = vmatpush2.msra.mxu0 0.0
    %1373 = vmatprep.subr.mxu0 0.0
    %1374 = vmatpush2.msra.mxu0 0.0
    %1375 = vmatprep.subr.mxu0 0.0
    %1376 = vmatpush2.msra.mxu0 0.0
    %1377 = vmatprep.subr.mxu0 0.0
    %1378 = vmatpush2.msra.mxu0 0.0
    %1379 = vmatprep.subr.mxu0 0.0
    %1380 = vmatpush2.msra.mxu0 0.0
    %1381 = vmatprep.mubr.f32.mxu0 0.0
    %1382 = vmatmul.mubr.f32.gmra.mxu0 %v1312
    %v1383 = vpop.f32.mrf.mxu0
    %v1384 = vadd.f32 %v1310, %v1383
    %v1385 = vpop.f32.mrf.mxu0
    %1386 = vmatprep.mubr.f32.mxu0 0.0
    %1387 = vmatmul.mubr.f32.gmra.mxu0 %v1315
    %v1388 = vpop.f32.mrf.mxu0
    %v1389 = vadd.f32 %v1310, %v1388
    %v1390 = vpop.f32.mrf.mxu0
    %1391 = vdwg.mxu0
    %1394 = vrot.lane.b32.xlu0 %v1384, 112
    %v1395 = vpop.permute.xlu0 %1394
    %1396 = vrot.lane.b32.xlu0 %v1389, 112
    %v1397 = vpop.permute.xlu0 %1396
    %v1398 = vsel %vm511, %v1384, 0
    %v1400 = vsel %vm511, %v1389, 0
    %v1402 = vsel %vm511, %v1395, 0
    %v1404 = vsel %vm511, %v1397, 0
    %1406 = vmatprep.subr.mxu0 0.0
    %1407 = vmatpush1.xpose.msra.mxu0 0.0
    %1408 = vmatprep.subr.mxu0 0.0
    %1409 = vmatpush1.xpose.msra.mxu0 0.0
    %1410 = vmatprep.subr.mxu0 0.0
    %1411 = vmatpush1.xpose.msra.mxu0 0.0
    %1412 = vmatprep.subr.mxu0 0.0
    %1413 = vmatpush1.xpose.msra.mxu0 0.0
    %1414 = vmatprep.subr.mxu0 0.0
    %1415 = vmatpush1.xpose.msra.mxu0 0.0
    %1416 = vmatprep.subr.mxu0 0.0
    %1417 = vmatpush1.xpose.msra.mxu0 0.0
    %1418 = vmatprep.subr.mxu0 0.0
    %1419 = vmatpush1.xpose.msra.mxu0 0.0
    %1420 = vmatprep.subr.mxu0 0.0
    %1421 = vmatpush1.xpose.msra.mxu0 0.0
    %1422 = vmatprep.subr.mxu0 0.0
    %1423 = vmatpush1.xpose.msra.mxu0 0.0
    %1424 = vmatprep.subr.mxu0 0.0
    %1425 = vmatpush1.xpose.msra.mxu0 0.0
    %1426 = vmatprep.subr.mxu0 0.0
    %1427 = vmatpush1.xpose.msra.mxu0 0.0
    %1428 = vmatprep.subr.mxu0 0.0
    %1429 = vmatpush1.xpose.msra.mxu0 0.0
    %1430 = vmatprep.subr.mxu0 0.0
    %1431 = vmatpush1.xpose.msra.mxu0 0.0
    %1432 = vmatprep.subr.mxu0 0.0
    %1433 = vmatpush1.xpose.msra.mxu0 0.0
    %1434 = vmatprep.subr.mxu0 0.0
    %1435 = vmatpush1.xpose.msra.mxu0 %v1404
    %1436 = vmatprep.subr.mxu0 0.0
    %1437 = vmatpush1.xpose.msra.mxu0 %v1402
    %1438 = vmatprep.subr.mxu0 0.0
    %1439 = vmatpush2.xpose.msra.mxu0 0.0
    %1440 = vmatprep.subr.mxu0 0.0
    %1441 = vmatpush2.xpose.msra.mxu0 0.0
    %1442 = vmatprep.subr.mxu0 0.0
    %1443 = vmatpush2.xpose.msra.mxu0 0.0
    %1444 = vmatprep.subr.mxu0 0.0
    %1445 = vmatpush2.xpose.msra.mxu0 0.0
    %1446 = vmatprep.subr.mxu0 0.0
    %1447 = vmatpush2.xpose.msra.mxu0 0.0
    %1448 = vmatprep.subr.mxu0 0.0
    %1449 = vmatpush2.xpose.msra.mxu0 0.0
    %1450 = vmatprep.subr.mxu0 0.0
    %1451 = vmatpush2.xpose.msra.mxu0 0.0
    %1452 = vmatprep.subr.mxu0 0.0
    %1453 = vmatpush2.xpose.msra.mxu0 0.0
    %1454 = vmatprep.subr.mxu0 0.0
    %1455 = vmatpush2.xpose.msra.mxu0 0.0
    %1456 = vmatprep.subr.mxu0 0.0
    %1457 = vmatpush2.xpose.msra.mxu0 0.0
    %1458 = vmatprep.subr.mxu0 0.0
    %1459 = vmatpush2.xpose.msra.mxu0 0.0
    %1460 = vmatprep.subr.mxu0 0.0
    %1461 = vmatpush2.xpose.msra.mxu0 0.0
    %1462 = vmatprep.subr.mxu0 0.0
    %1463 = vmatpush2.xpose.msra.mxu0 0.0
    %1464 = vmatprep.subr.mxu0 0.0
    %1465 = vmatpush2.xpose.msra.mxu0 0.0
    %1466 = vmatprep.subr.mxu0 0.0
    %1467 = vmatpush2.xpose.msra.mxu0 0.0
    %1468 = vmatprep.subr.mxu0 0.0
    %1469 = vmatpush2.xpose.msra.mxu0 0.0
    %1470 = vmatprep.mubr.f32.mxu0 0.0
    %1471 = vmatmul.mubr.f32.gmra.mxu0 %v1398
    %v1472 = vpop.f32.mrf.mxu0
    %v1473 = vadd.f32 0.0, %v1472
    %v1474 = vpop.f32.mrf.mxu0
    %1475 = vmatprep.mubr.f32.mxu0 0.0
    %1476 = vmatmul.mubr.f32.gmra.mxu0 %v1400
    %v1477 = vpop.f32.mrf.mxu0
    %v1478 = vadd.f32 0.0, %v1477
    %v1479 = vpop.f32.mrf.mxu0
    %1480 = vdwg.mxu0
    %v1481 = vmul.f32 %v1473, 0.25
    %v1482 = vmul.f32 %v1478, 0.25
    %v1483 = vadd.f32 %v1481, %v401
    %v1484 = vadd.f32 %v1482, %v402
    %v1485 = vsel %vm511, %v1483, -inf
    %1486 = vmax.xlane.f32.xlu0 %v1485
    %v1487 = vpop.xlane.xlu0 %1486
    %v1488 = vsel %vm511, %v1484, -inf
    %1489 = vmax.xlane.f32.xlu0 %v1488
    %v1490 = vpop.xlane.xlu0 %1489
    %v1491 = vsub.f32 %v1483, %v1487
    %v1492 = vsub.f32 %v1484, %v1490
    %v1493 = vmul.f32 %v1491, 1.442695
    %v1494 = vpow.pop %v1493
    %v1495 = vmul.f32 %v1492, 1.442695
    %v1496 = vpow.pop %v1495
    %v1497 = vsel %vm511, %v1494, 0.0
    %1498 = vadd.xlane.f32.xlu0 %v1497
    %v1499 = vpop.xlane.xlu0 %1498
    %v1500 = vsel %vm511, %v1496, 0.0
    %1501 = vadd.xlane.f32.xlu0 %v1500
    %v1502 = vpop.xlane.xlu0 %1501
    %v1503 = vrcp.pop %v1499
    %v1504 = vrcp.pop %v1502
    %v1505 = vmul.f32 %v1494, %v1503
    %v1506 = vmul.f32 %v1496, %v1504
    %1507 = vrot.lane.b32.xlu0 %v1384, 96
    %v1508 = vpop.permute.xlu0 %1507
    %1509 = vrot.lane.b32.xlu0 %v1389, 96
    %v1510 = vpop.permute.xlu0 %1509
    %v1514 = vsel %vm511, %v1505, 0
    %v1517 = vsel %vm511, %v1506, 0
    %1519 = vmatprep.subr.mxu0 0.0
    %1520 = vmatpush1.msra.mxu0 0.0
    %1521 = vmatprep.subr.mxu0 0.0
    %1522 = vmatpush1.msra.mxu0 0.0
    %1523 = vmatprep.subr.mxu0 0.0
    %1524 = vmatpush1.msra.mxu0 0.0
    %1525 = vmatprep.subr.mxu0 0.0
    %1526 = vmatpush1.msra.mxu0 0.0
    %1527 = vmatprep.subr.mxu0 0.0
    %1528 = vmatpush1.msra.mxu0 0.0
    %1529 = vmatprep.subr.mxu0 0.0
    %1530 = vmatpush1.msra.mxu0 0.0
    %1531 = vmatprep.subr.mxu0 0.0
    %1532 = vmatpush1.msra.mxu0 0.0
    %1533 = vmatprep.subr.mxu0 0.0
    %1534 = vmatpush1.msra.mxu0 0.0
    %1535 = vmatprep.subr.mxu0 0.0
    %1536 = vmatpush1.msra.mxu0 0.0
    %1537 = vmatprep.subr.mxu0 0.0
    %1538 = vmatpush1.msra.mxu0 0.0
    %1539 = vmatprep.subr.mxu0 0.0
    %1540 = vmatpush1.msra.mxu0 0.0
    %1541 = vmatprep.subr.mxu0 0.0
    %1542 = vmatpush1.msra.mxu0 0.0
    %1543 = vmatprep.subr.mxu0 0.0
    %1544 = vmatpush1.msra.mxu0 0.0
    %1545 = vmatprep.subr.mxu0 0.0
    %1546 = vmatpush1.msra.mxu0 0.0
    %1547 = vmatprep.subr.mxu0 0.0
    %1548 = vmatpush1.msra.mxu0 %v1510
    %1549 = vmatprep.subr.mxu0 0.0
    %1550 = vmatpush1.msra.mxu0 %v1508
    %1551 = vmatprep.subr.mxu0 0.0
    %1552 = vmatpush2.msra.mxu0 0.0
    %1553 = vmatprep.subr.mxu0 0.0
    %1554 = vmatpush2.msra.mxu0 0.0
    %1555 = vmatprep.subr.mxu0 0.0
    %1556 = vmatpush2.msra.mxu0 0.0
    %1557 = vmatprep.subr.mxu0 0.0
    %1558 = vmatpush2.msra.mxu0 0.0
    %1559 = vmatprep.subr.mxu0 0.0
    %1560 = vmatpush2.msra.mxu0 0.0
    %1561 = vmatprep.subr.mxu0 0.0
    %1562 = vmatpush2.msra.mxu0 0.0
    %1563 = vmatprep.subr.mxu0 0.0
    %1564 = vmatpush2.msra.mxu0 0.0
    %1565 = vmatprep.subr.mxu0 0.0
    %1566 = vmatpush2.msra.mxu0 0.0
    %1567 = vmatprep.subr.mxu0 0.0
    %1568 = vmatpush2.msra.mxu0 0.0
    %1569 = vmatprep.subr.mxu0 0.0
    %1570 = vmatpush2.msra.mxu0 0.0
    %1571 = vmatprep.subr.mxu0 0.0
    %1572 = vmatpush2.msra.mxu0 0.0
    %1573 = vmatprep.subr.mxu0 0.0
    %1574 = vmatpush2.msra.mxu0 0.0
    %1575 = vmatprep.subr.mxu0 0.0
    %1576 = vmatpush2.msra.mxu0 0.0
    %1577 = vmatprep.subr.mxu0 0.0
    %1578 = vmatpush2.msra.mxu0 0.0
    %1579 = vmatprep.subr.mxu0 0.0
    %1580 = vmatpush2.msra.mxu0 0.0
    %1581 = vmatprep.subr.mxu0 0.0
    %1582 = vmatpush2.msra.mxu0 0.0
    %1583 = vmatprep.mubr.f32.mxu0 0.0
    %1584 = vmatmul.mubr.f32.gmra.mxu0 %v1514
    %v1585 = vpop.f32.mrf.mxu0
    %v1586 = vadd.f32 0.0, %v1585
    %v1587 = vpop.f32.mrf.mxu0
    %1588 = vmatprep.mubr.f32.mxu0 0.0
    %1589 = vmatmul.mubr.f32.gmra.mxu0 %v1517
    %v1590 = vpop.f32.mrf.mxu0
    %v1591 = vadd.f32 0.0, %v1590
    %v1592 = vpop.f32.mrf.mxu0
    %1593 = vdwg.mxu0
    %1594 = vrot.lane.b32.xlu0 %v1384, 80
    %v1595 = vpop.permute.xlu0 %1594
    %1596 = vrot.lane.b32.xlu0 %v1389, 80
    %v1597 = vpop.permute.xlu0 %1596
    %1598 = vrot.lane.b32.xlu0 %v1384, 64
    %v1599 = vpop.permute.xlu0 %1598
    %1600 = vrot.lane.b32.xlu0 %v1389, 64
    %v1601 = vpop.permute.xlu0 %1600
    %v1602 = vsel %vm511, %v1595, 0
    %v1604 = vsel %vm511, %v1597, 0
    %v1606 = vsel %vm511, %v1599, 0
    %v1608 = vsel %vm511, %v1601, 0
    %1610 = vmatprep.subr.mxu0 0.0
    %1611 = vmatpush1.xpose.msra.mxu0 0.0
    %1612 = vmatprep.subr.mxu0 0.0
    %1613 = vmatpush1.xpose.msra.mxu0 0.0
    %1614 = vmatprep.subr.mxu0 0.0
    %1615 = vmatpush1.xpose.msra.mxu0 0.0
    %1616 = vmatprep.subr.mxu0 0.0
    %1617 = vmatpush1.xpose.msra.mxu0 0.0
    %1618 = vmatprep.subr.mxu0 0.0
    %1619 = vmatpush1.xpose.msra.mxu0 0.0
    %1620 = vmatprep.subr.mxu0 0.0
    %1621 = vmatpush1.xpose.msra.mxu0 0.0
    %1622 = vmatprep.subr.mxu0 0.0
    %1623 = vmatpush1.xpose.msra.mxu0 0.0
    %1624 = vmatprep.subr.mxu0 0.0
    %1625 = vmatpush1.xpose.msra.mxu0 0.0
    %1626 = vmatprep.subr.mxu0 0.0
    %1627 = vmatpush1.xpose.msra.mxu0 0.0
    %1628 = vmatprep.subr.mxu0 0.0
    %1629 = vmatpush1.xpose.msra.mxu0 0.0
    %1630 = vmatprep.subr.mxu0 0.0
    %1631 = vmatpush1.xpose.msra.mxu0 0.0
    %1632 = vmatprep.subr.mxu0 0.0
    %1633 = vmatpush1.xpose.msra.mxu0 0.0
    %1634 = vmatprep.subr.mxu0 0.0
    %1635 = vmatpush1.xpose.msra.mxu0 0.0
    %1636 = vmatprep.subr.mxu0 0.0
    %1637 = vmatpush1.xpose.msra.mxu0 0.0
    %1638 = vmatprep.subr.mxu0 0.0
    %1639 = vmatpush1.xpose.msra.mxu0 %v1608
    %1640 = vmatprep.subr.mxu0 0.0
    %1641 = vmatpush1.xpose.msra.mxu0 %v1606
    %1642 = vmatprep.subr.mxu0 0.0
    %1643 = vmatpush2.xpose.msra.mxu0 0.0
    %1644 = vmatprep.subr.mxu0 0.0
    %1645 = vmatpush2.xpose.msra.mxu0 0.0
    %1646 = vmatprep.subr.mxu0 0.0
    %1647 = vmatpush2.xpose.msra.mxu0 0.0
    %1648 = vmatprep.subr.mxu0 0.0
    %1649 = vmatpush2.xpose.msra.mxu0 0.0
    %1650 = vmatprep.subr.mxu0 0.0
    %1651 = vmatpush2.xpose.msra.mxu0 0.0
    %1652 = vmatprep.subr.mxu0 0.0
    %1653 = vmatpush2.xpose.msra.mxu0 0.0
    %1654 = vmatprep.subr.mxu0 0.0
    %1655 = vmatpush2.xpose.msra.mxu0 0.0
    %1656 = vmatprep.subr.mxu0 0.0
    %1657 = vmatpush2.xpose.msra.mxu0 0.0
    %1658 = vmatprep.subr.mxu0 0.0
    %1659 = vmatpush2.xpose.msra.mxu0 0.0
    %1660 = vmatprep.subr.mxu0 0.0
    %1661 = vmatpush2.xpose.msra.mxu0 0.0
    %1662 = vmatprep.subr.mxu0 0.0
    %1663 = vmatpush2.xpose.msra.mxu0 0.0
    %1664 = vmatprep.subr.mxu0 0.0
    %1665 = vmatpush2.xpose.msra.mxu0 0.0
    %1666 = vmatprep.subr.mxu0 0.0
    %1667 = vmatpush2.xpose.msra.mxu0 0.0
    %1668 = vmatprep.subr.mxu0 0.0
    %1669 = vmatpush2.xpose.msra.mxu0 0.0
    %1670 = vmatprep.subr.mxu0 0.0
    %1671 = vmatpush2.xpose.msra.mxu0 0.0
    %1672 = vmatprep.subr.mxu0 0.0
    %1673 = vmatpush2.xpose.msra.mxu0 0.0
    %1674 = vmatprep.mubr.f32.mxu0 0.0
    %1675 = vmatmul.mubr.f32.gmra.mxu0 %v1602
    %v1676 = vpop.f32.mrf.mxu0
    %v1677 = vadd.f32 0.0, %v1676
    %v1678 = vpop.f32.mrf.mxu0
    %1679 = vmatprep.mubr.f32.mxu0 0.0
    %1680 = vmatmul.mubr.f32.gmra.mxu0 %v1604
    %v1681 = vpop.f32.mrf.mxu0
    %v1682 = vadd.f32 0.0, %v1681
    %v1683 = vpop.f32.mrf.mxu0
    %1684 = vdwg.mxu0
    %v1685 = vmul.f32 %v1677, 0.25
    %v1686 = vmul.f32 %v1682, 0.25
    %v1687 = vadd.f32 %v1685, %v401
    %v1688 = vadd.f32 %v1686, %v402
    %v1689 = vsel %vm511, %v1687, -inf
    %1690 = vmax.xlane.f32.xlu0 %v1689
    %v1691 = vpop.xlane.xlu0 %1690
    %v1692 = vsel %vm511, %v1688, -inf
    %1693 = vmax.xlane.f32.xlu0 %v1692
    %v1694 = vpop.xlane.xlu0 %1693
    %v1695 = vsub.f32 %v1687, %v1691
    %v1696 = vsub.f32 %v1688, %v1694
    %v1697 = vmul.f32 %v1695, 1.442695
    %v1698 = vpow.pop %v1697
    %v1699 = vmul.f32 %v1696, 1.442695
    %v1700 = vpow.pop %v1699
    %v1701 = vsel %vm511, %v1698, 0.0
    %1702 = vadd.xlane.f32.xlu0 %v1701
    %v1703 = vpop.xlane.xlu0 %1702
    %v1704 = vsel %vm511, %v1700, 0.0
    %1705 = vadd.xlane.f32.xlu0 %v1704
    %v1706 = vpop.xlane.xlu0 %1705
    %v1707 = vrcp.pop %v1703
    %v1708 = vrcp.pop %v1706
    %v1709 = vmul.f32 %v1698, %v1707
    %v1710 = vmul.f32 %v1700, %v1708
    %1711 = vrot.lane.b32.xlu0 %v1384, 48
    %v1712 = vpop.permute.xlu0 %1711
    %1713 = vrot.lane.b32.xlu0 %v1389, 48
    %v1714 = vpop.permute.xlu0 %1713
    %v1718 = vsel %vm511, %v1709, 0
    %v1721 = vsel %vm511, %v1710, 0
    %1723 = vmatprep.subr.mxu0 0.0
    %1724 = vmatpush1.msra.mxu0 0.0
    %1725 = vmatprep.subr.mxu0 0.0
    %1726 = vmatpush1.msra.mxu0 0.0
    %1727 = vmatprep.subr.mxu0 0.0
    %1728 = vmatpush1.msra.mxu0 0.0
    %1729 = vmatprep.subr.mxu0 0.0
    %1730 = vmatpush1.msra.mxu0 0.0
    %1731 = vmatprep.subr.mxu0 0.0
    %1732 = vmatpush1.msra.mxu0 0.0
    %1733 = vmatprep.subr.mxu0 0.0
    %1734 = vmatpush1.msra.mxu0 0.0
    %1735 = vmatprep.subr.mxu0 0.0
    %1736 = vmatpush1.msra.mxu0 0.0
    %1737 = vmatprep.subr.mxu0 0.0
    %1738 = vmatpush1.msra.mxu0 0.0
    %1739 = vmatprep.subr.mxu0 0.0
    %1740 = vmatpush1.msra.mxu0 0.0
    %1741 = vmatprep.subr.mxu0 0.0
    %1742 = vmatpush1.msra.mxu0 0.0
    %1743 = vmatprep.subr.mxu0 0.0
    %1744 = vmatpush1.msra.mxu0 0.0
    %1745 = vmatprep.subr.mxu0 0.0
    %1746 = vmatpush1.msra.mxu0 0.0
    %1747 = vmatprep.subr.mxu0 0.0
    %1748 = vmatpush1.msra.mxu0 0.0
    %1749 = vmatprep.subr.mxu0 0.0
    %1750 = vmatpush1.msra.mxu0 0.0
    %1751 = vmatprep.subr.mxu0 0.0
    %1752 = vmatpush1.msra.mxu0 %v1714
    %1753 = vmatprep.subr.mxu0 0.0
    %1754 = vmatpush1.msra.mxu0 %v1712
    %1755 = vmatprep.subr.mxu0 0.0
    %1756 = vmatpush2.msra.mxu0 0.0
    %1757 = vmatprep.subr.mxu0 0.0
    %1758 = vmatpush2.msra.mxu0 0.0
    %1759 = vmatprep.subr.mxu0 0.0
    %1760 = vmatpush2.msra.mxu0 0.0
    %1761 = vmatprep.subr.mxu0 0.0
    %1762 = vmatpush2.msra.mxu0 0.0
    %1763 = vmatprep.subr.mxu0 0.0
    %1764 = vmatpush2.msra.mxu0 0.0
    %1765 = vmatprep.subr.mxu0 0.0
    %1766 = vmatpush2.msra.mxu0 0.0
    %1767 = vmatprep.subr.mxu0 0.0
    %1768 = vmatpush2.msra.mxu0 0.0
    %1769 = vmatprep.subr.mxu0 0.0
    %1770 = vmatpush2.msra.mxu0 0.0
    %1771 = vmatprep.subr.mxu0 0.0
    %1772 = vmatpush2.msra.mxu0 0.0
    %1773 = vmatprep.subr.mxu0 0.0
    %1774 = vmatpush2.msra.mxu0 0.0
    %1775 = vmatprep.subr.mxu0 0.0
    %1776 = vmatpush2.msra.mxu0 0.0
    %1777 = vmatprep.subr.mxu0 0.0
    %1778 = vmatpush2.msra.mxu0 0.0
    %1779 = vmatprep.subr.mxu0 0.0
    %1780 = vmatpush2.msra.mxu0 0.0
    %1781 = vmatprep.subr.mxu0 0.0
    %1782 = vmatpush2.msra.mxu0 0.0
    %1783 = vmatprep.subr.mxu0 0.0
    %1784 = vmatpush2.msra.mxu0 0.0
    %1785 = vmatprep.subr.mxu0 0.0
    %1786 = vmatpush2.msra.mxu0 0.0
    %1787 = vmatprep.mubr.f32.mxu0 0.0
    %1788 = vmatmul.mubr.f32.gmra.mxu0 %v1718
    %v1789 = vpop.f32.mrf.mxu0
    %v1790 = vadd.f32 0.0, %v1789
    %v1791 = vpop.f32.mrf.mxu0
    %1792 = vmatprep.mubr.f32.mxu0 0.0
    %1793 = vmatmul.mubr.f32.gmra.mxu0 %v1721
    %v1794 = vpop.f32.mrf.mxu0
    %v1795 = vadd.f32 0.0, %v1794
    %v1796 = vpop.f32.mrf.mxu0
    %1797 = vdwg.mxu0
    %1800 = vrot.lane.b32.xlu0 %v1790, 16
    %v1801 = vpop.permute.xlu0 %1800
    %1802 = vrot.lane.b32.xlu0 %v1795, 16
    %v1803 = vpop.permute.xlu0 %1802
    %v1806 = vsel %vm511, %v1586, %v1801
    %v1807 = vsel %vm511, %v1591, %v1803
    %v1808 = vlaneseq
    %v1809 = vshrl.u32 %v1808, 7
    %v1810 = vsub.s32 1, %v1809
    %v1811 = vrot.slane %v1306, %v1810
    %v1813 = vsel %vm318, %v1806, 0
    %v1816 = vsel %vm318, %v1807, 0
    %1818 = vmatprep.subr.mxu0 0.0
    %1819 = vmatpush1.msra.mxu0 0.0
    %1820 = vmatprep.subr.mxu0 0.0
    %1821 = vmatpush1.msra.mxu0 0.0
    %1822 = vmatprep.subr.mxu0 0.0
    %1823 = vmatpush1.msra.mxu0 0.0
    %1824 = vmatprep.subr.mxu0 0.0
    %1825 = vmatpush1.msra.mxu0 0.0
    %1826 = vmatprep.subr.mxu0 0.0
    %1827 = vmatpush1.msra.mxu0 0.0
    %1828 = vmatprep.subr.mxu0 0.0
    %1829 = vmatpush1.msra.mxu0 0.0
    %1830 = vmatprep.subr.mxu0 0.0
    %1831 = vmatpush1.msra.mxu0 0.0
    %1832 = vmatprep.subr.mxu0 0.0
    %1833 = vmatpush1.msra.mxu0 0.0
    %1834 = vmatprep.subr.mxu0 0.0
    %1835 = vmatpush1.msra.mxu0 0.0
    %1836 = vmatprep.subr.mxu0 0.0
    %1837 = vmatpush1.msra.mxu0 0.0
    %1838 = vmatprep.subr.mxu0 0.0
    %1839 = vmatpush1.msra.mxu0 0.0
    %1840 = vmatprep.subr.mxu0 0.0
    %1841 = vmatpush1.msra.mxu0 0.0
    %1842 = vmatprep.subr.mxu0 0.0
    %1843 = vmatpush1.msra.mxu0 %v1296
    %1844 = vmatprep.subr.mxu0 0.0
    %1845 = vmatpush1.msra.mxu0 %v1295
    %1846 = vmatprep.subr.mxu0 0.0
    %1847 = vmatpush1.msra.mxu0 %v1294
    %1848 = vmatprep.subr.mxu0 0.0
    %1849 = vmatpush1.msra.mxu0 %v1293
    %1850 = vmatprep.subr.mxu0 0.0
    %1851 = vmatpush2.msra.mxu0 0.0
    %1852 = vmatprep.subr.mxu0 0.0
    %1853 = vmatpush2.msra.mxu0 0.0
    %1854 = vmatprep.subr.mxu0 0.0
    %1855 = vmatpush2.msra.mxu0 0.0
    %1856 = vmatprep.subr.mxu0 0.0
    %1857 = vmatpush2.msra.mxu0 0.0
    %1858 = vmatprep.subr.mxu0 0.0
    %1859 = vmatpush2.msra.mxu0 0.0
    %1860 = vmatprep.subr.mxu0 0.0
    %1861 = vmatpush2.msra.mxu0 0.0
    %1862 = vmatprep.subr.mxu0 0.0
    %1863 = vmatpush2.msra.mxu0 0.0
    %1864 = vmatprep.subr.mxu0 0.0
    %1865 = vmatpush2.msra.mxu0 0.0
    %1866 = vmatprep.subr.mxu0 0.0
    %1867 = vmatpush2.msra.mxu0 0.0
    %1868 = vmatprep.subr.mxu0 0.0
    %1869 = vmatpush2.msra.mxu0 0.0
    %1870 = vmatprep.subr.mxu0 0.0
    %1871 = vmatpush2.msra.mxu0 0.0
    %1872 = vmatprep.subr.mxu0 0.0
    %1873 = vmatpush2.msra.mxu0 0.0
    %1874 = vmatprep.subr.mxu0 0.0
    %1875 = vmatpush2.msra.mxu0 0.0
    %1876 = vmatprep.subr.mxu0 0.0
    %1877 = vmatpush2.msra.mxu0 0.0
    %1878 = vmatprep.subr.mxu0 0.0
    %1879 = vmatpush2.msra.mxu0 0.0
    %1880 = vmatprep.subr.mxu0 0.0
    %1881 = vmatpush2.msra.mxu0 0.0
    %1882 = vmatprep.mubr.f32.mxu0 0.0
    %1883 = vmatmul.mubr.f32.gmra.mxu0 %v1813
    %v1884 = vpop.f32.mrf.mxu0
    %v1885 = vadd.f32 %v1811, %v1884
    %v1886 = vpop.f32.mrf.mxu0
    %1887 = vmatprep.mubr.f32.mxu0 0.0
    %1888 = vmatmul.mubr.f32.gmra.mxu0 %v1816
    %v1889 = vpop.f32.mrf.mxu0
    %v1890 = vadd.f32 %v1811, %v1889
    %v1891 = vpop.f32.mrf.mxu0
    %1892 = vdwg.mxu0
    %v1893 = vadd.f32 %v1885, %v1286
    %v1894 = vadd.f32 %v1890, %v1287
    %v1895 = vsel %vm318, %v1893, 0.0
    %1896 = vadd.xlane.f32.xlu0 %v1895
    %v1897 = vpop.xlane.xlu0 %1896
    %v1898 = vsel %vm318, %v1894, 0.0
    %1899 = vadd.xlane.f32.xlu0 %v1898
    %v1900 = vpop.xlane.xlu0 %1899
    %v1901 = vmul.f32 %v1897, %v325
    %v1902 = vmul.f32 %v1900, %v325
    %v1903 = vsub.f32 %v1893, %v1901
    %v1904 = vsub.f32 %v1894, %v1902
    %v1905 = vmul.f32 %v1903, %v1903
    %v1906 = vmul.f32 %v1904, %v1904
    %v1907 = vsel %vm318, %v1905, 0.0
    %1908 = vadd.xlane.f32.xlu0 %v1907
    %v1909 = vpop.xlane.xlu0 %1908
    %v1910 = vsel %vm318, %v1906, 0.0
    %1911 = vadd.xlane.f32.xlu0 %v1910
    %v1912 = vpop.xlane.xlu0 %1911
    %v1913 = vmul.f32 %v1909, %v325
    %v1914 = vmul.f32 %v1912, %v325
    %v1915 = vadd.f32 %v1913, 1e-12
    %v1916 = vadd.f32 %v1914, 1e-12
    %v1917 = vrsqrt.pop %v1915
    %v1918 = vrsqrt.pop %v1916
    %v1919 = vmul.f32 %v1903, %v1917
    %v1920 = vmul.f32 %v1904, %v1918
    %v1921 = vlaneseq
    %v1922 = vshrl.u32 %v1921, 7
    %v1923 = vsub.s32 2, %v1922
    %v1924 = vrot.slane %v1306, %v1923
    %v1925 = vmul.f32 %v1919, %v1924
    %v1926 = vmul.f32 %v1920, %v1924
    %v1927 = vlaneseq
    %v1928 = vshrl.u32 %v1927, 7
    %v1929 = vsub.s32 3, %v1928
    %v1930 = vrot.slane %v1306, %v1929
    %v1931 = vadd.f32 %v1925, %v1930
    %v1932 = vadd.f32 %v1926, %v1930
    %v1933 = vlaneseq
    %v1934 = vshrl.u32 %v1933, 7
    %v1935 = vsub.s32 4, %v1934
    %v1936 = vrot.slane %v1306, %v1935
    %v1938 = vsel %vm318, %v1931, 0
    %v1941 = vsel %vm318, %v1932, 0
    %1943 = vmatprep.subr.mxu0 0.0
    %1944 = vmatpush1.msra.mxu0 0.0
    %1945 = vmatprep.subr.mxu0 0.0
    %1946 = vmatpush1.msra.mxu0 0.0
    %1947 = vmatprep.subr.mxu0 0.0
    %1948 = vmatpush1.msra.mxu0 0.0
    %1949 = vmatprep.subr.mxu0 0.0
    %1950 = vmatpush1.msra.mxu0 0.0
    %1951 = vmatprep.subr.mxu0 0.0
    %1952 = vmatpush1.msra.mxu0 0.0
    %1953 = vmatprep.subr.mxu0 0.0
    %1954 = vmatpush1.msra.mxu0 0.0
    %1955 = vmatprep.subr.mxu0 0.0
    %1956 = vmatpush1.msra.mxu0 0.0
    %1957 = vmatprep.subr.mxu0 0.0
    %1958 = vmatpush1.msra.mxu0 0.0
    %1959 = vmatprep.subr.mxu0 0.0
    %1960 = vmatpush1.msra.mxu0 0.0
    %1961 = vmatprep.subr.mxu0 0.0
    %1962 = vmatpush1.msra.mxu0 0.0
    %1963 = vmatprep.subr.mxu0 0.0
    %1964 = vmatpush1.msra.mxu0 0.0
    %1965 = vmatprep.subr.mxu0 0.0
    %1966 = vmatpush1.msra.mxu0 0.0
    %1967 = vmatprep.subr.mxu0 0.0
    %1968 = vmatpush1.msra.mxu0 %v1300
    %1969 = vmatprep.subr.mxu0 0.0
    %1970 = vmatpush1.msra.mxu0 %v1299
    %1971 = vmatprep.subr.mxu0 0.0
    %1972 = vmatpush1.msra.mxu0 %v1298
    %1973 = vmatprep.subr.mxu0 0.0
    %1974 = vmatpush1.msra.mxu0 %v1297
    %1975 = vmatprep.subr.mxu0 0.0
    %1976 = vmatpush2.msra.mxu0 0.0
    %1977 = vmatprep.subr.mxu0 0.0
    %1978 = vmatpush2.msra.mxu0 0.0
    %1979 = vmatprep.subr.mxu0 0.0
    %1980 = vmatpush2.msra.mxu0 0.0
    %1981 = vmatprep.subr.mxu0 0.0
    %1982 = vmatpush2.msra.mxu0 0.0
    %1983 = vmatprep.subr.mxu0 0.0
    %1984 = vmatpush2.msra.mxu0 0.0
    %1985 = vmatprep.subr.mxu0 0.0
    %1986 = vmatpush2.msra.mxu0 0.0
    %1987 = vmatprep.subr.mxu0 0.0
    %1988 = vmatpush2.msra.mxu0 0.0
    %1989 = vmatprep.subr.mxu0 0.0
    %1990 = vmatpush2.msra.mxu0 0.0
    %1991 = vmatprep.subr.mxu0 0.0
    %1992 = vmatpush2.msra.mxu0 0.0
    %1993 = vmatprep.subr.mxu0 0.0
    %1994 = vmatpush2.msra.mxu0 0.0
    %1995 = vmatprep.subr.mxu0 0.0
    %1996 = vmatpush2.msra.mxu0 0.0
    %1997 = vmatprep.subr.mxu0 0.0
    %1998 = vmatpush2.msra.mxu0 0.0
    %1999 = vmatprep.subr.mxu0 0.0
    %2000 = vmatpush2.msra.mxu0 0.0
    %2001 = vmatprep.subr.mxu0 0.0
    %2002 = vmatpush2.msra.mxu0 0.0
    %2003 = vmatprep.subr.mxu0 0.0
    %2004 = vmatpush2.msra.mxu0 0.0
    %2005 = vmatprep.subr.mxu0 0.0
    %2006 = vmatpush2.msra.mxu0 0.0
    %2007 = vmatprep.mubr.f32.mxu0 0.0
    %2008 = vmatmul.mubr.f32.gmra.mxu0 %v1938
    %v2009 = vpop.f32.mrf.mxu0
    %v2010 = vadd.f32 %v1936, %v2009
    %v2011 = vpop.f32.mrf.mxu0
    %2012 = vmatprep.mubr.f32.mxu0 0.0
    %2013 = vmatmul.mubr.f32.gmra.mxu0 %v1941
    %v2014 = vpop.f32.mrf.mxu0
    %v2015 = vadd.f32 %v1936, %v2014
    %v2016 = vpop.f32.mrf.mxu0
    %2017 = vdwg.mxu0
    %v2018 = vmul.f32 %v2010, 0.5
    %v2019 = vmul.f32 %v2015, 0.5
    %v2020 = vmul.f32 %v2010, 0.044715
    %v2021 = vmul.f32 %v2015, 0.044715
    %v2022 = vmul.f32 %v2020, %v2010
    %v2023 = vmul.f32 %v2021, %v2015
    %v2024 = vmul.f32 %v2022, %v2010
    %v2025 = vmul.f32 %v2023, %v2015
    %v2026 = vadd.f32 %v2010, %v2024
    %v2027 = vadd.f32 %v2015, %v2025
    %v2028 = vmul.f32 %v2026, 0.7978846
    %v2029 = vmul.f32 %v2027, 0.7978846
    %v2030 = vtanh.pop %v2028
    %v2031 = vtanh.pop %v2029
    %v2032 = vadd.f32 %v2030, 1.0
    %v2033 = vadd.f32 %v2031, 1.0
    %v2034 = vmul.f32 %v2018, %v2032
    %v2035 = vmul.f32 %v2019, %v2033
    %v2036 = vlaneseq
    %v2037 = vshrl.u32 %v2036, 7
    %v2038 = vsub.s32 5, %v2037
    %v2039 = vrot.slane %v1306, %v2038
    %v2041 = vsel %vm1154, %v2034, 0
    %v2044 = vsel %vm1154, %v2035, 0
    %v2047 = vsel %vm1154, %v1301, 0
    %v2050 = vsel %vm1154, %v1302, 0
    %v2053 = vsel %vm1154, %v1303, 0
    %v2056 = vsel %vm1154, %v1304, 0
    %2058 = vmatprep.subr.mxu0 0.0
    %2059 = vmatpush1.xpose.msra.mxu0 0.0
    %2060 = vmatprep.subr.mxu0 0.0
    %2061 = vmatpush1.xpose.msra.mxu0 0.0
    %2062 = vmatprep.subr.mxu0 0.0
    %2063 = vmatpush1.xpose.msra.mxu0 0.0
    %2064 = vmatprep.subr.mxu0 0.0
    %2065 = vmatpush1.xpose.msra.mxu0 0.0
    %2066 = vmatprep.subr.mxu0 0.0
    %2067 = vmatpush1.xpose.msra.mxu0 0.0
    %2068 = vmatprep.subr.mxu0 0.0
    %2069 = vmatpush1.xpose.msra.mxu0 0.0
    %2070 = vmatprep.subr.mxu0 0.0
    %2071 = vmatpush1.xpose.msra.mxu0 0.0
    %2072 = vmatprep.subr.mxu0 0.0
    %2073 = vmatpush1.xpose.msra.mxu0 0.0
    %2074 = vmatprep.subr.mxu0 0.0
    %2075 = vmatpush1.xpose.msra.mxu0 0.0
    %2076 = vmatprep.subr.mxu0 0.0
    %2077 = vmatpush1.xpose.msra.mxu0 0.0
    %2078 = vmatprep.subr.mxu0 0.0
    %2079 = vmatpush1.xpose.msra.mxu0 0.0
    %2080 = vmatprep.subr.mxu0 0.0
    %2081 = vmatpush1.xpose.msra.mxu0 0.0
    %2082 = vmatprep.subr.mxu0 0.0
    %2083 = vmatpush1.xpose.msra.mxu0 %v2056
    %2084 = vmatprep.subr.mxu0 0.0
    %2085 = vmatpush1.xpose.msra.mxu0 %v2053
    %2086 = vmatprep.subr.mxu0 0.0
    %2087 = vmatpush1.xpose.msra.mxu0 %v2050
    %2088 = vmatprep.subr.mxu0 0.0
    %2089 = vmatpush1.xpose.msra.mxu0 %v2047
    %2090 = vmatprep.subr.mxu0 0.0
    %2091 = vmatpush2.xpose.msra.mxu0 0.0
    %2092 = vmatprep.subr.mxu0 0.0
    %2093 = vmatpush2.xpose.msra.mxu0 0.0
    %2094 = vmatprep.subr.mxu0 0.0
    %2095 = vmatpush2.xpose.msra.mxu0 0.0
    %2096 = vmatprep.subr.mxu0 0.0
    %2097 = vmatpush2.xpose.msra.mxu0 0.0
    %2098 = vmatprep.subr.mxu0 0.0
    %2099 = vmatpush2.xpose.msra.mxu0 0.0
    %2100 = vmatprep.subr.mxu0 0.0
    %2101 = vmatpush2.xpose.msra.mxu0 0.0
    %2102 = vmatprep.subr.mxu0 0.0
    %2103 = vmatpush2.xpose.msra.mxu0 0.0
    %2104 = vmatprep.subr.mxu0 0.0
    %2105 = vmatpush2.xpose.msra.mxu0 0.0
    %2106 = vmatprep.subr.mxu0 0.0
    %2107 = vmatpush2.xpose.msra.mxu0 0.0
    %2108 = vmatprep.subr.mxu0 0.0
    %2109 = vmatpush2.xpose.msra.mxu0 0.0
    %2110 = vmatprep.subr.mxu0 0.0
    %2111 = vmatpush2.xpose.msra.mxu0 0.0
    %2112 = vmatprep.subr.mxu0 0.0
    %2113 = vmatpush2.xpose.msra.mxu0 0.0
    %2114 = vmatprep.subr.mxu0 0.0
    %2115 = vmatpush2.xpose.msra.mxu0 0.0
    %2116 = vmatprep.subr.mxu0 0.0
    %2117 = vmatpush2.xpose.msra.mxu0 0.0
    %2118 = vmatprep.subr.mxu0 0.0
    %2119 = vmatpush2.xpose.msra.mxu0 0.0
    %2120 = vmatprep.subr.mxu0 0.0
    %2121 = vmatpush2.xpose.msra.mxu0 0.0
    %2122 = vmatprep.mubr.f32.mxu0 0.0
    %2123 = vmatmul.mubr.f32.gmra.mxu0 %v2041
    %v2124 = vpop.f32.mrf.mxu0
    %v2125 = vadd.f32 %v2039, %v2124
    %v2126 = vpop.f32.mrf.mxu0
    %2127 = vmatprep.mubr.f32.mxu0 0.0
    %2128 = vmatmul.mubr.f32.gmra.mxu0 %v2044
    %v2129 = vpop.f32.mrf.mxu0
    %v2130 = vadd.f32 %v2039, %v2129
    %v2131 = vpop.f32.mrf.mxu0
    %2132 = vdwg.mxu0
    %v2133 = vadd.f32 %v2125, %v1931
    %v2134 = vadd.f32 %v2130, %v1932
    %v2135 = vsel %vm318, %v2133, 0.0
    %2136 = vadd.xlane.f32.xlu0 %v2135
    %v2137 = vpop.xlane.xlu0 %2136
    %v2138 = vsel %vm318, %v2134, 0.0
    %2139 = vadd.xlane.f32.xlu0 %v2138
    %v2140 = vpop.xlane.xlu0 %2139
    %v2141 = vmul.f32 %v2137, %v325
    %v2142 = vmul.f32 %v2140, %v325
    %v2143 = vsub.f32 %v2133, %v2141
    %v2144 = vsub.f32 %v2134, %v2142
    %v2145 = vmul.f32 %v2143, %v2143
    %v2146 = vmul.f32 %v2144, %v2144
    %v2147 = vsel %vm318, %v2145, 0.0
    %2148 = vadd.xlane.f32.xlu0 %v2147
    %v2149 = vpop.xlane.xlu0 %2148
    %v2150 = vsel %vm318, %v2146, 0.0
    %2151 = vadd.xlane.f32.xlu0 %v2150
    %v2152 = vpop.xlane.xlu0 %2151
    %v2153 = vmul.f32 %v2149, %v325
    %v2154 = vmul.f32 %v2152, %v325
    %v2155 = vadd.f32 %v2153, 1e-12
    %v2156 = vadd.f32 %v2154, 1e-12
    %v2157 = vrsqrt.pop %v2155
    %v2158 = vrsqrt.pop %v2156
    %v2159 = vmul.f32 %v2143, %v2157
    %v2160 = vmul.f32 %v2144, %v2158
    %v2161 = vlaneseq
    %v2162 = vshrl.u32 %v2161, 7
    %v2163 = vsub.s32 6, %v2162
    %v2164 = vrot.slane %v1306, %v2163
    %v2165 = vmul.f32 %v2159, %v2164
    %v2166 = vmul.f32 %v2160, %v2164
    %v2167 = vlaneseq
    %v2168 = vshrl.u32 %v2167, 7
    %v2169 = vsub.s32 7, %v2168
    %v2170 = vrot.slane %v1306, %v2169
    %v2171 = vadd.f32 %v2165, %v2170
    %v2172 = vadd.f32 %v2166, %v2170
    %v2173 = vlaneseq
    %v2174 = vshrl.u32 %v2173, 7
    %v2175 = vsub.s32 2, %v2174
    %v2176 = vrot.slane %v317, %v2175
    %v2178 = vsel %vm318, %v2171, 0
    %v2181 = vsel %vm318, %v2172, 0
    %2183 = vmatprep.subr.mxu0 0.0
    %2184 = vmatpush1.msra.mxu0 0.0
    %2185 = vmatprep.subr.mxu0 0.0
    %2186 = vmatpush1.msra.mxu0 0.0
    %2187 = vmatprep.subr.mxu0 0.0
    %2188 = vmatpush1.msra.mxu0 0.0
    %2189 = vmatprep.subr.mxu0 0.0
    %2190 = vmatpush1.msra.mxu0 0.0
    %2191 = vmatprep.subr.mxu0 0.0
    %2192 = vmatpush1.msra.mxu0 0.0
    %2193 = vmatprep.subr.mxu0 0.0
    %2194 = vmatpush1.msra.mxu0 0.0
    %2195 = vmatprep.subr.mxu0 0.0
    %2196 = vmatpush1.msra.mxu0 0.0
    %2197 = vmatprep.subr.mxu0 0.0
    %2198 = vmatpush1.msra.mxu0 0.0
    %2199 = vmatprep.subr.mxu0 0.0
    %2200 = vmatpush1.msra.mxu0 0.0
    %2201 = vmatprep.subr.mxu0 0.0
    %2202 = vmatpush1.msra.mxu0 0.0
    %2203 = vmatprep.subr.mxu0 0.0
    %2204 = vmatpush1.msra.mxu0 0.0
    %2205 = vmatprep.subr.mxu0 0.0
    %2206 = vmatpush1.msra.mxu0 0.0
    %2207 = vmatprep.subr.mxu0 0.0
    %2208 = vmatpush1.msra.mxu0 %v316
    %2209 = vmatprep.subr.mxu0 0.0
    %2210 = vmatpush1.msra.mxu0 %v315
    %2211 = vmatprep.subr.mxu0 0.0
    %2212 = vmatpush1.msra.mxu0 %v314
    %2213 = vmatprep.subr.mxu0 0.0
    %2214 = vmatpush1.msra.mxu0 %v313
    %2215 = vmatprep.subr.mxu0 0.0
    %2216 = vmatpush2.msra.mxu0 0.0
    %2217 = vmatprep.subr.mxu0 0.0
    %2218 = vmatpush2.msra.mxu0 0.0
    %2219 = vmatprep.subr.mxu0 0.0
    %2220 = vmatpush2.msra.mxu0 0.0
    %2221 = vmatprep.subr.mxu0 0.0
    %2222 = vmatpush2.msra.mxu0 0.0
    %2223 = vmatprep.subr.mxu0 0.0
    %2224 = vmatpush2.msra.mxu0 0.0
    %2225 = vmatprep.subr.mxu0 0.0
    %2226 = vmatpush2.msra.mxu0 0.0
    %2227 = vmatprep.subr.mxu0 0.0
    %2228 = vmatpush2.msra.mxu0 0.0
    %2229 = vmatprep.subr.mxu0 0.0
    %2230 = vmatpush2.msra.mxu0 0.0
    %2231 = vmatprep.subr.mxu0 0.0
    %2232 = vmatpush2.msra.mxu0 0.0
    %2233 = vmatprep.subr.mxu0 0.0
    %2234 = vmatpush2.msra.mxu0 0.0
    %2235 = vmatprep.subr.mxu0 0.0
    %2236 = vmatpush2.msra.mxu0 0.0
    %2237 = vmatprep.subr.mxu0 0.0
    %2238 = vmatpush2.msra.mxu0 0.0
    %2239 = vmatprep.subr.mxu0 0.0
    %2240 = vmatpush2.msra.mxu0 0.0
    %2241 = vmatprep.subr.mxu0 0.0
    %2242 = vmatpush2.msra.mxu0 0.0
    %2243 = vmatprep.subr.mxu0 0.0
    %2244 = vmatpush2.msra.mxu0 0.0
    %2245 = vmatprep.subr.mxu0 0.0
    %2246 = vmatpush2.msra.mxu0 0.0
    %2247 = vmatprep.mubr.f32.mxu0 0.0
    %2248 = vmatmul.mubr.f32.gmra.mxu0 %v2178
    %v2249 = vpop.f32.mrf.mxu0
    %v2250 = vadd.f32 %v2176, %v2249
    %v2251 = vpop.f32.mrf.mxu0
    %2252 = vmatprep.mubr.f32.mxu0 0.0
    %2253 = vmatmul.mubr.f32.gmra.mxu0 %v2181
    %v2254 = vpop.f32.mrf.mxu0
    %v2255 = vadd.f32 %v2176, %v2254
    %v2256 = vpop.f32.mrf.mxu0
    %2257 = vdwg.mxu0
    %v2258 = vmul.f32 %v2250, 0.5
    %v2259 = vmul.f32 %v2255, 0.5
    %v2260 = vtanh.pop %v2258
    %v2261 = vtanh.pop %v2259
    %v2262 = vadd.f32 %v2260, 1.0
    %v2263 = vadd.f32 %v2261, 1.0
    %v2264 = vmul.f32 %v2262, 0.5
    %v2265 = vmul.f32 %v2263, 0.5
    %2266 = vst [vmem:[%s7] sm:$0xff] %v2264
    %2267 = vst [vmem:[%s7 + $0x8] sm:$0xff] %v2265
    // Predicated region
    $region22: #{bert_detector_forward.1} parent=1 // pred_check
      _
    $region23: #{bert_detector_forward.1} parent=1 // pred_check_branch
      %2269 = sbr.rel (0) target = $region25
    $region24: #{bert_detector_forward.1} parent=1 // pred_region
      _
    $region25: #{bert_detector_forward.1} parent=1 // pred_fallthru
      _
    // Predicated region
    $region26: #{bert_detector_forward.1} parent=1 // pred_check
      _
    $region27: #{bert_detector_forward.1} parent=1 // pred_check_branch
      %2271 = sbr.rel (0) target = $region29
    $region28: #{bert_detector_forward.1} parent=1 // pred_region
      _
    $region29: #{bert_detector_forward.1} parent=1 // pred_fallthru
      _
    %2272 = vsyncpa [#allocation7], 1

</llo_original>
